<compile_context>
chip_gen: v7x
topology: tpu7x:2x2x1
jax: 0.10.0
libtpu: 0.0.40
codegen_flags: <defaults>
</compile_context>

<pallas_src>
import jax
import jax.numpy as jnp
from jax.experimental import pallas as pl
from jax.experimental.pallas import tpu as pltpu


# ------------------------------- fused kernel --------------------------------

def _cifar10_fused_kernel(x_ref, g1_ref, b1_ref, sh1_ref, sw1_ref,
                          g2_ref, b2_ref, sh2_ref, sw2_ref,
                          v1_ref, fb1_ref, v2_ref, fb2_ref, v3_ref, fb3_ref,
                          out_ref, p1_ref, p2_ref):
    """One grid step == one image. Activation layout: [H, W*C] (channels interleaved
    along lanes). All matmuls are bf16 x bf16 -> f32; all epilogues in f32."""
    f32, bf16 = jnp.float32, jnp.bfloat16

    def mm(a, b):
        return jnp.dot(a.astype(bf16), b.astype(bf16), preferred_element_type=f32)

    # ---- conv1 (3->6, 5x5 valid) + bias + ReLU : [28, 28*6] ----
    o1 = mm(x_ref[0, 0:28, :], g1_ref[0])
    for i in range(1, 5):
        o1 = o1 + mm(x_ref[0, i:i + 28, :], g1_ref[i])
    o1 = jnp.maximum(o1 + b1_ref[...], 0.0)

    # ---- maxpool 2x2 via even/odd row & column-block selection matmuls : [14, 14*6] ----
    h1 = jnp.maximum(mm(sh1_ref[0], o1), mm(sh1_ref[1], o1))
    p1_ref[...] = jnp.maximum(mm(h1, sw1_ref[0]), mm(h1, sw1_ref[1]))

    # ---- conv2 (6->16, 5x5 valid) + bias + ReLU : [10, 10*16] ----
    o2 = mm(p1_ref[0:10, :], g2_ref[0])
    for i in range(1, 5):
        o2 = o2 + mm(p1_ref[i:i + 10, :], g2_ref[i])
    o2 = jnp.maximum(o2 + b2_ref[...], 0.0)

    # ---- maxpool 2x2 : [5, 5*16] ----
    h2 = jnp.maximum(mm(sh2_ref[0], o2), mm(sh2_ref[1], o2))
    p2_ref[...] = jnp.maximum(mm(h2, sw2_ref[0]), mm(h2, sw2_ref[1]))

    # ---- fc1 + ReLU (PyTorch (c,h,w) flatten order folded into v1) : [1, 120] ----
    f = mm(p2_ref[0:1, :], v1_ref[0])
    for h in range(1, 5):
        f = f + mm(p2_ref[h:h + 1, :], v1_ref[h])
    f = jnp.maximum(f + fb1_ref[...], 0.0)

    # ---- fc2 + ReLU : [1, 84] ----
    f = jnp.maximum(mm(f, v2_ref[...]) + fb2_ref[...], 0.0)

    # ---- fc3 : [1, 10] ----
    out_ref[0] = mm(f, v3_ref[...]) + fb3_ref[...]


# --------------------------- host-side weight packing ------------------------

def _conv_toeplitz(w, in_w, out_w):
    """w: [Cout, Cin, kh, kw] (PyTorch OIHW) -> [kh, in_w*Cin, out_w*Cout] banded
    matrices G_i with G_i[u*Cin + c, x*Cout + co] = w[co, c, i, u - x]."""
    cout, cin, kh, kw = w.shape
    j = jnp.arange(in_w)[:, None] - jnp.arange(out_w)[None, :]        # [in_w, out_w]
    valid = (j >= 0) & (j < kw)
    wt = jnp.transpose(w, (2, 3, 1, 0))                               # [kh, kw, Cin, Cout]
    g = wt[:, jnp.clip(j, 0, kw - 1), :, :]                           # [kh, in_w, out_w, Cin, Cout]
    g = jnp.where(valid[None, :, :, None, None], g, 0.0)
    g = jnp.transpose(g, (0, 1, 3, 2, 4))                             # [kh, in_w, Cin, out_w, Cout]
    return g.reshape(kh, in_w * cin, out_w * cout)


def _pool_selectors(out_hw, channels):
    """0/1 selection matrices implementing 2x2 max-pool as matmuls.
    rows: [2, out_hw, 2*out_hw]   (even / odd row pick, applied on the left)
    cols: [2, 2*out_hw*C, out_hw*C] (even / odd W-block pick, applied on the right)"""
    f32 = jnp.float32
    e = jnp.array([[1.0, 0.0]], f32)
    o = jnp.array([[0.0, 1.0]], f32)
    eye_hw = jnp.eye(out_hw, dtype=f32)
    eye_c = jnp.eye(channels, dtype=f32)
    rows = jnp.stack([jnp.kron(eye_hw, e), jnp.kron(eye_hw, o)])
    cols = jnp.stack([jnp.kron(jnp.kron(eye_hw, e.T), eye_c),
                      jnp.kron(jnp.kron(eye_hw, o.T), eye_c)])
    return rows.astype(jnp.bfloat16), cols.astype(jnp.bfloat16)


def _prep_inputs(params, x):
    bf16 = jnp.bfloat16
    B = x.shape[0]
    # NCHW -> interleaved [B, H, W*C]
    x_il = jnp.transpose(x, (0, 2, 3, 1)).reshape(B, 32, 32 * 3)

    g1 = _conv_toeplitz(params["conv1_w"], 32, 28).astype(bf16)       # [5, 96, 168]
    g2 = _conv_toeplitz(params["conv2_w"], 14, 10).astype(bf16)       # [5, 84, 160]
    b1 = jnp.tile(params["conv1_b"], 28).reshape(1, 28 * 6)           # f32
    b2 = jnp.tile(params["conv2_b"], 10).reshape(1, 10 * 16)          # f32

    sh1, sw1 = _pool_selectors(14, 6)                                 # [2,14,28], [2,168,84]
    sh2, sw2 = _pool_selectors(5, 16)                                 # [2,5,10],  [2,160,80]

    # fc1: fold the (c,h,w)->(h, w*16+c) flatten permutation into the weights.
    v1 = jnp.transpose(params["fc1_w"].reshape(120, 16, 5, 5),
                       (2, 3, 1, 0)).reshape(5, 80, 120).astype(bf16)
    v2 = params["fc2_w"].T.astype(bf16)                               # [120, 84]
    v3 = params["fc3_w"].T.astype(bf16)                               # [84, 10]
    fb1 = params["fc1_b"].reshape(1, 120)
    fb2 = params["fc2_b"].reshape(1, 84)
    fb3 = params["fc3_b"].reshape(1, 10)
    return (x_il, g1, b1, sh1, sw1, g2, b2, sh2, sw2,
            v1, fb1, v2, fb2, v3, fb3)


# --------------------------------- forward -----------------------------------

def cifar10net_forward(params, x):
    B = x.shape[0]
    ins = _prep_inputs(params, x)
    weight_ins = ins[1:]

    def const_spec(a):
        return pl.BlockSpec(a.shape, lambda b: (0,) * a.ndim)

    out = pl.pallas_call(
        _cifar10_fused_kernel,
        out_shape=jax.ShapeDtypeStruct((B, 1, 10), jnp.float32),
        grid=(B,),
        in_specs=[pl.BlockSpec((1, 32, 96), lambda b: (b, 0, 0))]
                 + [const_spec(a) for a in weight_ins],
        out_specs=pl.BlockSpec((1, 1, 10), lambda b: (b, 0, 0)),
        scratch_shapes=[pltpu.VMEM((14, 84), jnp.float32),    # pooled conv1 map
                        pltpu.VMEM((5, 80), jnp.float32)],    # pooled conv2 map
        compiler_params=pltpu.CompilerParams(
            dimension_semantics=("parallel",)),               # v7x: batch across 2 TCs
    )(*ins)
    return out.reshape(B, 10)


# --------------------------- deterministic parameters -------------------------

def init_params(key):
    # PyTorch-default-style U(-1/sqrt(fan_in), 1/sqrt(fan_in)), deterministic.
    def uni(k, shape, fan_in):
        bound = 1.0 / float(fan_in) ** 0.5
        return jax.random.uniform(k, shape, jnp.float32, -bound, bound)

    ks = jax.random.split(key, 10)
    return {
        "conv1_w": uni(ks[0], (6, 3, 5, 5), 3 * 5 * 5),
        "conv1_b": uni(ks[1], (6,), 3 * 5 * 5),
        "conv2_w": uni(ks[2], (16, 6, 5, 5), 6 * 5 * 5),
        "conv2_b": uni(ks[3], (16,), 6 * 5 * 5),
        "fc1_w": uni(ks[4], (120, 400), 400),
        "fc1_b": uni(ks[5], (120,), 400),
        "fc2_w": uni(ks[6], (84, 120), 120),
        "fc2_b": uni(ks[7], (84,), 120),
        "fc3_w": uni(ks[8], (10, 84), 84),
        "fc3_b": uni(ks[9], (10,), 84),
    }


# -------------------------------- pure-JAX ref --------------------------------

def reference_forward(params, x):
    hi = jax.lax.Precision.HIGHEST

    def conv(x, w, b):
        y = jax.lax.conv_general_dilated(
            x, w, (1, 1), "VALID",
            dimension_numbers=("NCHW", "OIHW", "NCHW"), precision=hi)
        return jax.nn.relu(y + b[None, :, None, None])

    def pool(x):
        return jax.lax.reduce_window(
            x, -jnp.inf, jax.lax.max, (1, 1, 2, 2), (1, 1, 2, 2), "VALID")

    x = pool(conv(x, params["conv1_w"], params["conv1_b"]))
    x = pool(conv(x, params["conv2_w"], params["conv2_b"]))
    x = x.reshape(x.shape[0], 16 * 5 * 5)
    x = jax.nn.relu(jnp.dot(x, params["fc1_w"].T, precision=hi) + params["fc1_b"])
    x = jax.nn.relu(jnp.dot(x, params["fc2_w"].T, precision=hi) + params["fc2_b"])
    x = jnp.dot(x, params["fc3_w"].T, precision=hi) + params["fc3_b"]
    return x


# ------------------------------------ main ------------------------------------

if __name__ == "__main__":
    key = jax.random.PRNGKey(0)
    pkey, xkey = jax.random.split(key)
    params = init_params(pkey)
    # Cifar10Net's flatten (16*5*5) forces 3x32x32 inputs; batch kept small.
    x = jax.random.normal(xkey, (2, 3, 32, 32), jnp.float32)

    out = jax.jit(cifar10net_forward)(params, x)
    out = jax.block_until_ready(out)

    ref = reference_forward(params, x)
    assert out.shape == (2, 10), out.shape
    max_err = float(jnp.max(jnp.abs(out - ref)))
    assert jnp.allclose(out, ref, atol=2e-2, rtol=2e-2), max_err

    print("KERNEL_OK")
</pallas_src>

<mosaic_0001>
module attributes {stable_mosaic.version = 11 : i64} {
  func.func @_cifar10_fused_kernel(%arg0: i32, %arg1: memref<1x32x96xf32, #tpu.memory_space<vmem>>, %arg2: memref<5x96x168xbf16, #tpu.memory_space<vmem>>, %arg3: memref<1x168xf32, #tpu.memory_space<vmem>>, %arg4: memref<2x14x28xbf16, #tpu.memory_space<vmem>>, %arg5: memref<2x168x84xbf16, #tpu.memory_space<vmem>>, %arg6: memref<5x84x160xbf16, #tpu.memory_space<vmem>>, %arg7: memref<1x160xf32, #tpu.memory_space<vmem>>, %arg8: memref<2x5x10xbf16, #tpu.memory_space<vmem>>, %arg9: memref<2x160x80xbf16, #tpu.memory_space<vmem>>, %arg10: memref<5x80x120xbf16, #tpu.memory_space<vmem>>, %arg11: memref<1x120xf32, #tpu.memory_space<vmem>>, %arg12: memref<120x84xbf16, #tpu.memory_space<vmem>>, %arg13: memref<1x84xf32, #tpu.memory_space<vmem>>, %arg14: memref<84x10xbf16, #tpu.memory_space<vmem>>, %arg15: memref<1x10xf32, #tpu.memory_space<vmem>>, %arg16: memref<1x1x10xf32, #tpu.memory_space<vmem>>, %arg17: memref<14x84xf32, #tpu.memory_space<vmem>>, %arg18: memref<5x80xf32, #tpu.memory_space<vmem>>) attributes {dimension_semantics = [#tpu.dimension_semantics<parallel>], iteration_bounds = array<i64: 2>, scalar_prefetch = 0 : i64, scratch_operands = 2 : i64, tpu.core_type = #tpu.core_type<tc>, window_params = [{transform_indices = @transform_0, window_bounds = array<i64: 1, 32, 96>}, {pipeline_mode = #tpu.pipeline_mode<synchronous>, transform_indices = @transform_1, window_bounds = array<i64: 5, 96, 168>}, {pipeline_mode = #tpu.pipeline_mode<synchronous>, transform_indices = @transform_2, window_bounds = array<i64: 1, 168>}, {pipeline_mode = #tpu.pipeline_mode<synchronous>, transform_indices = @transform_3, window_bounds = array<i64: 2, 14, 28>}, {pipeline_mode = #tpu.pipeline_mode<synchronous>, transform_indices = @transform_4, window_bounds = array<i64: 2, 168, 84>}, {pipeline_mode = #tpu.pipeline_mode<synchronous>, transform_indices = @transform_5, window_bounds = array<i64: 5, 84, 160>}, {pipeline_mode = #tpu.pipeline_mode<synchronous>, transform_indices = @transform_6, window_bounds = array<i64: 1, 160>}, {pipeline_mode = #tpu.pipeline_mode<synchronous>, transform_indices = @transform_7, window_bounds = array<i64: 2, 5, 10>}, {pipeline_mode = #tpu.pipeline_mode<synchronous>, transform_indices = @transform_8, window_bounds = array<i64: 2, 160, 80>}, {pipeline_mode = #tpu.pipeline_mode<synchronous>, transform_indices = @transform_9, window_bounds = array<i64: 5, 80, 120>}, {pipeline_mode = #tpu.pipeline_mode<synchronous>, transform_indices = @transform_10, window_bounds = array<i64: 1, 120>}, {pipeline_mode = #tpu.pipeline_mode<synchronous>, transform_indices = @transform_11, window_bounds = array<i64: 120, 84>}, {pipeline_mode = #tpu.pipeline_mode<synchronous>, transform_indices = @transform_12, window_bounds = array<i64: 1, 84>}, {pipeline_mode = #tpu.pipeline_mode<synchronous>, transform_indices = @transform_13, window_bounds = array<i64: 84, 10>}, {pipeline_mode = #tpu.pipeline_mode<synchronous>, transform_indices = @transform_14, window_bounds = array<i64: 1, 10>}, {transform_indices = @transform_15, window_bounds = array<i64: 1, 1, 10>}]} {
    %c0 = arith.constant 0 : index
    %c0_0 = arith.constant 0 : index
    %c0_1 = arith.constant 0 : index
    %0 = vector.load %arg1[%c0, %c0_0, %c0_1] : memref<1x32x96xf32, #tpu.memory_space<vmem>>, vector<1x28x96xf32>
    %1 = vector.shape_cast %0 : vector<1x28x96xf32> to vector<28x96xf32>
    %c0_2 = arith.constant 0 : index
    %c0_3 = arith.constant 0 : index
    %c0_4 = arith.constant 0 : index
    %2 = vector.load %arg2[%c0_2, %c0_3, %c0_4] : memref<5x96x168xbf16, #tpu.memory_space<vmem>>, vector<1x96x168xbf16>
    %3 = vector.shape_cast %2 : vector<1x96x168xbf16> to vector<96x168xbf16>
    %4 = arith.truncf %1 : vector<28x96xf32> to vector<28x96xbf16>
    %cst = arith.constant dense<0.000000e+00> : vector<28x168xf32>
    %5 = tpu.matmul %4, %3, %cst {dimension_numbers = #tpu.dot_dimension_numbers<[1], [0], [0], [1], [0, 0, 1, 1], [], []>} : vector<28x96xbf16>, vector<96x168xbf16>, vector<28x168xf32> -> vector<28x168xf32>
    %c0_5 = arith.constant 0 : index
    %c1 = arith.constant 1 : index
    %c0_6 = arith.constant 0 : index
    %6 = vector.load %arg1[%c0_5, %c1, %c0_6] : memref<1x32x96xf32, #tpu.memory_space<vmem>>, vector<1x28x96xf32>
    %7 = vector.shape_cast %6 : vector<1x28x96xf32> to vector<28x96xf32>
    %c1_7 = arith.constant 1 : index
    %c0_8 = arith.constant 0 : index
    %c0_9 = arith.constant 0 : index
    %8 = vector.load %arg2[%c1_7, %c0_8, %c0_9] : memref<5x96x168xbf16, #tpu.memory_space<vmem>>, vector<1x96x168xbf16>
    %9 = vector.shape_cast %8 : vector<1x96x168xbf16> to vector<96x168xbf16>
    %10 = arith.truncf %7 : vector<28x96xf32> to vector<28x96xbf16>
    %cst_10 = arith.constant dense<0.000000e+00> : vector<28x168xf32>
    %11 = tpu.matmul %10, %9, %cst_10 {dimension_numbers = #tpu.dot_dimension_numbers<[1], [0], [0], [1], [0, 0, 1, 1], [], []>} : vector<28x96xbf16>, vector<96x168xbf16>, vector<28x168xf32> -> vector<28x168xf32>
    %12 = arith.addf %5, %11 : vector<28x168xf32>
    %c0_11 = arith.constant 0 : index
    %c2 = arith.constant 2 : index
    %c0_12 = arith.constant 0 : index
    %13 = vector.load %arg1[%c0_11, %c2, %c0_12] : memref<1x32x96xf32, #tpu.memory_space<vmem>>, vector<1x28x96xf32>
    %14 = vector.shape_cast %13 : vector<1x28x96xf32> to vector<28x96xf32>
    %c2_13 = arith.constant 2 : index
    %c0_14 = arith.constant 0 : index
    %c0_15 = arith.constant 0 : index
    %15 = vector.load %arg2[%c2_13, %c0_14, %c0_15] : memref<5x96x168xbf16, #tpu.memory_space<vmem>>, vector<1x96x168xbf16>
    %16 = vector.shape_cast %15 : vector<1x96x168xbf16> to vector<96x168xbf16>
    %17 = arith.truncf %14 : vector<28x96xf32> to vector<28x96xbf16>
    %cst_16 = arith.constant dense<0.000000e+00> : vector<28x168xf32>
    %18 = tpu.matmul %17, %16, %cst_16 {dimension_numbers = #tpu.dot_dimension_numbers<[1], [0], [0], [1], [0, 0, 1, 1], [], []>} : vector<28x96xbf16>, vector<96x168xbf16>, vector<28x168xf32> -> vector<28x168xf32>
    %19 = arith.addf %12, %18 : vector<28x168xf32>
    %c0_17 = arith.constant 0 : index
    %c3 = arith.constant 3 : index
    %c0_18 = arith.constant 0 : index
    %20 = vector.load %arg1[%c0_17, %c3, %c0_18] : memref<1x32x96xf32, #tpu.memory_space<vmem>>, vector<1x28x96xf32>
    %21 = vector.shape_cast %20 : vector<1x28x96xf32> to vector<28x96xf32>
    %c3_19 = arith.constant 3 : index
    %c0_20 = arith.constant 0 : index
    %c0_21 = arith.constant 0 : index
    %22 = vector.load %arg2[%c3_19, %c0_20, %c0_21] : memref<5x96x168xbf16, #tpu.memory_space<vmem>>, vector<1x96x168xbf16>
    %23 = vector.shape_cast %22 : vector<1x96x168xbf16> to vector<96x168xbf16>
    %24 = arith.truncf %21 : vector<28x96xf32> to vector<28x96xbf16>
    %cst_22 = arith.constant dense<0.000000e+00> : vector<28x168xf32>
    %25 = tpu.matmul %24, %23, %cst_22 {dimension_numbers = #tpu.dot_dimension_numbers<[1], [0], [0], [1], [0, 0, 1, 1], [], []>} : vector<28x96xbf16>, vector<96x168xbf16>, vector<28x168xf32> -> vector<28x168xf32>
    %26 = arith.addf %19, %25 : vector<28x168xf32>
    %c0_23 = arith.constant 0 : index
    %c4 = arith.constant 4 : index
    %c0_24 = arith.constant 0 : index
    %27 = vector.load %arg1[%c0_23, %c4, %c0_24] : memref<1x32x96xf32, #tpu.memory_space<vmem>>, vector<1x28x96xf32>
    %28 = vector.shape_cast %27 : vector<1x28x96xf32> to vector<28x96xf32>
    %c4_25 = arith.constant 4 : index
    %c0_26 = arith.constant 0 : index
    %c0_27 = arith.constant 0 : index
    %29 = vector.load %arg2[%c4_25, %c0_26, %c0_27] : memref<5x96x168xbf16, #tpu.memory_space<vmem>>, vector<1x96x168xbf16>
    %30 = vector.shape_cast %29 : vector<1x96x168xbf16> to vector<96x168xbf16>
    %31 = arith.truncf %28 : vector<28x96xf32> to vector<28x96xbf16>
    %cst_28 = arith.constant dense<0.000000e+00> : vector<28x168xf32>
    %32 = tpu.matmul %31, %30, %cst_28 {dimension_numbers = #tpu.dot_dimension_numbers<[1], [0], [0], [1], [0, 0, 1, 1], [], []>} : vector<28x96xbf16>, vector<96x168xbf16>, vector<28x168xf32> -> vector<28x168xf32>
    %33 = arith.addf %26, %32 : vector<28x168xf32>
    %c0_29 = arith.constant 0 : index
    %c0_30 = arith.constant 0 : index
    %34 = vector.load %arg3[%c0_29, %c0_30] : memref<1x168xf32, #tpu.memory_space<vmem>>, vector<1x168xf32>
    %35 = vector.broadcast %34 : vector<1x168xf32> to vector<28x168xf32>
    %36 = arith.addf %33, %35 : vector<28x168xf32>
    %cst_31 = arith.constant 0.000000e+00 : f32
    %37 = vector.broadcast %cst_31 : f32 to vector<28x168xf32>
    %38 = arith.maximumf %36, %37 : vector<28x168xf32>
    %c0_32 = arith.constant 0 : index
    %c0_33 = arith.constant 0 : index
    %c0_34 = arith.constant 0 : index
    %39 = vector.load %arg4[%c0_32, %c0_33, %c0_34] : memref<2x14x28xbf16, #tpu.memory_space<vmem>>, vector<1x14x28xbf16>
    %40 = vector.shape_cast %39 : vector<1x14x28xbf16> to vector<14x28xbf16>
    %41 = arith.truncf %38 : vector<28x168xf32> to vector<28x168xbf16>
    %cst_35 = arith.constant dense<0.000000e+00> : vector<14x168xf32>
    %42 = tpu.matmul %40, %41, %cst_35 {dimension_numbers = #tpu.dot_dimension_numbers<[1], [0], [0], [1], [0, 0, 1, 1], [], []>} : vector<14x28xbf16>, vector<28x168xbf16>, vector<14x168xf32> -> vector<14x168xf32>
    %c1_36 = arith.constant 1 : index
    %c0_37 = arith.constant 0 : index
    %c0_38 = arith.constant 0 : index
    %43 = vector.load %arg4[%c1_36, %c0_37, %c0_38] : memref<2x14x28xbf16, #tpu.memory_space<vmem>>, vector<1x14x28xbf16>
    %44 = vector.shape_cast %43 : vector<1x14x28xbf16> to vector<14x28xbf16>
    %45 = arith.truncf %38 : vector<28x168xf32> to vector<28x168xbf16>
    %cst_39 = arith.constant dense<0.000000e+00> : vector<14x168xf32>
    %46 = tpu.matmul %44, %45, %cst_39 {dimension_numbers = #tpu.dot_dimension_numbers<[1], [0], [0], [1], [0, 0, 1, 1], [], []>} : vector<14x28xbf16>, vector<28x168xbf16>, vector<14x168xf32> -> vector<14x168xf32>
    %47 = arith.maximumf %42, %46 : vector<14x168xf32>
    %c0_40 = arith.constant 0 : index
    %c0_41 = arith.constant 0 : index
    %c0_42 = arith.constant 0 : index
    %48 = vector.load %arg5[%c0_40, %c0_41, %c0_42] : memref<2x168x84xbf16, #tpu.memory_space<vmem>>, vector<1x168x84xbf16>
    %49 = vector.shape_cast %48 : vector<1x168x84xbf16> to vector<168x84xbf16>
    %50 = arith.truncf %47 : vector<14x168xf32> to vector<14x168xbf16>
    %cst_43 = arith.constant dense<0.000000e+00> : vector<14x84xf32>
    %51 = tpu.matmul %50, %49, %cst_43 {dimension_numbers = #tpu.dot_dimension_numbers<[1], [0], [0], [1], [0, 0, 1, 1], [], []>} : vector<14x168xbf16>, vector<168x84xbf16>, vector<14x84xf32> -> vector<14x84xf32>
    %c1_44 = arith.constant 1 : index
    %c0_45 = arith.constant 0 : index
    %c0_46 = arith.constant 0 : index
    %52 = vector.load %arg5[%c1_44, %c0_45, %c0_46] : memref<2x168x84xbf16, #tpu.memory_space<vmem>>, vector<1x168x84xbf16>
    %53 = vector.shape_cast %52 : vector<1x168x84xbf16> to vector<168x84xbf16>
    %54 = arith.truncf %47 : vector<14x168xf32> to vector<14x168xbf16>
    %cst_47 = arith.constant dense<0.000000e+00> : vector<14x84xf32>
    %55 = tpu.matmul %54, %53, %cst_47 {dimension_numbers = #tpu.dot_dimension_numbers<[1], [0], [0], [1], [0, 0, 1, 1], [], []>} : vector<14x168xbf16>, vector<168x84xbf16>, vector<14x84xf32> -> vector<14x84xf32>
    %56 = arith.maximumf %51, %55 : vector<14x84xf32>
    %c0_48 = arith.constant 0 : index
    %c0_49 = arith.constant 0 : index
    %57 = vector.load %arg17[%c0_48, %c0_49] : memref<14x84xf32, #tpu.memory_space<vmem>>, vector<14x84xf32>
    tpu.vector_store %arg17[%c0_48, %c0_49], %56 {strides = array<i32>} : memref<14x84xf32, #tpu.memory_space<vmem>>, vector<14x84xf32>,
    %c0_50 = arith.constant 0 : index
    %c0_51 = arith.constant 0 : index
    %58 = vector.load %arg17[%c0_50, %c0_51] : memref<14x84xf32, #tpu.memory_space<vmem>>, vector<10x84xf32>
    %c0_52 = arith.constant 0 : index
    %c0_53 = arith.constant 0 : index
    %c0_54 = arith.constant 0 : index
    %59 = vector.load %arg6[%c0_52, %c0_53, %c0_54] : memref<5x84x160xbf16, #tpu.memory_space<vmem>>, vector<1x84x160xbf16>
    %60 = vector.shape_cast %59 : vector<1x84x160xbf16> to vector<84x160xbf16>
    %61 = arith.truncf %58 : vector<10x84xf32> to vector<10x84xbf16>
    %cst_55 = arith.constant dense<0.000000e+00> : vector<10x160xf32>
    %62 = tpu.matmul %61, %60, %cst_55 {dimension_numbers = #tpu.dot_dimension_numbers<[1], [0], [0], [1], [0, 0, 1, 1], [], []>} : vector<10x84xbf16>, vector<84x160xbf16>, vector<10x160xf32> -> vector<10x160xf32>
    %c1_56 = arith.constant 1 : index
    %c0_57 = arith.constant 0 : index
    %63 = vector.load %arg17[%c1_56, %c0_57] : memref<14x84xf32, #tpu.memory_space<vmem>>, vector<10x84xf32>
    %c1_58 = arith.constant 1 : index
    %c0_59 = arith.constant 0 : index
    %c0_60 = arith.constant 0 : index
    %64 = vector.load %arg6[%c1_58, %c0_59, %c0_60] : memref<5x84x160xbf16, #tpu.memory_space<vmem>>, vector<1x84x160xbf16>
    %65 = vector.shape_cast %64 : vector<1x84x160xbf16> to vector<84x160xbf16>
    %66 = arith.truncf %63 : vector<10x84xf32> to vector<10x84xbf16>
    %cst_61 = arith.constant dense<0.000000e+00> : vector<10x160xf32>
    %67 = tpu.matmul %66, %65, %cst_61 {dimension_numbers = #tpu.dot_dimension_numbers<[1], [0], [0], [1], [0, 0, 1, 1], [], []>} : vector<10x84xbf16>, vector<84x160xbf16>, vector<10x160xf32> -> vector<10x160xf32>
    %68 = arith.addf %62, %67 : vector<10x160xf32>
    %c2_62 = arith.constant 2 : index
    %c0_63 = arith.constant 0 : index
    %69 = vector.load %arg17[%c2_62, %c0_63] : memref<14x84xf32, #tpu.memory_space<vmem>>, vector<10x84xf32>
    %c2_64 = arith.constant 2 : index
    %c0_65 = arith.constant 0 : index
    %c0_66 = arith.constant 0 : index
    %70 = vector.load %arg6[%c2_64, %c0_65, %c0_66] : memref<5x84x160xbf16, #tpu.memory_space<vmem>>, vector<1x84x160xbf16>
    %71 = vector.shape_cast %70 : vector<1x84x160xbf16> to vector<84x160xbf16>
    %72 = arith.truncf %69 : vector<10x84xf32> to vector<10x84xbf16>
    %cst_67 = arith.constant dense<0.000000e+00> : vector<10x160xf32>
    %73 = tpu.matmul %72, %71, %cst_67 {dimension_numbers = #tpu.dot_dimension_numbers<[1], [0], [0], [1], [0, 0, 1, 1], [], []>} : vector<10x84xbf16>, vector<84x160xbf16>, vector<10x160xf32> -> vector<10x160xf32>
    %74 = arith.addf %68, %73 : vector<10x160xf32>
    %c3_68 = arith.constant 3 : index
    %c0_69 = arith.constant 0 : index
    %75 = vector.load %arg17[%c3_68, %c0_69] : memref<14x84xf32, #tpu.memory_space<vmem>>, vector<10x84xf32>
    %c3_70 = arith.constant 3 : index
    %c0_71 = arith.constant 0 : index
    %c0_72 = arith.constant 0 : index
    %76 = vector.load %arg6[%c3_70, %c0_71, %c0_72] : memref<5x84x160xbf16, #tpu.memory_space<vmem>>, vector<1x84x160xbf16>
    %77 = vector.shape_cast %76 : vector<1x84x160xbf16> to vector<84x160xbf16>
    %78 = arith.truncf %75 : vector<10x84xf32> to vector<10x84xbf16>
    %cst_73 = arith.constant dense<0.000000e+00> : vector<10x160xf32>
    %79 = tpu.matmul %78, %77, %cst_73 {dimension_numbers = #tpu.dot_dimension_numbers<[1], [0], [0], [1], [0, 0, 1, 1], [], []>} : vector<10x84xbf16>, vector<84x160xbf16>, vector<10x160xf32> -> vector<10x160xf32>
    %80 = arith.addf %74, %79 : vector<10x160xf32>
    %c4_74 = arith.constant 4 : index
    %c0_75 = arith.constant 0 : index
    %81 = vector.load %arg17[%c4_74, %c0_75] : memref<14x84xf32, #tpu.memory_space<vmem>>, vector<10x84xf32>
    %c4_76 = arith.constant 4 : index
    %c0_77 = arith.constant 0 : index
    %c0_78 = arith.constant 0 : index
    %82 = vector.load %arg6[%c4_76, %c0_77, %c0_78] : memref<5x84x160xbf16, #tpu.memory_space<vmem>>, vector<1x84x160xbf16>
    %83 = vector.shape_cast %82 : vector<1x84x160xbf16> to vector<84x160xbf16>
    %84 = arith.truncf %81 : vector<10x84xf32> to vector<10x84xbf16>
    %cst_79 = arith.constant dense<0.000000e+00> : vector<10x160xf32>
    %85 = tpu.matmul %84, %83, %cst_79 {dimension_numbers = #tpu.dot_dimension_numbers<[1], [0], [0], [1], [0, 0, 1, 1], [], []>} : vector<10x84xbf16>, vector<84x160xbf16>, vector<10x160xf32> -> vector<10x160xf32>
    %86 = arith.addf %80, %85 : vector<10x160xf32>
    %c0_80 = arith.constant 0 : index
    %c0_81 = arith.constant 0 : index
    %87 = vector.load %arg7[%c0_80, %c0_81] : memref<1x160xf32, #tpu.memory_space<vmem>>, vector<1x160xf32>
    %88 = vector.broadcast %87 : vector<1x160xf32> to vector<10x160xf32>
    %89 = arith.addf %86, %88 : vector<10x160xf32>
    %cst_82 = arith.constant 0.000000e+00 : f32
    %90 = vector.broadcast %cst_82 : f32 to vector<10x160xf32>
    %91 = arith.maximumf %89, %90 : vector<10x160xf32>
    %c0_83 = arith.constant 0 : index
    %c0_84 = arith.constant 0 : index
    %c0_85 = arith.constant 0 : index
    %92 = vector.load %arg8[%c0_83, %c0_84, %c0_85] : memref<2x5x10xbf16, #tpu.memory_space<vmem>>, vector<1x5x10xbf16>
    %93 = vector.shape_cast %92 : vector<1x5x10xbf16> to vector<5x10xbf16>
    %94 = arith.truncf %91 : vector<10x160xf32> to vector<10x160xbf16>
    %cst_86 = arith.constant dense<0.000000e+00> : vector<5x160xf32>
    %95 = tpu.matmul %93, %94, %cst_86 {dimension_numbers = #tpu.dot_dimension_numbers<[1], [0], [0], [1], [0, 0, 1, 1], [], []>} : vector<5x10xbf16>, vector<10x160xbf16>, vector<5x160xf32> -> vector<5x160xf32>
    %c1_87 = arith.constant 1 : index
    %c0_88 = arith.constant 0 : index
    %c0_89 = arith.constant 0 : index
    %96 = vector.load %arg8[%c1_87, %c0_88, %c0_89] : memref<2x5x10xbf16, #tpu.memory_space<vmem>>, vector<1x5x10xbf16>
    %97 = vector.shape_cast %96 : vector<1x5x10xbf16> to vector<5x10xbf16>
    %98 = arith.truncf %91 : vector<10x160xf32> to vector<10x160xbf16>
    %cst_90 = arith.constant dense<0.000000e+00> : vector<5x160xf32>
    %99 = tpu.matmul %97, %98, %cst_90 {dimension_numbers = #tpu.dot_dimension_numbers<[1], [0], [0], [1], [0, 0, 1, 1], [], []>} : vector<5x10xbf16>, vector<10x160xbf16>, vector<5x160xf32> -> vector<5x160xf32>
    %100 = arith.maximumf %95, %99 : vector<5x160xf32>
    %c0_91 = arith.constant 0 : index
    %c0_92 = arith.constant 0 : index
    %c0_93 = arith.constant 0 : index
    %101 = vector.load %arg9[%c0_91, %c0_92, %c0_93] : memref<2x160x80xbf16, #tpu.memory_space<vmem>>, vector<1x160x80xbf16>
    %102 = vector.shape_cast %101 : vector<1x160x80xbf16> to vector<160x80xbf16>
    %103 = arith.truncf %100 : vector<5x160xf32> to vector<5x160xbf16>
    %cst_94 = arith.constant dense<0.000000e+00> : vector<5x80xf32>
    %104 = tpu.matmul %103, %102, %cst_94 {dimension_numbers = #tpu.dot_dimension_numbers<[1], [0], [0], [1], [0, 0, 1, 1], [], []>} : vector<5x160xbf16>, vector<160x80xbf16>, vector<5x80xf32> -> vector<5x80xf32>
    %c1_95 = arith.constant 1 : index
    %c0_96 = arith.constant 0 : index
    %c0_97 = arith.constant 0 : index
    %105 = vector.load %arg9[%c1_95, %c0_96, %c0_97] : memref<2x160x80xbf16, #tpu.memory_space<vmem>>, vector<1x160x80xbf16>
    %106 = vector.shape_cast %105 : vector<1x160x80xbf16> to vector<160x80xbf16>
    %107 = arith.truncf %100 : vector<5x160xf32> to vector<5x160xbf16>
    %cst_98 = arith.constant dense<0.000000e+00> : vector<5x80xf32>
    %108 = tpu.matmul %107, %106, %cst_98 {dimension_numbers = #tpu.dot_dimension_numbers<[1], [0], [0], [1], [0, 0, 1, 1], [], []>} : vector<5x160xbf16>, vector<160x80xbf16>, vector<5x80xf32> -> vector<5x80xf32>
    %109 = arith.maximumf %104, %108 : vector<5x80xf32>
    %c0_99 = arith.constant 0 : index
    %c0_100 = arith.constant 0 : index
    %110 = vector.load %arg18[%c0_99, %c0_100] : memref<5x80xf32, #tpu.memory_space<vmem>>, vector<5x80xf32>
    tpu.vector_store %arg18[%c0_99, %c0_100], %109 {strides = array<i32>} : memref<5x80xf32, #tpu.memory_space<vmem>>, vector<5x80xf32>,
    %c0_101 = arith.constant 0 : index
    %c0_102 = arith.constant 0 : index
    %111 = vector.load %arg18[%c0_101, %c0_102] : memref<5x80xf32, #tpu.memory_space<vmem>>, vector<1x80xf32>
    %c0_103 = arith.constant 0 : index
    %c0_104 = arith.constant 0 : index
    %c0_105 = arith.constant 0 : index
    %112 = vector.load %arg10[%c0_103, %c0_104, %c0_105] : memref<5x80x120xbf16, #tpu.memory_space<vmem>>, vector<1x80x120xbf16>
    %113 = vector.shape_cast %112 : vector<1x80x120xbf16> to vector<80x120xbf16>
    %114 = arith.truncf %111 : vector<1x80xf32> to vector<1x80xbf16>
    %cst_106 = arith.constant dense<0.000000e+00> : vector<1x120xf32>
    %115 = tpu.matmul %114, %113, %cst_106 {dimension_numbers = #tpu.dot_dimension_numbers<[1], [0], [0], [1], [0, 0, 1, 1], [], []>} : vector<1x80xbf16>, vector<80x120xbf16>, vector<1x120xf32> -> vector<1x120xf32>
    %c1_107 = arith.constant 1 : index
    %c0_108 = arith.constant 0 : index
    %116 = vector.load %arg18[%c1_107, %c0_108] : memref<5x80xf32, #tpu.memory_space<vmem>>, vector<1x80xf32>
    %c1_109 = arith.constant 1 : index
    %c0_110 = arith.constant 0 : index
    %c0_111 = arith.constant 0 : index
    %117 = vector.load %arg10[%c1_109, %c0_110, %c0_111] : memref<5x80x120xbf16, #tpu.memory_space<vmem>>, vector<1x80x120xbf16>
    %118 = vector.shape_cast %117 : vector<1x80x120xbf16> to vector<80x120xbf16>
    %119 = arith.truncf %116 : vector<1x80xf32> to vector<1x80xbf16>
    %cst_112 = arith.constant dense<0.000000e+00> : vector<1x120xf32>
    %120 = tpu.matmul %119, %118, %cst_112 {dimension_numbers = #tpu.dot_dimension_numbers<[1], [0], [0], [1], [0, 0, 1, 1], [], []>} : vector<1x80xbf16>, vector<80x120xbf16>, vector<1x120xf32> -> vector<1x120xf32>
    %121 = arith.addf %115, %120 : vector<1x120xf32>
    %c2_113 = arith.constant 2 : index
    %c0_114 = arith.constant 0 : index
    %122 = vector.load %arg18[%c2_113, %c0_114] : memref<5x80xf32, #tpu.memory_space<vmem>>, vector<1x80xf32>
    %c2_115 = arith.constant 2 : index
    %c0_116 = arith.constant 0 : index
    %c0_117 = arith.constant 0 : index
    %123 = vector.load %arg10[%c2_115, %c0_116, %c0_117] : memref<5x80x120xbf16, #tpu.memory_space<vmem>>, vector<1x80x120xbf16>
    %124 = vector.shape_cast %123 : vector<1x80x120xbf16> to vector<80x120xbf16>
    %125 = arith.truncf %122 : vector<1x80xf32> to vector<1x80xbf16>
    %cst_118 = arith.constant dense<0.000000e+00> : vector<1x120xf32>
    %126 = tpu.matmul %125, %124, %cst_118 {dimension_numbers = #tpu.dot_dimension_numbers<[1], [0], [0], [1], [0, 0, 1, 1], [], []>} : vector<1x80xbf16>, vector<80x120xbf16>, vector<1x120xf32> -> vector<1x120xf32>
    %127 = arith.addf %121, %126 : vector<1x120xf32>
    %c3_119 = arith.constant 3 : index
    %c0_120 = arith.constant 0 : index
    %128 = vector.load %arg18[%c3_119, %c0_120] : memref<5x80xf32, #tpu.memory_space<vmem>>, vector<1x80xf32>
    %c3_121 = arith.constant 3 : index
    %c0_122 = arith.constant 0 : index
    %c0_123 = arith.constant 0 : index
    %129 = vector.load %arg10[%c3_121, %c0_122, %c0_123] : memref<5x80x120xbf16, #tpu.memory_space<vmem>>, vector<1x80x120xbf16>
    %130 = vector.shape_cast %129 : vector<1x80x120xbf16> to vector<80x120xbf16>
    %131 = arith.truncf %128 : vector<1x80xf32> to vector<1x80xbf16>
    %cst_124 = arith.constant dense<0.000000e+00> : vector<1x120xf32>
    %132 = tpu.matmul %131, %130, %cst_124 {dimension_numbers = #tpu.dot_dimension_numbers<[1], [0], [0], [1], [0, 0, 1, 1], [], []>} : vector<1x80xbf16>, vector<80x120xbf16>, vector<1x120xf32> -> vector<1x120xf32>
    %133 = arith.addf %127, %132 : vector<1x120xf32>
    %c4_125 = arith.constant 4 : index
    %c0_126 = arith.constant 0 : index
    %134 = vector.load %arg18[%c4_125, %c0_126] : memref<5x80xf32, #tpu.memory_space<vmem>>, vector<1x80xf32>
    %c4_127 = arith.constant 4 : index
    %c0_128 = arith.constant 0 : index
    %c0_129 = arith.constant 0 : index
    %135 = vector.load %arg10[%c4_127, %c0_128, %c0_129] : memref<5x80x120xbf16, #tpu.memory_space<vmem>>, vector<1x80x120xbf16>
    %136 = vector.shape_cast %135 : vector<1x80x120xbf16> to vector<80x120xbf16>
    %137 = arith.truncf %134 : vector<1x80xf32> to vector<1x80xbf16>
    %cst_130 = arith.constant dense<0.000000e+00> : vector<1x120xf32>
    %138 = tpu.matmul %137, %136, %cst_130 {dimension_numbers = #tpu.dot_dimension_numbers<[1], [0], [0], [1], [0, 0, 1, 1], [], []>} : vector<1x80xbf16>, vector<80x120xbf16>, vector<1x120xf32> -> vector<1x120xf32>
    %139 = arith.addf %133, %138 : vector<1x120xf32>
    %c0_131 = arith.constant 0 : index
    %c0_132 = arith.constant 0 : index
    %140 = vector.load %arg11[%c0_131, %c0_132] : memref<1x120xf32, #tpu.memory_space<vmem>>, vector<1x120xf32>
    %141 = arith.addf %139, %140 : vector<1x120xf32>
    %cst_133 = arith.constant 0.000000e+00 : f32
    %142 = vector.broadcast %cst_133 : f32 to vector<1x120xf32>
    %143 = arith.maximumf %141, %142 : vector<1x120xf32>
    %c0_134 = arith.constant 0 : index
    %c0_135 = arith.constant 0 : index
    %144 = vector.load %arg12[%c0_134, %c0_135] : memref<120x84xbf16, #tpu.memory_space<vmem>>, vector<120x84xbf16>
    %145 = arith.truncf %143 : vector<1x120xf32> to vector<1x120xbf16>
    %cst_136 = arith.constant dense<0.000000e+00> : vector<1x84xf32>
    %146 = tpu.matmul %145, %144, %cst_136 {dimension_numbers = #tpu.dot_dimension_numbers<[1], [0], [0], [1], [0, 0, 1, 1], [], []>} : vector<1x120xbf16>, vector<120x84xbf16>, vector<1x84xf32> -> vector<1x84xf32>
    %c0_137 = arith.constant 0 : index
    %c0_138 = arith.constant 0 : index
    %147 = vector.load %arg13[%c0_137, %c0_138] : memref<1x84xf32, #tpu.memory_space<vmem>>, vector<1x84xf32>
    %148 = arith.addf %146, %147 : vector<1x84xf32>
    %cst_139 = arith.constant 0.000000e+00 : f32
    %149 = vector.broadcast %cst_139 : f32 to vector<1x84xf32>
    %150 = arith.maximumf %148, %149 : vector<1x84xf32>
    %c0_140 = arith.constant 0 : index
    %c0_141 = arith.constant 0 : index
    %151 = vector.load %arg14[%c0_140, %c0_141] : memref<84x10xbf16, #tpu.memory_space<vmem>>, vector<84x10xbf16>
    %152 = arith.truncf %150 : vector<1x84xf32> to vector<1x84xbf16>
    %cst_142 = arith.constant dense<0.000000e+00> : vector<1x10xf32>
    %153 = tpu.matmul %152, %151, %cst_142 {dimension_numbers = #tpu.dot_dimension_numbers<[1], [0], [0], [1], [0, 0, 1, 1], [], []>} : vector<1x84xbf16>, vector<84x10xbf16>, vector<1x10xf32> -> vector<1x10xf32>
    %c0_143 = arith.constant 0 : index
    %c0_144 = arith.constant 0 : index
    %154 = vector.load %arg15[%c0_143, %c0_144] : memref<1x10xf32, #tpu.memory_space<vmem>>, vector<1x10xf32>
    %155 = arith.addf %153, %154 : vector<1x10xf32>
    %c0_145 = arith.constant 0 : index
    %c0_146 = arith.constant 0 : index
    %c0_147 = arith.constant 0 : index
    %156 = vector.load %arg16[%c0_145, %c0_146, %c0_147] : memref<1x1x10xf32, #tpu.memory_space<vmem>>, vector<1x1x10xf32>
    %157 = vector.shape_cast %156 : vector<1x1x10xf32> to vector<1x10xf32>
    %158 = vector.shape_cast %155 : vector<1x10xf32> to vector<1x1x10xf32>
    tpu.vector_store %arg16[%c0_145, %c0_146, %c0_147], %158 {strides = array<i32>} : memref<1x1x10xf32, #tpu.memory_space<vmem>>, vector<1x1x10xf32>,
    return
  }
  func.func @transform_0(%arg0: i32) -> (i32, i32, i32) {
    %c0_i32 = arith.constant 0 : i32
    %c0_i32_0 = arith.constant 0 : i32
    %c0_i32_1 = arith.constant 0 : i32
    return %arg0, %c0_i32, %c0_i32_0 : i32, i32, i32
  }
  func.func @transform_1(%arg0: i32) -> (i32, i32, i32) {
    %c0_i32 = arith.constant 0 : i32
    %c0_i32_0 = arith.constant 0 : i32
    %c0_i32_1 = arith.constant 0 : i32
    %c0_i32_2 = arith.constant 0 : i32
    return %c0_i32, %c0_i32_0, %c0_i32_1 : i32, i32, i32
  }
  func.func @transform_2(%arg0: i32) -> (i32, i32) {
    %c0_i32 = arith.constant 0 : i32
    %c0_i32_0 = arith.constant 0 : i32
    %c0_i32_1 = arith.constant 0 : i32
    return %c0_i32, %c0_i32_0 : i32, i32
  }
  func.func @transform_3(%arg0: i32) -> (i32, i32, i32) {
    %c0_i32 = arith.constant 0 : i32
    %c0_i32_0 = arith.constant 0 : i32
    %c0_i32_1 = arith.constant 0 : i32
    %c0_i32_2 = arith.constant 0 : i32
    return %c0_i32, %c0_i32_0, %c0_i32_1 : i32, i32, i32
  }
  func.func @transform_4(%arg0: i32) -> (i32, i32, i32) {
    %c0_i32 = arith.constant 0 : i32
    %c0_i32_0 = arith.constant 0 : i32
    %c0_i32_1 = arith.constant 0 : i32
    %c0_i32_2 = arith.constant 0 : i32
    return %c0_i32, %c0_i32_0, %c0_i32_1 : i32, i32, i32
  }
  func.func @transform_5(%arg0: i32) -> (i32, i32, i32) {
    %c0_i32 = arith.constant 0 : i32
    %c0_i32_0 = arith.constant 0 : i32
    %c0_i32_1 = arith.constant 0 : i32
    %c0_i32_2 = arith.constant 0 : i32
    return %c0_i32, %c0_i32_0, %c0_i32_1 : i32, i32, i32
  }
  func.func @transform_6(%arg0: i32) -> (i32, i32) {
    %c0_i32 = arith.constant 0 : i32
    %c0_i32_0 = arith.constant 0 : i32
    %c0_i32_1 = arith.constant 0 : i32
    return %c0_i32, %c0_i32_0 : i32, i32
  }
  func.func @transform_7(%arg0: i32) -> (i32, i32, i32) {
    %c0_i32 = arith.constant 0 : i32
    %c0_i32_0 = arith.constant 0 : i32
    %c0_i32_1 = arith.constant 0 : i32
    %c0_i32_2 = arith.constant 0 : i32
    return %c0_i32, %c0_i32_0, %c0_i32_1 : i32, i32, i32
  }
  func.func @transform_8(%arg0: i32) -> (i32, i32, i32) {
    %c0_i32 = arith.constant 0 : i32
    %c0_i32_0 = arith.constant 0 : i32
    %c0_i32_1 = arith.constant 0 : i32
    %c0_i32_2 = arith.constant 0 : i32
    return %c0_i32, %c0_i32_0, %c0_i32_1 : i32, i32, i32
  }
  func.func @transform_9(%arg0: i32) -> (i32, i32, i32) {
    %c0_i32 = arith.constant 0 : i32
    %c0_i32_0 = arith.constant 0 : i32
    %c0_i32_1 = arith.constant 0 : i32
    %c0_i32_2 = arith.constant 0 : i32
    return %c0_i32, %c0_i32_0, %c0_i32_1 : i32, i32, i32
  }
  func.func @transform_10(%arg0: i32) -> (i32, i32) {
    %c0_i32 = arith.constant 0 : i32
    %c0_i32_0 = arith.constant 0 : i32
    %c0_i32_1 = arith.constant 0 : i32
    return %c0_i32, %c0_i32_0 : i32, i32
  }
  func.func @transform_11(%arg0: i32) -> (i32, i32) {
    %c0_i32 = arith.constant 0 : i32
    %c0_i32_0 = arith.constant 0 : i32
    %c0_i32_1 = arith.constant 0 : i32
    return %c0_i32, %c0_i32_0 : i32, i32
  }
  func.func @transform_12(%arg0: i32) -> (i32, i32) {
    %c0_i32 = arith.constant 0 : i32
    %c0_i32_0 = arith.constant 0 : i32
    %c0_i32_1 = arith.constant 0 : i32
    return %c0_i32, %c0_i32_0 : i32, i32
  }
  func.func @transform_13(%arg0: i32) -> (i32, i32) {
    %c0_i32 = arith.constant 0 : i32
    %c0_i32_0 = arith.constant 0 : i32
    %c0_i32_1 = arith.constant 0 : i32
    return %c0_i32, %c0_i32_0 : i32, i32
  }
  func.func @transform_14(%arg0: i32) -> (i32, i32) {
    %c0_i32 = arith.constant 0 : i32
    %c0_i32_0 = arith.constant 0 : i32
    %c0_i32_1 = arith.constant 0 : i32
    return %c0_i32, %c0_i32_0 : i32, i32
  }
  func.func @transform_15(%arg0: i32) -> (i32, i32, i32) {
    %c0_i32 = arith.constant 0 : i32
    %c0_i32_0 = arith.constant 0 : i32
    %c0_i32_1 = arith.constant 0 : i32
    return %arg0, %c0_i32, %c0_i32_0 : i32, i32, i32
  }
}

</mosaic_0001>

<llo_original>
// kernel: tile.13
$region0: #{tile.13}
  #allocation0 [shape = 's32[1]{0}', space=sflag, size = 0x4, scoped, tag = 'scoped memory for tile.13']
  %s0 = inlined_call_operand.vmem [shape: f32[6], index: 0, kind: input, shape index: {}]
  %s1 = inlined_call_operand.vmem [shape: f32[28,6], index: 1, kind: output, shape index: {}]
  // Predicated region
  $region2: #{tile.13} parent=0 // pred_check
    _
  $region3: #{tile.13} parent=0 // pred_check_branch
    %3 = sbr.rel (0) target = $region5
  $region4: #{tile.13} parent=0 // pred_region
    _
  $region5: #{tile.13} parent=0 // pred_fallthru
    _
  %v4 = vld [vmem:[%s0] ss:$0 sm:$0xff]
  %5 = vst [vmem:[%s1] sm:$0xff] %v4
  %s6 = scalar_lea.vmem %s1, 8
  %7 = vst [vmem:[%s6] sm:$0xff] %v4
  %s8 = scalar_lea.vmem %s1, 16
  %9 = vst [vmem:[%s8] sm:$0xff] %v4
  %s10 = scalar_lea.vmem %s1, 24
  %11 = vst [vmem:[%s10] sm:$0xff] %v4

// kernel: tile.14
$region0: #{tile.14}
  %s0 = inlined_call_operand.vmem [shape: f32[28,6], index: 0, kind: input, shape index: {}]
  %s1 = inlined_call_operand.vmem [shape: f32[1,168], index: 1, kind: output, shape index: {}]
  $region1: #{tile.14} parent=0
    #allocation0 [shape = 'u8[8192]{0}', space=vmem, size = 0x2000, scoped, tag = 'scoped mem for output reshape']
    %v2 = vld [vmem:[%s0] sm:$0x1]
    %vm3 = vcmask 48128
    %4 = vst.msk [vmem:[#allocation0] sm:$0x1] %vm3, %v2
    %s5 = scalar_lea.vmem %s0, 21
    %v6 = vld [vmem:[%s5] sm:$0x1]
    %s7 = scalar_lea.vmem %s0, 21
    %v8 = vld [vmem:[%s7] sm:$0x1]
    %vm9 = vcmask 15360
    %v10 = vsel %vm9, %v8, %v6
    %11 = vrot.lane.b32.xlu0 %v10, 126
    %v12 = vpop.permute.xlu0 %11
    %vm13 = vcmask 31744
    %s14 = scalar_lea.vmem [#allocation0], 8
    %15 = vst.msk [vmem:[%s14] sm:$0x1] %vm13, %v12
    %vm16 = vcmask 1048560
    %17 = vst.msk [vmem:[#allocation0] sm:$0x1] %vm16, %v12
    %s18 = scalar_lea.vmem %s0, 20
    %v19 = vld [vmem:[%s18] sm:$0x1]
    %20 = vrot.lane.b32.xlu0 %v19, 120
    %v21 = vpop.permute.xlu0 %20
    %vm22 = vcmask 1032128
    %23 = vst.msk [vmem:[#allocation0] sm:$0x1] %vm22, %v21
    %s24 = scalar_lea.vmem %s0, 19
    %v25 = vld [vmem:[%s24] sm:$0x1]
    %26 = vrot.lane.b32.xlu0 %v25, 114
    %v27 = vpop.permute.xlu0 %26
    %vm28 = vcmask 982928
    %29 = vst.msk [vmem:[#allocation0] sm:$0x1] %vm28, %v27
    %s30 = scalar_lea.vmem %s0, 18
    %v31 = vld [vmem:[%s30] sm:$0x1]
    %32 = vrot.lane.b32.xlu0 %v31, 108
    %v33 = vpop.permute.xlu0 %32
    %vm34 = vcmask 933728
    %35 = vst.msk [vmem:[#allocation0] sm:$0x1] %vm34, %v33
    %s36 = scalar_lea.vmem %s0, 17
    %v37 = vld [vmem:[%s36] sm:$0x1]
    %38 = vrot.lane.b32.xlu0 %v37, 102
    %v39 = vpop.permute.xlu0 %38
    %vm40 = vcmask 884528
    %41 = vst.msk [vmem:[#allocation0] sm:$0x1] %vm40, %v39
    %s42 = scalar_lea.vmem %s0, 16
    %v43 = vld [vmem:[%s42] sm:$0x1]
    %44 = vrot.lane.b32.xlu0 %v43, 96
    %v45 = vpop.permute.xlu0 %44
    %vm46 = vcmask 835328
    %47 = vst.msk [vmem:[#allocation0] sm:$0x1] %vm46, %v45
    %s48 = scalar_lea.vmem %s0, 15
    %v49 = vld [vmem:[%s48] sm:$0x1]
    %50 = vrot.lane.b32.xlu0 %v49, 90
    %v51 = vpop.permute.xlu0 %50
    %vm52 = vcmask 786128
    %53 = vst.msk [vmem:[#allocation0] sm:$0x1] %vm52, %v51
    %s54 = scalar_lea.vmem %s0, 14
    %v55 = vld [vmem:[%s54] sm:$0x1]
    %56 = vrot.lane.b32.xlu0 %v55, 84
    %v57 = vpop.permute.xlu0 %56
    %vm58 = vcmask 736928
    %59 = vst.msk [vmem:[#allocation0] sm:$0x1] %vm58, %v57
    %s60 = scalar_lea.vmem %s0, 13
    %v61 = vld [vmem:[%s60] sm:$0x1]
    %62 = vrot.lane.b32.xlu0 %v61, 78
    %v63 = vpop.permute.xlu0 %62
    %vm64 = vcmask 687728
    %65 = vst.msk [vmem:[#allocation0] sm:$0x1] %vm64, %v63
    %s66 = scalar_lea.vmem %s0, 12
    %v67 = vld [vmem:[%s66] sm:$0x1]
    %68 = vrot.lane.b32.xlu0 %v67, 72
    %v69 = vpop.permute.xlu0 %68
    %vm70 = vcmask 638528
    %71 = vst.msk [vmem:[#allocation0] sm:$0x1] %vm70, %v69
    %s72 = scalar_lea.vmem %s0, 11
    %v73 = vld [vmem:[%s72] sm:$0x1]
    %74 = vrot.lane.b32.xlu0 %v73, 66
    %v75 = vpop.permute.xlu0 %74
    %vm76 = vcmask 589328
    %77 = vst.msk [vmem:[#allocation0] sm:$0x1] %vm76, %v75
    %s78 = scalar_lea.vmem %s0, 10
    %v79 = vld [vmem:[%s78] sm:$0x1]
    %80 = vrot.lane.b32.xlu0 %v79, 60
    %v81 = vpop.permute.xlu0 %80
    %vm82 = vcmask 540128
    %83 = vst.msk [vmem:[#allocation0] sm:$0x1] %vm82, %v81
    %s84 = scalar_lea.vmem %s0, 9
    %v85 = vld [vmem:[%s84] sm:$0x1]
    %86 = vrot.lane.b32.xlu0 %v85, 54
    %v87 = vpop.permute.xlu0 %86
    %vm88 = vcmask 490928
    %89 = vst.msk [vmem:[#allocation0] sm:$0x1] %vm88, %v87
    %s90 = scalar_lea.vmem %s0, 8
    %v91 = vld [vmem:[%s90] sm:$0x1]
    %92 = vrot.lane.b32.xlu0 %v91, 48
    %v93 = vpop.permute.xlu0 %92
    %vm94 = vcmask 441728
    %95 = vst.msk [vmem:[#allocation0] sm:$0x1] %vm94, %v93
    %s96 = scalar_lea.vmem %s0, 7
    %v97 = vld [vmem:[%s96] sm:$0x1]
    %98 = vrot.lane.b32.xlu0 %v97, 42
    %v99 = vpop.permute.xlu0 %98
    %vm100 = vcmask 392528
    %101 = vst.msk [vmem:[#allocation0] sm:$0x1] %vm100, %v99
    %s102 = scalar_lea.vmem %s0, 6
    %v103 = vld [vmem:[%s102] sm:$0x1]
    %104 = vrot.lane.b32.xlu0 %v103, 36
    %v105 = vpop.permute.xlu0 %104
    %vm106 = vcmask 343328
    %107 = vst.msk [vmem:[#allocation0] sm:$0x1] %vm106, %v105
    %s108 = scalar_lea.vmem %s0, 27
    %v109 = vld [vmem:[%s108] sm:$0x1]
    %110 = vrot.lane.b32.xlu0 %v109, 34
    %v111 = vpop.permute.xlu0 %110
    %vm112 = vcmask 326928
    %s113 = scalar_lea.vmem [#allocation0], 8
    %114 = vst.msk [vmem:[%s113] sm:$0x1] %vm112, %v111
    %s115 = scalar_lea.vmem %s0, 5
    %v116 = vld [vmem:[%s115] sm:$0x1]
    %117 = vrot.lane.b32.xlu0 %v116, 30
    %v118 = vpop.permute.xlu0 %117
    %vm119 = vcmask 294128
    %120 = vst.msk [vmem:[#allocation0] sm:$0x1] %vm119, %v118
    %s121 = scalar_lea.vmem %s0, 26
    %v122 = vld [vmem:[%s121] sm:$0x1]
    %123 = vrot.lane.b32.xlu0 %v122, 28
    %v124 = vpop.permute.xlu0 %123
    %vm125 = vcmask 277728
    %s126 = scalar_lea.vmem [#allocation0], 8
    %127 = vst.msk [vmem:[%s126] sm:$0x1] %vm125, %v124
    %s128 = scalar_lea.vmem %s0, 4
    %v129 = vld [vmem:[%s128] sm:$0x1]
    %130 = vrot.lane.b32.xlu0 %v129, 24
    %v131 = vpop.permute.xlu0 %130
    %vm132 = vcmask 244928
    %133 = vst.msk [vmem:[#allocation0] sm:$0x1] %vm132, %v131
    %s134 = scalar_lea.vmem %s0, 25
    %v135 = vld [vmem:[%s134] sm:$0x1]
    %136 = vrot.lane.b32.xlu0 %v135, 22
    %v137 = vpop.permute.xlu0 %136
    %vm138 = vcmask 228528
    %s139 = scalar_lea.vmem [#allocation0], 8
    %140 = vst.msk [vmem:[%s139] sm:$0x1] %vm138, %v137
    %s141 = scalar_lea.vmem %s0, 3
    %v142 = vld [vmem:[%s141] sm:$0x1]
    %143 = vrot.lane.b32.xlu0 %v142, 18
    %v144 = vpop.permute.xlu0 %143
    %vm145 = vcmask 195728
    %146 = vst.msk [vmem:[#allocation0] sm:$0x1] %vm145, %v144
    %s147 = scalar_lea.vmem %s0, 24
    %v148 = vld [vmem:[%s147] sm:$0x1]
    %149 = vrot.lane.b32.xlu0 %v148, 16
    %v150 = vpop.permute.xlu0 %149
    %vm151 = vcmask 179328
    %s152 = scalar_lea.vmem [#allocation0], 8
    %153 = vst.msk [vmem:[%s152] sm:$0x1] %vm151, %v150
    %s154 = scalar_lea.vmem %s0, 2
    %v155 = vld [vmem:[%s154] sm:$0x1]
    %156 = vrot.lane.b32.xlu0 %v155, 12
    %v157 = vpop.permute.xlu0 %156
    %vm158 = vcmask 146528
    %159 = vst.msk [vmem:[#allocation0] sm:$0x1] %vm158, %v157
    %s160 = scalar_lea.vmem %s0, 23
    %v161 = vld [vmem:[%s160] sm:$0x1]
    %162 = vrot.lane.b32.xlu0 %v161, 10
    %v163 = vpop.permute.xlu0 %162
    %vm164 = vcmask 130128
    %s165 = scalar_lea.vmem [#allocation0], 8
    %166 = vst.msk [vmem:[%s165] sm:$0x1] %vm164, %v163
    %s167 = scalar_lea.vmem %s0, 1
    %v168 = vld [vmem:[%s167] sm:$0x1]
    %169 = vrot.lane.b32.xlu0 %v168, 6
    %v170 = vpop.permute.xlu0 %169
    %vm171 = vcmask 97328
    %172 = vst.msk [vmem:[#allocation0] sm:$0x1] %vm171, %v170
    %s173 = scalar_lea.vmem %s0, 22
    %v174 = vld [vmem:[%s173] sm:$0x1]
    %175 = vrot.lane.b32.xlu0 %v174, 4
    %v176 = vpop.permute.xlu0 %175
    %vm177 = vcmask 80928
    %s178 = scalar_lea.vmem [#allocation0], 8
    %179 = vst.msk [vmem:[%s178] sm:$0x1] %vm177, %v176
    %s181 = sshllo.u32 0, 1
    %v183 = vld [vmem:[#allocation0] sm:%s181]
    %s184 = sshllo.u32 0, 1
    %185 = vst [vmem:[%s1] sm:%s184] %v183
    %s186 = scalar_lea.vmem [#allocation0], 8
    %v187 = vld [vmem:[%s186] sm:%s181]
    %s188 = sshllo.u32 0, 1
    %s189 = scalar_lea.vmem %s1, 1
    %190 = vst [vmem:[%s189] sm:%s188] %v187

// kernel: tile.18
$region0: #{tile.18}
  #allocation0 [shape = 's32[1]{0}', space=sflag, size = 0x4, scoped, tag = 'scoped memory for tile.18']
  %s0 = inlined_call_operand.vmem [shape: f32[16], index: 0, kind: input, shape index: {}]
  %s1 = inlined_call_operand.vmem [shape: f32[10,16], index: 1, kind: output, shape index: {}]
  // Predicated region
  $region2: #{tile.18} parent=0 // pred_check
    _
  $region3: #{tile.18} parent=0 // pred_check_branch
    %3 = sbr.rel (0) target = $region5
  $region4: #{tile.18} parent=0 // pred_region
    _
  $region5: #{tile.18} parent=0 // pred_fallthru
    _
  %v4 = vld [vmem:[%s0] ss:$0 sm:$0xff]
  %5 = vst [vmem:[%s1] sm:$0xff] %v4
  %s6 = scalar_lea.vmem %s1, 8
  %7 = vst [vmem:[%s6] sm:$0xff] %v4

// kernel: tile.19
$region0: #{tile.19}
  %s0 = inlined_call_operand.vmem [shape: f32[10,16], index: 0, kind: input, shape index: {}]
  %s1 = inlined_call_operand.vmem [shape: f32[1,160], index: 1, kind: output, shape index: {}]
  $region1: #{tile.19} parent=0
    #allocation0 [shape = 'u8[8192]{0}', space=vmem, size = 0x2000, scoped, tag = 'scoped mem for output reshape']
    %s2 = smov 3
    %v3 = vld [vmem:[%s0] ss:$8 sm:%s2]
    %vm4 = vcmask 130048
    %5 = vst.msk [vmem:[#allocation0] ss:$8 sm:$0x3] %vm4, %v3
    %s6 = scalar_lea.vmem %s0, 7
    %v7 = vld [vmem:[%s6] sm:$0x1]
    %8 = vrot.lane.b32.xlu0 %v7, 112
    %v9 = vpop.permute.xlu0 %8
    %vm10 = vcmask 1048448
    %11 = vst.msk [vmem:[#allocation0] sm:$0x1] %vm10, %v9
    %s12 = scalar_lea.vmem %s0, 6
    %v13 = vld [vmem:[%s12] sm:$0x1]
    %14 = vrot.lane.b32.xlu0 %v13, 96
    %v15 = vpop.permute.xlu0 %14
    %vm16 = vcmask 917248
    %17 = vst.msk [vmem:[#allocation0] sm:$0x1] %vm16, %v15
    %s18 = scalar_lea.vmem %s0, 5
    %v19 = vld [vmem:[%s18] sm:$0x1]
    %20 = vrot.lane.b32.xlu0 %v19, 80
    %v21 = vpop.permute.xlu0 %20
    %vm22 = vcmask 786048
    %23 = vst.msk [vmem:[#allocation0] sm:$0x1] %vm22, %v21
    %s24 = scalar_lea.vmem %s0, 4
    %v25 = vld [vmem:[%s24] sm:$0x1]
    %26 = vrot.lane.b32.xlu0 %v25, 64
    %v27 = vpop.permute.xlu0 %26
    %vm28 = vcmask 654848
    %29 = vst.msk [vmem:[#allocation0] sm:$0x1] %vm28, %v27
    %s30 = scalar_lea.vmem %s0, 3
    %v31 = vld [vmem:[%s30] sm:$0x1]
    %32 = vrot.lane.b32.xlu0 %v31, 48
    %v33 = vpop.permute.xlu0 %32
    %vm34 = vcmask 523648
    %35 = vst.msk [vmem:[#allocation0] sm:$0x1] %vm34, %v33
    %s36 = scalar_lea.vmem %s0, 2
    %v37 = vld [vmem:[%s36] sm:$0x1]
    %38 = vrot.lane.b32.xlu0 %v37, 32
    %v39 = vpop.permute.xlu0 %38
    %vm40 = vcmask 392448
    %41 = vst.msk [vmem:[#allocation0] sm:$0x1] %vm40, %v39
    %s42 = scalar_lea.vmem %s0, 1
    %s43 = smov 3
    %v44 = vld [vmem:[%s42] ss:$8 sm:%s43]
    %45 = vrot.lane.b32.xlu0 %v44, 16
    %v46 = vpop.permute.xlu0 %45
    %vm47 = vcmask 261248
    %48 = vst.msk [vmem:[#allocation0] ss:$8 sm:$0x3] %vm47, %v46
    %s50 = sshllo.u32 0, 1
    %v52 = vld [vmem:[#allocation0] sm:%s50]
    %s53 = sshllo.u32 0, 1
    %54 = vst [vmem:[%s1] sm:%s53] %v52
    %s55 = scalar_lea.vmem [#allocation0], 8
    %v56 = vld [vmem:[%s55] sm:%s50]
    %s57 = sshllo.u32 0, 1
    %s58 = scalar_lea.vmem %s1, 1
    %59 = vst [vmem:[%s58] sm:%s57] %v56

// kernel: cifar10net_forward.1
$region0: #{cifar10net_forward.1}
  #allocation0 [shape = 'u32[]', space=smem, size = 0x4, offset = 0x4, fixed_abs, tag = 'smem constant byte address 0x4 - core index']
  #allocation1 [shape = 'u32[144,128]{1,0:T(1,128)}', space=vmem, size = 0x12000, scoped, tag = 'internal scratch']
  #allocation2 [shape = 'f32[14,84]{1,0:T(8,128)}', space=vmem, size = 0x2000, scoped, tag = 'scratch operand']
  #allocation3 [shape = 'f32[5,80]{1,0:T(8,128)}', space=vmem, size = 0x1000, scoped, tag = 'scratch operand']
  %s0 = inlined_call_operand.vmem [shape: f32[2,32,96], index: 0, kind: input, shape index: {}]
  %s1 = inlined_call_operand.vmem [shape: bf16[5,96,168], index: 1, kind: input, shape index: {}]
  %s2 = inlined_call_operand.vmem [shape: f32[1,168], index: 2, kind: input, shape index: {}]
  %s3 = inlined_call_operand.vmem [shape: bf16[2,14,28], index: 3, kind: input, shape index: {}]
  %s4 = inlined_call_operand.vmem [shape: bf16[2,168,84], index: 4, kind: input, shape index: {}]
  %s5 = inlined_call_operand.vmem [shape: bf16[5,84,160], index: 5, kind: input, shape index: {}]
  %s6 = inlined_call_operand.vmem [shape: f32[1,160], index: 6, kind: input, shape index: {}]
  %s7 = inlined_call_operand.vmem [shape: bf16[2,5,10], index: 7, kind: input, shape index: {}]
  %s8 = inlined_call_operand.vmem [shape: bf16[2,160,80], index: 8, kind: input, shape index: {}]
  %s9 = inlined_call_operand.vmem [shape: bf16[5,80,120], index: 9, kind: input, shape index: {}]
  %s10 = inlined_call_operand.vmem [shape: f32[1,120], index: 10, kind: input, shape index: {}]
  %s11 = inlined_call_operand.vmem [shape: bf16[120,84], index: 11, kind: input, shape index: {}]
  %s12 = inlined_call_operand.vmem [shape: f32[1,84], index: 12, kind: input, shape index: {}]
  %s13 = inlined_call_operand.vmem [shape: bf16[84,10], index: 13, kind: input, shape index: {}]
  %s14 = inlined_call_operand.vmem [shape: f32[1,10], index: 14, kind: input, shape index: {}]
  %s15 = inlined_call_operand.hbm [shape: f32[2,1,10], index: 15, kind: output, shape index: {}]
  %s16 = sld [smem:[#allocation0]]
  $region93: #{cifar10net_forward.1} parent=0
    _
  %s18 = ssub.s32 1, %s16
  %s19 = scalar_select 0, %s18, %s16
  $region1: #{cifar10net_forward.1} parent=0
    #allocation4 [shape = 'u8[1024]{0}', space=vmem, size = 0x400, scoped, tag = 'output window, operand 0']
    #allocation5 [shape = 's32[2]{0}', space=sflag, size = 0x8, scoped, tag = 'scoped memory for cifar10net_forward.1']
    %20 = vsyncpa [#allocation5], 0
    %s21 = scalar_lea.sflag [#allocation5], 1
    %22 = vsyncpa %s21, 0
    loop: start=0, step=1, limit=4
    $region2: #{cifar10net_forward.1} parent=1 // loop_pre_header
      _
    $region3: #{cifar10net_forward.1} parent=1 // loop_header
      %s24 = sphi 0, %s28
      %p25 = scmp.ge.s32.totalorder %s24, 4
      %s34 = sphi 0, %s36
      %s37 = sphi 0, %s34
      %s38 = sphi 0, %s37
      %s54 = sphi 0, %s38
      %s58 = sphi 0, %s58
      %s60 = sphi 0, %s58
      %s61 = sphi 0, %s60
      %s75 = sphi 0, %s61
      %s79 = sphi 0, %s79
      %s81 = sphi 0, %s79
      %s82 = sphi 0, %s81
      %s96 = sphi 0, %s82
      %s100 = sphi 0, %s100
      %s102 = sphi 0, %s100
      %s103 = sphi 0, %s102
      %s117 = sphi 0, %s103
      %s121 = sphi 0, %s121
      %s123 = sphi 0, %s121
      %s124 = sphi 0, %s123
      %s138 = sphi 0, %s124
      %s142 = sphi 0, %s142
      %s144 = sphi 0, %s142
      %s145 = sphi 0, %s144
      %s159 = sphi 0, %s145
      %s163 = sphi 0, %s163
      %s165 = sphi 0, %s163
      %s166 = sphi 0, %s165
      %s180 = sphi 0, %s166
      %s184 = sphi 0, %s184
      %s186 = sphi 0, %s184
      %s187 = sphi 0, %s186
      %s201 = sphi 0, %s187
      %s205 = sphi 0, %s205
      %s207 = sphi 0, %s205
      %s208 = sphi 0, %s207
      %s222 = sphi 0, %s208
      %s226 = sphi 0, %s226
      %s228 = sphi 0, %s226
      %s229 = sphi 0, %s228
      %s243 = sphi 0, %s229
      %s247 = sphi 0, %s247
      %s249 = sphi 0, %s247
      %s250 = sphi 0, %s249
      %s264 = sphi 0, %s250
      %s268 = sphi 0, %s268
      %s270 = sphi 0, %s268
      %s271 = sphi 0, %s270
      %s285 = sphi 0, %s271
      %s289 = sphi 0, %s289
      %s291 = sphi 0, %s289
      %s292 = sphi 0, %s291
      %s306 = sphi 0, %s292
      %s310 = sphi 0, %s310
      %s312 = sphi 0, %s310
      %s313 = sphi 0, %s312
      %s327 = sphi 0, %s313
      %s331 = sphi 0, %s331
      %s333 = sphi 0, %s331
      %s334 = sphi 0, %s333
      %s348 = sphi 0, %s334
      %s354 = sphi 0, %s356
      %s357 = sphi 0, %s354
      %s358 = sphi 0, %s357
      %s374 = sphi 0, %s358
    $region4: #{cifar10net_forward.1} parent=1 // loop_header_branch
      %27 = sbr.rel (%p25) target = $region8
    $region5: #{cifar10net_forward.1} parent=1 // loop_body
      %s29 = ssub.s32 %s24, 1
      %s30 = ssub.s32 %s24, 2
      %s31 = sadd.s32 %s24, 1
      %s32 = ssub.s32 %s24, %s31
      %p33 = scmp.eq.s32.totalorder %s32, 0
      %s35 = sadd.s32 %s34, 1
      %s36 = scalar_select %p33, %s34, %s35
      %p39 = pneg %p33
      %p40 = scmp.eq.s32.totalorder %s24, 1
      %p41 = por %p39, %p40
      %p42 = scmp.ne.s32.totalorder %s34, %s37
      %p43 = scmp.eq.s32.totalorder %s24, 0
      %p44 = por %p42, %p43
      %p45 = scmp.ne.s32.totalorder %s34, %s37
      %p46 = scmp.eq.s32.totalorder %s29, 1
      %p47 = por %p45, %p46
      %p48 = scmp.ne.s32.totalorder %s37, %s38
      %p49 = scmp.eq.s32.totalorder %s29, 0
      %p50 = por %p48, %p49
      %p51 = scmp.ne.s32.totalorder %s37, %s38
      %p52 = scmp.eq.s32.totalorder %s30, 1
      %p53 = por %p51, %p52
      %p55 = scmp.ne.s32.totalorder %s38, %s54
      %p56 = scmp.eq.s32.totalorder %s30, 0
      %p57 = por %p55, %p56
      %s59 = sadd.s32 %s58, 1
      %p62 = scmp.eq.s32.totalorder %s24, 1
      %p63 = scmp.ne.s32.totalorder %s58, %s60
      %p64 = scmp.eq.s32.totalorder %s24, 0
      %p65 = por %p63, %p64
      %p66 = scmp.ne.s32.totalorder %s58, %s60
      %p67 = scmp.eq.s32.totalorder %s29, 1
      %p68 = por %p66, %p67
      %p69 = scmp.ne.s32.totalorder %s60, %s61
      %p70 = scmp.eq.s32.totalorder %s29, 0
      %p71 = por %p69, %p70
      %p72 = scmp.ne.s32.totalorder %s60, %s61
      %p73 = scmp.eq.s32.totalorder %s30, 1
      %p74 = por %p72, %p73
      %p76 = scmp.ne.s32.totalorder %s61, %s75
      %p77 = scmp.eq.s32.totalorder %s30, 0
      %p78 = por %p76, %p77
      %s80 = sadd.s32 %s79, 1
      %p83 = scmp.eq.s32.totalorder %s24, 1
      %p84 = scmp.ne.s32.totalorder %s79, %s81
      %p85 = scmp.eq.s32.totalorder %s24, 0
      %p86 = por %p84, %p85
      %p87 = scmp.ne.s32.totalorder %s79, %s81
      %p88 = scmp.eq.s32.totalorder %s29, 1
      %p89 = por %p87, %p88
      %p90 = scmp.ne.s32.totalorder %s81, %s82
      %p91 = scmp.eq.s32.totalorder %s29, 0
      %p92 = por %p90, %p91
      %p93 = scmp.ne.s32.totalorder %s81, %s82
      %p94 = scmp.eq.s32.totalorder %s30, 1
      %p95 = por %p93, %p94
      %p97 = scmp.ne.s32.totalorder %s82, %s96
      %p98 = scmp.eq.s32.totalorder %s30, 0
      %p99 = por %p97, %p98
      %s101 = sadd.s32 %s100, 1
      %p104 = scmp.eq.s32.totalorder %s24, 1
      %p105 = scmp.ne.s32.totalorder %s100, %s102
      %p106 = scmp.eq.s32.totalorder %s24, 0
      %p107 = por %p105, %p106
      %p108 = scmp.ne.s32.totalorder %s100, %s102
      %p109 = scmp.eq.s32.totalorder %s29, 1
      %p110 = por %p108, %p109
      %p111 = scmp.ne.s32.totalorder %s102, %s103
      %p112 = scmp.eq.s32.totalorder %s29, 0
      %p113 = por %p111, %p112
      %p114 = scmp.ne.s32.totalorder %s102, %s103
      %p115 = scmp.eq.s32.totalorder %s30, 1
      %p116 = por %p114, %p115
      %p118 = scmp.ne.s32.totalorder %s103, %s117
      %p119 = scmp.eq.s32.totalorder %s30, 0
      %p120 = por %p118, %p119
      %s122 = sadd.s32 %s121, 1
      %p125 = scmp.eq.s32.totalorder %s24, 1
      %p126 = scmp.ne.s32.totalorder %s121, %s123
      %p127 = scmp.eq.s32.totalorder %s24, 0
      %p128 = por %p126, %p127
      %p129 = scmp.ne.s32.totalorder %s121, %s123
      %p130 = scmp.eq.s32.totalorder %s29, 1
      %p131 = por %p129, %p130
      %p132 = scmp.ne.s32.totalorder %s123, %s124
      %p133 = scmp.eq.s32.totalorder %s29, 0
      %p134 = por %p132, %p133
      %p135 = scmp.ne.s32.totalorder %s123, %s124
      %p136 = scmp.eq.s32.totalorder %s30, 1
      %p137 = por %p135, %p136
      %p139 = scmp.ne.s32.totalorder %s124, %s138
      %p140 = scmp.eq.s32.totalorder %s30, 0
      %p141 = por %p139, %p140
      %s143 = sadd.s32 %s142, 1
      %p146 = scmp.eq.s32.totalorder %s24, 1
      %p147 = scmp.ne.s32.totalorder %s142, %s144
      %p148 = scmp.eq.s32.totalorder %s24, 0
      %p149 = por %p147, %p148
      %p150 = scmp.ne.s32.totalorder %s142, %s144
      %p151 = scmp.eq.s32.totalorder %s29, 1
      %p152 = por %p150, %p151
      %p153 = scmp.ne.s32.totalorder %s144, %s145
      %p154 = scmp.eq.s32.totalorder %s29, 0
      %p155 = por %p153, %p154
      %p156 = scmp.ne.s32.totalorder %s144, %s145
      %p157 = scmp.eq.s32.totalorder %s30, 1
      %p158 = por %p156, %p157
      %p160 = scmp.ne.s32.totalorder %s145, %s159
      %p161 = scmp.eq.s32.totalorder %s30, 0
      %p162 = por %p160, %p161
      %s164 = sadd.s32 %s163, 1
      %p167 = scmp.eq.s32.totalorder %s24, 1
      %p168 = scmp.ne.s32.totalorder %s163, %s165
      %p169 = scmp.eq.s32.totalorder %s24, 0
      %p170 = por %p168, %p169
      %p171 = scmp.ne.s32.totalorder %s163, %s165
      %p172 = scmp.eq.s32.totalorder %s29, 1
      %p173 = por %p171, %p172
      %p174 = scmp.ne.s32.totalorder %s165, %s166
      %p175 = scmp.eq.s32.totalorder %s29, 0
      %p176 = por %p174, %p175
      %p177 = scmp.ne.s32.totalorder %s165, %s166
      %p178 = scmp.eq.s32.totalorder %s30, 1
      %p179 = por %p177, %p178
      %p181 = scmp.ne.s32.totalorder %s166, %s180
      %p182 = scmp.eq.s32.totalorder %s30, 0
      %p183 = por %p181, %p182
      %s185 = sadd.s32 %s184, 1
      %p188 = scmp.eq.s32.totalorder %s24, 1
      %p189 = scmp.ne.s32.totalorder %s184, %s186
      %p190 = scmp.eq.s32.totalorder %s24, 0
      %p191 = por %p189, %p190
      %p192 = scmp.ne.s32.totalorder %s184, %s186
      %p193 = scmp.eq.s32.totalorder %s29, 1
      %p194 = por %p192, %p193
      %p195 = scmp.ne.s32.totalorder %s186, %s187
      %p196 = scmp.eq.s32.totalorder %s29, 0
      %p197 = por %p195, %p196
      %p198 = scmp.ne.s32.totalorder %s186, %s187
      %p199 = scmp.eq.s32.totalorder %s30, 1
      %p200 = por %p198, %p199
      %p202 = scmp.ne.s32.totalorder %s187, %s201
      %p203 = scmp.eq.s32.totalorder %s30, 0
      %p204 = por %p202, %p203
      %s206 = sadd.s32 %s205, 1
      %p209 = scmp.eq.s32.totalorder %s24, 1
      %p210 = scmp.ne.s32.totalorder %s205, %s207
      %p211 = scmp.eq.s32.totalorder %s24, 0
      %p212 = por %p210, %p211
      %p213 = scmp.ne.s32.totalorder %s205, %s207
      %p214 = scmp.eq.s32.totalorder %s29, 1
      %p215 = por %p213, %p214
      %p216 = scmp.ne.s32.totalorder %s207, %s208
      %p217 = scmp.eq.s32.totalorder %s29, 0
      %p218 = por %p216, %p217
      %p219 = scmp.ne.s32.totalorder %s207, %s208
      %p220 = scmp.eq.s32.totalorder %s30, 1
      %p221 = por %p219, %p220
      %p223 = scmp.ne.s32.totalorder %s208, %s222
      %p224 = scmp.eq.s32.totalorder %s30, 0
      %p225 = por %p223, %p224
      %s227 = sadd.s32 %s226, 1
      %p230 = scmp.eq.s32.totalorder %s24, 1
      %p231 = scmp.ne.s32.totalorder %s226, %s228
      %p232 = scmp.eq.s32.totalorder %s24, 0
      %p233 = por %p231, %p232
      %p234 = scmp.ne.s32.totalorder %s226, %s228
      %p235 = scmp.eq.s32.totalorder %s29, 1
      %p236 = por %p234, %p235
      %p237 = scmp.ne.s32.totalorder %s228, %s229
      %p238 = scmp.eq.s32.totalorder %s29, 0
      %p239 = por %p237, %p238
      %p240 = scmp.ne.s32.totalorder %s228, %s229
      %p241 = scmp.eq.s32.totalorder %s30, 1
      %p242 = por %p240, %p241
      %p244 = scmp.ne.s32.totalorder %s229, %s243
      %p245 = scmp.eq.s32.totalorder %s30, 0
      %p246 = por %p244, %p245
      %s248 = sadd.s32 %s247, 1
      %p251 = scmp.eq.s32.totalorder %s24, 1
      %p252 = scmp.ne.s32.totalorder %s247, %s249
      %p253 = scmp.eq.s32.totalorder %s24, 0
      %p254 = por %p252, %p253
      %p255 = scmp.ne.s32.totalorder %s247, %s249
      %p256 = scmp.eq.s32.totalorder %s29, 1
      %p257 = por %p255, %p256
      %p258 = scmp.ne.s32.totalorder %s249, %s250
      %p259 = scmp.eq.s32.totalorder %s29, 0
      %p260 = por %p258, %p259
      %p261 = scmp.ne.s32.totalorder %s249, %s250
      %p262 = scmp.eq.s32.totalorder %s30, 1
      %p263 = por %p261, %p262
      %p265 = scmp.ne.s32.totalorder %s250, %s264
      %p266 = scmp.eq.s32.totalorder %s30, 0
      %p267 = por %p265, %p266
      %s269 = sadd.s32 %s268, 1
      %p272 = scmp.eq.s32.totalorder %s24, 1
      %p273 = scmp.ne.s32.totalorder %s268, %s270
      %p274 = scmp.eq.s32.totalorder %s24, 0
      %p275 = por %p273, %p274
      %p276 = scmp.ne.s32.totalorder %s268, %s270
      %p277 = scmp.eq.s32.totalorder %s29, 1
      %p278 = por %p276, %p277
      %p279 = scmp.ne.s32.totalorder %s270, %s271
      %p280 = scmp.eq.s32.totalorder %s29, 0
      %p281 = por %p279, %p280
      %p282 = scmp.ne.s32.totalorder %s270, %s271
      %p283 = scmp.eq.s32.totalorder %s30, 1
      %p284 = por %p282, %p283
      %p286 = scmp.ne.s32.totalorder %s271, %s285
      %p287 = scmp.eq.s32.totalorder %s30, 0
      %p288 = por %p286, %p287
      %s290 = sadd.s32 %s289, 1
      %p293 = scmp.eq.s32.totalorder %s24, 1
      %p294 = scmp.ne.s32.totalorder %s289, %s291
      %p295 = scmp.eq.s32.totalorder %s24, 0
      %p296 = por %p294, %p295
      %p297 = scmp.ne.s32.totalorder %s289, %s291
      %p298 = scmp.eq.s32.totalorder %s29, 1
      %p299 = por %p297, %p298
      %p300 = scmp.ne.s32.totalorder %s291, %s292
      %p301 = scmp.eq.s32.totalorder %s29, 0
      %p302 = por %p300, %p301
      %p303 = scmp.ne.s32.totalorder %s291, %s292
      %p304 = scmp.eq.s32.totalorder %s30, 1
      %p305 = por %p303, %p304
      %p307 = scmp.ne.s32.totalorder %s292, %s306
      %p308 = scmp.eq.s32.totalorder %s30, 0
      %p309 = por %p307, %p308
      %s311 = sadd.s32 %s310, 1
      %p314 = scmp.eq.s32.totalorder %s24, 1
      %p315 = scmp.ne.s32.totalorder %s310, %s312
      %p316 = scmp.eq.s32.totalorder %s24, 0
      %p317 = por %p315, %p316
      %p318 = scmp.ne.s32.totalorder %s310, %s312
      %p319 = scmp.eq.s32.totalorder %s29, 1
      %p320 = por %p318, %p319
      %p321 = scmp.ne.s32.totalorder %s312, %s313
      %p322 = scmp.eq.s32.totalorder %s29, 0
      %p323 = por %p321, %p322
      %p324 = scmp.ne.s32.totalorder %s312, %s313
      %p325 = scmp.eq.s32.totalorder %s30, 1
      %p326 = por %p324, %p325
      %p328 = scmp.ne.s32.totalorder %s313, %s327
      %p329 = scmp.eq.s32.totalorder %s30, 0
      %p330 = por %p328, %p329
      %s332 = sadd.s32 %s331, 1
      %p335 = scmp.eq.s32.totalorder %s24, 1
      %p336 = scmp.ne.s32.totalorder %s331, %s333
      %p337 = scmp.eq.s32.totalorder %s24, 0
      %p338 = por %p336, %p337
      %p339 = scmp.ne.s32.totalorder %s331, %s333
      %p340 = scmp.eq.s32.totalorder %s29, 1
      %p341 = por %p339, %p340
      %p342 = scmp.ne.s32.totalorder %s333, %s334
      %p343 = scmp.eq.s32.totalorder %s29, 0
      %p344 = por %p342, %p343
      %p345 = scmp.ne.s32.totalorder %s333, %s334
      %p346 = scmp.eq.s32.totalorder %s30, 1
      %p347 = por %p345, %p346
      %p349 = scmp.ne.s32.totalorder %s334, %s348
      %p350 = scmp.eq.s32.totalorder %s30, 0
      %p351 = por %p349, %p350
      %s352 = ssub.s32 %s24, %s31
      %p353 = scmp.eq.s32.totalorder %s352, 0
      %s355 = sadd.s32 %s354, 1
      %s356 = scalar_select %p353, %s354, %s355
      %p359 = pneg %p353
      %p360 = scmp.eq.s32.totalorder %s24, 1
      %p361 = por %p359, %p360
      %p362 = scmp.ne.s32.totalorder %s354, %s357
      %p363 = scmp.eq.s32.totalorder %s24, 0
      %p364 = por %p362, %p363
      %p365 = scmp.ne.s32.totalorder %s354, %s357
      %p366 = scmp.eq.s32.totalorder %s29, 1
      %p367 = por %p365, %p366
      %p368 = scmp.ne.s32.totalorder %s357, %s358
      %p369 = scmp.eq.s32.totalorder %s29, 0
      %p370 = por %p368, %p369
      %p371 = scmp.ne.s32.totalorder %s357, %s358
      %p372 = scmp.eq.s32.totalorder %s30, 1
      %p373 = por %p371, %p372
      %p375 = scmp.ne.s32.totalorder %s358, %s374
      %p376 = scmp.eq.s32.totalorder %s30, 0
      %p377 = por %p375, %p376
      %p378 = scmp.le.s32.totalorder 1, %s24
      %p379 = scmp.lt.s32.totalorder %s24, 3
      %p380 = pnand %p378, %p379
      %p381 = pneg %p380
      // Predicated region
      $region9: #{cifar10net_forward.1} parent=5 // pred_check
        _
      $region10: #{cifar10net_forward.1} parent=5 // pred_check_branch
        %383 = sbr.rel (%p380) target = $region12
      $region11: #{cifar10net_forward.1} parent=5 // pred_region
        %s384 = ssub.s32 %s24, 1
        // Predicated region
        $region13: #{cifar10net_forward.1} parent=11 // pred_check
          %p385 = pneg %p71
        $region14: #{cifar10net_forward.1} parent=11 // pred_check_branch
          %387 = sbr.rel (%p385) target = $region16
        $region15: #{cifar10net_forward.1} parent=11 // pred_region
          _
        $region16: #{cifar10net_forward.1} parent=11 // pred_fallthru
          _
        // Predicated region
        $region17: #{cifar10net_forward.1} parent=11 // pred_check
          %p388 = pneg %p92
        $region18: #{cifar10net_forward.1} parent=11 // pred_check_branch
          %390 = sbr.rel (%p388) target = $region20
        $region19: #{cifar10net_forward.1} parent=11 // pred_region
          _
        $region20: #{cifar10net_forward.1} parent=11 // pred_fallthru
          _
        // Predicated region
        $region21: #{cifar10net_forward.1} parent=11 // pred_check
          %p391 = pneg %p113
        $region22: #{cifar10net_forward.1} parent=11 // pred_check_branch
          %393 = sbr.rel (%p391) target = $region24
        $region23: #{cifar10net_forward.1} parent=11 // pred_region
          _
        $region24: #{cifar10net_forward.1} parent=11 // pred_fallthru
          _
        // Predicated region
        $region25: #{cifar10net_forward.1} parent=11 // pred_check
          %p394 = pneg %p134
        $region26: #{cifar10net_forward.1} parent=11 // pred_check_branch
          %396 = sbr.rel (%p394) target = $region28
        $region27: #{cifar10net_forward.1} parent=11 // pred_region
          _
        $region28: #{cifar10net_forward.1} parent=11 // pred_fallthru
          _
        // Predicated region
        $region29: #{cifar10net_forward.1} parent=11 // pred_check
          %p397 = pneg %p155
        $region30: #{cifar10net_forward.1} parent=11 // pred_check_branch
          %399 = sbr.rel (%p397) target = $region32
        $region31: #{cifar10net_forward.1} parent=11 // pred_region
          _
        $region32: #{cifar10net_forward.1} parent=11 // pred_fallthru
          _
        // Predicated region
        $region33: #{cifar10net_forward.1} parent=11 // pred_check
          %p400 = pneg %p176
        $region34: #{cifar10net_forward.1} parent=11 // pred_check_branch
          %402 = sbr.rel (%p400) target = $region36
        $region35: #{cifar10net_forward.1} parent=11 // pred_region
          _
        $region36: #{cifar10net_forward.1} parent=11 // pred_fallthru
          _
        // Predicated region
        $region37: #{cifar10net_forward.1} parent=11 // pred_check
          %p403 = pneg %p197
        $region38: #{cifar10net_forward.1} parent=11 // pred_check_branch
          %405 = sbr.rel (%p403) target = $region40
        $region39: #{cifar10net_forward.1} parent=11 // pred_region
          _
        $region40: #{cifar10net_forward.1} parent=11 // pred_fallthru
          _
        // Predicated region
        $region41: #{cifar10net_forward.1} parent=11 // pred_check
          %p406 = pneg %p218
        $region42: #{cifar10net_forward.1} parent=11 // pred_check_branch
          %408 = sbr.rel (%p406) target = $region44
        $region43: #{cifar10net_forward.1} parent=11 // pred_region
          _
        $region44: #{cifar10net_forward.1} parent=11 // pred_fallthru
          _
        // Predicated region
        $region45: #{cifar10net_forward.1} parent=11 // pred_check
          %p409 = pneg %p239
        $region46: #{cifar10net_forward.1} parent=11 // pred_check_branch
          %411 = sbr.rel (%p409) target = $region48
        $region47: #{cifar10net_forward.1} parent=11 // pred_region
          _
        $region48: #{cifar10net_forward.1} parent=11 // pred_fallthru
          _
        // Predicated region
        $region49: #{cifar10net_forward.1} parent=11 // pred_check
          %p412 = pneg %p260
        $region50: #{cifar10net_forward.1} parent=11 // pred_check_branch
          %414 = sbr.rel (%p412) target = $region52
        $region51: #{cifar10net_forward.1} parent=11 // pred_region
          _
        $region52: #{cifar10net_forward.1} parent=11 // pred_fallthru
          _
        // Predicated region
        $region53: #{cifar10net_forward.1} parent=11 // pred_check
          %p415 = pneg %p281
        $region54: #{cifar10net_forward.1} parent=11 // pred_check_branch
          %417 = sbr.rel (%p415) target = $region56
        $region55: #{cifar10net_forward.1} parent=11 // pred_region
          _
        $region56: #{cifar10net_forward.1} parent=11 // pred_fallthru
          _
        // Predicated region
        $region57: #{cifar10net_forward.1} parent=11 // pred_check
          %p418 = pneg %p302
        $region58: #{cifar10net_forward.1} parent=11 // pred_check_branch
          %420 = sbr.rel (%p418) target = $region60
        $region59: #{cifar10net_forward.1} parent=11 // pred_region
          _
        $region60: #{cifar10net_forward.1} parent=11 // pred_fallthru
          _
        // Predicated region
        $region61: #{cifar10net_forward.1} parent=11 // pred_check
          %p421 = pneg %p323
        $region62: #{cifar10net_forward.1} parent=11 // pred_check_branch
          %423 = sbr.rel (%p421) target = $region64
        $region63: #{cifar10net_forward.1} parent=11 // pred_region
          _
        $region64: #{cifar10net_forward.1} parent=11 // pred_fallthru
          _
        // Predicated region
        $region65: #{cifar10net_forward.1} parent=11 // pred_check
          %p424 = pneg %p344
        $region66: #{cifar10net_forward.1} parent=11 // pred_check_branch
          %426 = sbr.rel (%p424) target = $region68
        $region67: #{cifar10net_forward.1} parent=11 // pred_region
          _
        $region68: #{cifar10net_forward.1} parent=11 // pred_fallthru
          _
      $region12: #{cifar10net_forward.1} parent=5 // pred_fallthru
        _
      %p427 = scmp.lt.s32.totalorder %s24, 2
      // Predicated region
      $region69: #{cifar10net_forward.1} parent=5 // pred_check
        %p428 = pneg %p427
      $region70: #{cifar10net_forward.1} parent=5 // pred_check_branch
        %430 = sbr.rel (%p428) target = $region72
      $region71: #{cifar10net_forward.1} parent=5 // pred_region
        // Predicated region
        $region73: #{cifar10net_forward.1} parent=71 // pred_check
          %p431 = pneg %p44
        $region74: #{cifar10net_forward.1} parent=71 // pred_check_branch
          %433 = sbr.rel (%p431) target = $region76
        $region75: #{cifar10net_forward.1} parent=71 // pred_region
          %p434 = scmp.lt.s32.totalorder %s24, 1
          %s435 = scalar_select %p434, %s24, 1
          %s436 = smul.addr %s435, 4
          %s437 = smul.addr %s436, 8
          %s438 = scalar_lea.vmem %s0, %s437
        $region76: #{cifar10net_forward.1} parent=71 // pred_fallthru
          _
      $region72: #{cifar10net_forward.1} parent=5 // pred_fallthru
        _
      %p439 = scmp.le.s32.totalorder 1, %s24
      %p440 = scmp.lt.s32.totalorder %s24, 3
      %p441 = pnand %p439, %p440
      %p442 = pneg %p441
      // Predicated region
      $region77: #{cifar10net_forward.1} parent=5 // pred_check
        _
      $region78: #{cifar10net_forward.1} parent=5 // pred_check_branch
        %444 = sbr.rel (%p441) target = $region80
      $region79: #{cifar10net_forward.1} parent=5 // pred_region
        %s445 = ssub.s32 %s24, 1
        %p446 = scmp.lt.s32.totalorder %s29, 1
        %s447 = scalar_select %p446, %s29, 1
        %s448 = smul.addr %s447, 4
        %s449 = smul.addr %s448, 8
        %s450 = scalar_lea.vmem %s0, %s449
        %p451 = pneg %p50
        %p452 = pneg %p47
        %p453 = pneg %p71
        %p454 = pneg %p68
        %p455 = pneg %p92
        %p456 = pneg %p89
        %p457 = pneg %p113
        %p458 = pneg %p110
        %p459 = pneg %p134
        %p460 = pneg %p131
        %p461 = pneg %p155
        %p462 = pneg %p152
        %p463 = pneg %p176
        %p464 = pneg %p173
        %p465 = pneg %p197
        %p466 = pneg %p194
        %p467 = pneg %p218
        %p468 = pneg %p215
        %p469 = pneg %p239
        %p470 = pneg %p236
        %p471 = pneg %p260
        %p472 = pneg %p257
        %p473 = pneg %p281
        %p474 = pneg %p278
        %p475 = pneg %p302
        %p476 = pneg %p299
        %p477 = pneg %p323
        %p478 = pneg %p320
        %p479 = pneg %p344
        %p480 = pneg %p341
        %p481 = pneg %p370
        %p482 = pneg %p367
        %s483 = sand.u32 %s357, 1
        %s484 = scalar_lea.sflag [#allocation5], %s483
        %s485 = sand.u32 %s357, 1
        %s486 = scalar_lea.vmem [#allocation4], %s485
        %p487 = scmp.lt.s32.totalorder %s29, 1
        %s488 = scalar_select %p487, %s29, 1
        %s489 = smul.addr %s488, 4
        %s490 = smul.addr %s489, 8
        %s491 = scalar_lea.vmem %s0, %s490
        %v493 = vld [vmem:[%s491] sm:$0xff]
        %v494 = vld [vmem:[%s491 + $0x8] sm:$0xff]
        %v495 = vld [vmem:[%s491 + $0x10] sm:$0xff]
        %v496 = vld [vmem:[%s491 + $0x18] sm:$0xf]
        %v497 = vld [vmem:[%s1] sm:$0xff]
        %v498 = vld [vmem:[%s1 + $0x8] sm:$0xff]
        %v499 = vld [vmem:[%s1 + $0x10] sm:$0xff]
        %v500 = vld [vmem:[%s1 + $0x18] sm:$0xff]
        %v501 = vld [vmem:[%s1 + $0x20] sm:$0xff]
        %v502 = vld [vmem:[%s1 + $0x28] sm:$0xff]
        %v503 = vld [vmem:[%s1 + $0x30] sm:$0xff]
        %v504 = vld [vmem:[%s1 + $0x38] sm:$0xff]
        %v505 = vld [vmem:[%s1 + $0x40] sm:$0xff]
        %v506 = vld [vmem:[%s1 + $0x48] sm:$0xff]
        %v507 = vld [vmem:[%s1 + $0x50] sm:$0xff]
        %v508 = vld [vmem:[%s1 + $0x58] sm:$0xff]
        %v509 = vpack.c.bf16 %v494, %v493
        %v510 = vpack.c.bf16 %v496, %v495
        %v511 = vld [vmem:[%s491 + $0x1] sm:$0xff]
        %v512 = vld [vmem:[%s491 + $0x9] sm:$0xff]
        %v513 = vld [vmem:[%s491 + $0x11] sm:$0xff]
        %v514 = vld [vmem:[%s491 + $0x19] sm:$0xf]
        %s515 = scalar_lea.vmem %s1, 96
        %v516 = vld [vmem:[%s515] sm:$0xff]
        %v517 = vld [vmem:[%s515 + $0x8] sm:$0xff]
        %v518 = vld [vmem:[%s515 + $0x10] sm:$0xff]
        %v519 = vld [vmem:[%s515 + $0x18] sm:$0xff]
        %v520 = vld [vmem:[%s515 + $0x20] sm:$0xff]
        %v521 = vld [vmem:[%s515 + $0x28] sm:$0xff]
        %v522 = vld [vmem:[%s515 + $0x30] sm:$0xff]
        %v523 = vld [vmem:[%s515 + $0x38] sm:$0xff]
        %v524 = vld [vmem:[%s515 + $0x40] sm:$0xff]
        %v525 = vld [vmem:[%s515 + $0x48] sm:$0xff]
        %v526 = vld [vmem:[%s515 + $0x50] sm:$0xff]
        %v527 = vld [vmem:[%s515 + $0x58] sm:$0xff]
        %v528 = vpack.c.bf16 %v512, %v511
        %v529 = vpack.c.bf16 %v514, %v513
        %v542 = vunpack.c.l.b16 %v516
        %v543 = vunpack.c.h.b16 %v516
        %v544 = vunpack.c.l.b16 %v517
        %v545 = vunpack.c.h.b16 %v517
        %v546 = vunpack.c.l.b16 %v518
        %v547 = vunpack.c.h.b16 %v518
        %v548 = vunpack.c.l.b16 %v519
        %v549 = vunpack.c.h.b16 %v519
        %v550 = vunpack.c.l.b16 %v520
        %v551 = vunpack.c.h.b16 %v520
        %v552 = vunpack.c.l.b16 %v521
        %v553 = vunpack.c.h.b16 %v521
        %v554 = vunpack.c.l.b16 %v522
        %v555 = vunpack.c.h.b16 %v522
        %v556 = vunpack.c.l.b16 %v523
        %v557 = vunpack.c.h.b16 %v523
        %v558 = vunpack.c.l.b16 %v524
        %v559 = vunpack.c.h.b16 %v524
        %v560 = vunpack.c.l.b16 %v525
        %v561 = vunpack.c.h.b16 %v525
        %v562 = vunpack.c.l.b16 %v526
        %v563 = vunpack.c.h.b16 %v526
        %v564 = vunpack.c.l.b16 %v527
        %v565 = vunpack.c.h.b16 %v527
        %v566 = vpack.c.b16 %v544, %v542
        %v567 = vpack.c.b16 %v545, %v543
        %v568 = vpack.c.b16 %v548, %v546
        %v569 = vpack.c.b16 %v549, %v547
        %v570 = vpack.c.b16 %v552, %v550
        %v571 = vpack.c.b16 %v553, %v551
        %v572 = vpack.c.b16 %v556, %v554
        %v573 = vpack.c.b16 %v557, %v555
        %v574 = vpack.c.b16 %v560, %v558
        %v575 = vpack.c.b16 %v561, %v559
        %v576 = vpack.c.b16 %v564, %v562
        %v577 = vpack.c.b16 %v565, %v563
        %vm590 = vcmask 785408
        %v592 = vsel %vm590, %v528, 0
        %v595 = vsel %vm590, %v529, 0
        %597 = vmatprep.subr.bf16.mxu0 %v567
        %598 = vmatpush1.bf16.msra.mxu0 %v566
        %599 = vmatprep.subr.bf16.mxu0 %v569
        %600 = vmatpush1.bf16.msra.mxu0 %v568
        %601 = vmatprep.subr.bf16.mxu0 %v571
        %602 = vmatpush1.bf16.msra.mxu0 %v570
        %603 = vmatprep.subr.bf16.mxu0 %v573
        %604 = vmatpush1.bf16.msra.mxu0 %v572
        %605 = vmatprep.subr.bf16.mxu0 %v575
        %606 = vmatpush1.bf16.msra.mxu0 %v574
        %607 = vmatprep.subr.bf16.mxu0 %v577
        %608 = vmatpush1.bf16.msra.mxu0 %v576
        %609 = vmatprep.subr.bf16.mxu0 0
        %610 = vmatpush1.bf16.msra.mxu0 0
        %611 = vmatprep.subr.bf16.mxu0 0
        %612 = vmatpush1.bf16.msra.mxu0 0
        %613 = vmatprep.subr.bf16.mxu0 0
        %614 = vmatpush1.bf16.msra.mxu0 0
        %615 = vmatprep.subr.bf16.mxu0 0
        %616 = vmatpush1.bf16.msra.mxu0 0
        %617 = vmatprep.subr.bf16.mxu0 0
        %618 = vmatpush1.bf16.msra.mxu0 0
        %619 = vmatprep.subr.bf16.mxu0 0
        %620 = vmatpush1.bf16.msra.mxu0 0
        %621 = vmatprep.subr.bf16.mxu0 0
        %622 = vmatpush1.bf16.msra.mxu0 0
        %623 = vmatprep.subr.bf16.mxu0 0
        %624 = vmatpush1.bf16.msra.mxu0 0
        %625 = vmatprep.subr.bf16.mxu0 0
        %626 = vmatpush1.bf16.msra.mxu0 0
        %627 = vmatprep.subr.bf16.mxu0 0
        %628 = vmatpush1.bf16.msra.mxu0 0
        %629 = vmatprep.mubr.bf16.mxu0 0
        %630 = vmatmul.mubr.bf16.gmra.mrb[0].mxu0 %v592
        %v631 = vpop.f32.mrb[0].mxu0
        %v632 = vadd.f32 0.0, %v631
        %v633 = vpop.f32.mrb[0].mxu0
        %v634 = vadd.f32 0.0, %v633
        %v635 = vpop.f32.mrb[0].mxu0
        %v636 = vadd.f32 0.0, %v635
        %v637 = vpop.f32.mrb[0].mxu0
        %v638 = vadd.f32 0.0, %v637
        %639 = vmatprep.mubr.bf16.mxu0 0
        %640 = vmatmul.mubr.bf16.gmra.mrb[0].mxu0 %v595
        %v641 = vpop.f32.mrb[0].mxu0
        %v642 = vadd.f32 0.0, %v641
        %v643 = vpop.f32.mrb[0].mxu0
        %v644 = vadd.f32 0.0, %v643
        %v645 = vpop.f32.mrb[0].mxu0
        %v646 = vadd.f32 0.0, %v645
        %v647 = vpop.f32.mrb[0].mxu0
        %v648 = vadd.f32 0.0, %v647
        %649 = vdwg.mxu0
        %v662 = vunpack.c.l.b16 %v497
        %v663 = vunpack.c.h.b16 %v497
        %v664 = vunpack.c.l.b16 %v498
        %v665 = vunpack.c.h.b16 %v498
        %v666 = vunpack.c.l.b16 %v499
        %v667 = vunpack.c.h.b16 %v499
        %v668 = vunpack.c.l.b16 %v500
        %v669 = vunpack.c.h.b16 %v500
        %v670 = vunpack.c.l.b16 %v501
        %v671 = vunpack.c.h.b16 %v501
        %v672 = vunpack.c.l.b16 %v502
        %v673 = vunpack.c.h.b16 %v502
        %v674 = vunpack.c.l.b16 %v503
        %v675 = vunpack.c.h.b16 %v503
        %v676 = vunpack.c.l.b16 %v504
        %v677 = vunpack.c.h.b16 %v504
        %v678 = vunpack.c.l.b16 %v505
        %v679 = vunpack.c.h.b16 %v505
        %v680 = vunpack.c.l.b16 %v506
        %v681 = vunpack.c.h.b16 %v506
        %v682 = vunpack.c.l.b16 %v507
        %v683 = vunpack.c.h.b16 %v507
        %v684 = vunpack.c.l.b16 %v508
        %v685 = vunpack.c.h.b16 %v508
        %v686 = vpack.c.b16 %v664, %v662
        %v687 = vpack.c.b16 %v665, %v663
        %v688 = vpack.c.b16 %v668, %v666
        %v689 = vpack.c.b16 %v669, %v667
        %v690 = vpack.c.b16 %v672, %v670
        %v691 = vpack.c.b16 %v673, %v671
        %v692 = vpack.c.b16 %v676, %v674
        %v693 = vpack.c.b16 %v677, %v675
        %v694 = vpack.c.b16 %v680, %v678
        %v695 = vpack.c.b16 %v681, %v679
        %v696 = vpack.c.b16 %v684, %v682
        %v697 = vpack.c.b16 %v685, %v683
        %v711 = vsel %vm590, %v509, 0
        %v714 = vsel %vm590, %v510, 0
        %716 = vmatprep.subr.bf16.mxu0 %v687
        %717 = vmatpush1.bf16.msra.mxu0 %v686
        %718 = vmatprep.subr.bf16.mxu0 %v689
        %719 = vmatpush1.bf16.msra.mxu0 %v688
        %720 = vmatprep.subr.bf16.mxu0 %v691
        %721 = vmatpush1.bf16.msra.mxu0 %v690
        %722 = vmatprep.subr.bf16.mxu0 %v693
        %723 = vmatpush1.bf16.msra.mxu0 %v692
        %724 = vmatprep.subr.bf16.mxu0 %v695
        %725 = vmatpush1.bf16.msra.mxu0 %v694
        %726 = vmatprep.subr.bf16.mxu0 %v697
        %727 = vmatpush1.bf16.msra.mxu0 %v696
        %728 = vmatprep.subr.bf16.mxu0 0
        %729 = vmatpush1.bf16.msra.mxu0 0
        %730 = vmatprep.subr.bf16.mxu0 0
        %731 = vmatpush1.bf16.msra.mxu0 0
        %732 = vmatprep.subr.bf16.mxu0 0
        %733 = vmatpush1.bf16.msra.mxu0 0
        %734 = vmatprep.subr.bf16.mxu0 0
        %735 = vmatpush1.bf16.msra.mxu0 0
        %736 = vmatprep.subr.bf16.mxu0 0
        %737 = vmatpush1.bf16.msra.mxu0 0
        %738 = vmatprep.subr.bf16.mxu0 0
        %739 = vmatpush1.bf16.msra.mxu0 0
        %740 = vmatprep.subr.bf16.mxu0 0
        %741 = vmatpush1.bf16.msra.mxu0 0
        %742 = vmatprep.subr.bf16.mxu0 0
        %743 = vmatpush1.bf16.msra.mxu0 0
        %744 = vmatprep.subr.bf16.mxu0 0
        %745 = vmatpush1.bf16.msra.mxu0 0
        %746 = vmatprep.subr.bf16.mxu0 0
        %747 = vmatpush1.bf16.msra.mxu0 0
        %748 = vmatprep.mubr.bf16.mxu0 0
        %749 = vmatmul.mubr.bf16.gmra.mrb[0].mxu0 %v711
        %v750 = vpop.f32.mrb[0].mxu0
        %v751 = vadd.f32 %v632, %v750
        %v752 = vpop.f32.mrb[0].mxu0
        %v753 = vadd.f32 %v634, %v752
        %v754 = vpop.f32.mrb[0].mxu0
        %v755 = vadd.f32 %v636, %v754
        %v756 = vpop.f32.mrb[0].mxu0
        %v757 = vadd.f32 %v638, %v756
        %758 = vmatprep.mubr.bf16.mxu0 0
        %759 = vmatmul.mubr.bf16.gmra.mrb[0].mxu0 %v714
        %v760 = vpop.f32.mrb[0].mxu0
        %v761 = vadd.f32 %v642, %v760
        %v762 = vpop.f32.mrb[0].mxu0
        %v763 = vadd.f32 %v644, %v762
        %v764 = vpop.f32.mrb[0].mxu0
        %v765 = vadd.f32 %v646, %v764
        %v766 = vpop.f32.mrb[0].mxu0
        %v767 = vadd.f32 %v648, %v766
        %768 = vdwg.mxu0
        %v769 = vld [vmem:[%s491 + $0x2] sm:$0xff]
        %v770 = vld [vmem:[%s491 + $0xa] sm:$0xff]
        %v771 = vld [vmem:[%s491 + $0x12] sm:$0xff]
        %v772 = vld [vmem:[%s491 + $0x1a] sm:$0xf]
        %s773 = scalar_lea.vmem %s1, 192
        %v774 = vld [vmem:[%s773] sm:$0xff]
        %v775 = vld [vmem:[%s773 + $0x8] sm:$0xff]
        %v776 = vld [vmem:[%s773 + $0x10] sm:$0xff]
        %v777 = vld [vmem:[%s773 + $0x18] sm:$0xff]
        %v778 = vld [vmem:[%s773 + $0x20] sm:$0xff]
        %v779 = vld [vmem:[%s773 + $0x28] sm:$0xff]
        %v780 = vld [vmem:[%s773 + $0x30] sm:$0xff]
        %v781 = vld [vmem:[%s773 + $0x38] sm:$0xff]
        %v782 = vld [vmem:[%s773 + $0x40] sm:$0xff]
        %v783 = vld [vmem:[%s773 + $0x48] sm:$0xff]
        %v784 = vld [vmem:[%s773 + $0x50] sm:$0xff]
        %v785 = vld [vmem:[%s773 + $0x58] sm:$0xff]
        %v786 = vpack.c.bf16 %v770, %v769
        %v787 = vpack.c.bf16 %v772, %v771
        %v800 = vunpack.c.l.b16 %v774
        %v801 = vunpack.c.h.b16 %v774
        %v802 = vunpack.c.l.b16 %v775
        %v803 = vunpack.c.h.b16 %v775
        %v804 = vunpack.c.l.b16 %v776
        %v805 = vunpack.c.h.b16 %v776
        %v806 = vunpack.c.l.b16 %v777
        %v807 = vunpack.c.h.b16 %v777
        %v808 = vunpack.c.l.b16 %v778
        %v809 = vunpack.c.h.b16 %v778
        %v810 = vunpack.c.l.b16 %v779
        %v811 = vunpack.c.h.b16 %v779
        %v812 = vunpack.c.l.b16 %v780
        %v813 = vunpack.c.h.b16 %v780
        %v814 = vunpack.c.l.b16 %v781
        %v815 = vunpack.c.h.b16 %v781
        %v816 = vunpack.c.l.b16 %v782
        %v817 = vunpack.c.h.b16 %v782
        %v818 = vunpack.c.l.b16 %v783
        %v819 = vunpack.c.h.b16 %v783
        %v820 = vunpack.c.l.b16 %v784
        %v821 = vunpack.c.h.b16 %v784
        %v822 = vunpack.c.l.b16 %v785
        %v823 = vunpack.c.h.b16 %v785
        %v824 = vpack.c.b16 %v802, %v800
        %v825 = vpack.c.b16 %v803, %v801
        %v826 = vpack.c.b16 %v806, %v804
        %v827 = vpack.c.b16 %v807, %v805
        %v828 = vpack.c.b16 %v810, %v808
        %v829 = vpack.c.b16 %v811, %v809
        %v830 = vpack.c.b16 %v814, %v812
        %v831 = vpack.c.b16 %v815, %v813
        %v832 = vpack.c.b16 %v818, %v816
        %v833 = vpack.c.b16 %v819, %v817
        %v834 = vpack.c.b16 %v822, %v820
        %v835 = vpack.c.b16 %v823, %v821
        %v849 = vsel %vm590, %v786, 0
        %v852 = vsel %vm590, %v787, 0
        %854 = vmatprep.subr.bf16.mxu0 %v825
        %855 = vmatpush1.bf16.msra.mxu0 %v824
        %856 = vmatprep.subr.bf16.mxu0 %v827
        %857 = vmatpush1.bf16.msra.mxu0 %v826
        %858 = vmatprep.subr.bf16.mxu0 %v829
        %859 = vmatpush1.bf16.msra.mxu0 %v828
        %860 = vmatprep.subr.bf16.mxu0 %v831
        %861 = vmatpush1.bf16.msra.mxu0 %v830
        %862 = vmatprep.subr.bf16.mxu0 %v833
        %863 = vmatpush1.bf16.msra.mxu0 %v832
        %864 = vmatprep.subr.bf16.mxu0 %v835
        %865 = vmatpush1.bf16.msra.mxu0 %v834
        %866 = vmatprep.subr.bf16.mxu0 0
        %867 = vmatpush1.bf16.msra.mxu0 0
        %868 = vmatprep.subr.bf16.mxu0 0
        %869 = vmatpush1.bf16.msra.mxu0 0
        %870 = vmatprep.subr.bf16.mxu0 0
        %871 = vmatpush1.bf16.msra.mxu0 0
        %872 = vmatprep.subr.bf16.mxu0 0
        %873 = vmatpush1.bf16.msra.mxu0 0
        %874 = vmatprep.subr.bf16.mxu0 0
        %875 = vmatpush1.bf16.msra.mxu0 0
        %876 = vmatprep.subr.bf16.mxu0 0
        %877 = vmatpush1.bf16.msra.mxu0 0
        %878 = vmatprep.subr.bf16.mxu0 0
        %879 = vmatpush1.bf16.msra.mxu0 0
        %880 = vmatprep.subr.bf16.mxu0 0
        %881 = vmatpush1.bf16.msra.mxu0 0
        %882 = vmatprep.subr.bf16.mxu0 0
        %883 = vmatpush1.bf16.msra.mxu0 0
        %884 = vmatprep.subr.bf16.mxu0 0
        %885 = vmatpush1.bf16.msra.mxu0 0
        %886 = vmatprep.mubr.bf16.mxu0 0
        %887 = vmatmul.mubr.bf16.gmra.mrb[0].mxu0 %v849
        %v888 = vpop.f32.mrb[0].mxu0
        %v889 = vadd.f32 0.0, %v888
        %v890 = vpop.f32.mrb[0].mxu0
        %v891 = vadd.f32 0.0, %v890
        %v892 = vpop.f32.mrb[0].mxu0
        %v893 = vadd.f32 0.0, %v892
        %v894 = vpop.f32.mrb[0].mxu0
        %v895 = vadd.f32 0.0, %v894
        %896 = vmatprep.mubr.bf16.mxu0 0
        %897 = vmatmul.mubr.bf16.gmra.mrb[0].mxu0 %v852
        %v898 = vpop.f32.mrb[0].mxu0
        %v899 = vadd.f32 0.0, %v898
        %v900 = vpop.f32.mrb[0].mxu0
        %v901 = vadd.f32 0.0, %v900
        %v902 = vpop.f32.mrb[0].mxu0
        %v903 = vadd.f32 0.0, %v902
        %v904 = vpop.f32.mrb[0].mxu0
        %v905 = vadd.f32 0.0, %v904
        %906 = vdwg.mxu0
        %v907 = vadd.f32 %v751, %v889
        %v908 = vadd.f32 %v753, %v891
        %v909 = vadd.f32 %v755, %v893
        %v910 = vadd.f32 %v757, %v895
        %v911 = vadd.f32 %v761, %v899
        %v912 = vadd.f32 %v763, %v901
        %v913 = vadd.f32 %v765, %v903
        %v914 = vadd.f32 %v767, %v905
        %v915 = vld [vmem:[%s491 + $0x3] sm:$0xff]
        %v916 = vld [vmem:[%s491 + $0xb] sm:$0xff]
        %v917 = vld [vmem:[%s491 + $0x13] sm:$0xff]
        %v918 = vld [vmem:[%s491 + $0x1b] sm:$0xf]
        %s919 = scalar_lea.vmem %s1, 288
        %v920 = vld [vmem:[%s919] sm:$0xff]
        %v921 = vld [vmem:[%s919 + $0x8] sm:$0xff]
        %v922 = vld [vmem:[%s919 + $0x10] sm:$0xff]
        %v923 = vld [vmem:[%s919 + $0x18] sm:$0xff]
        %v924 = vld [vmem:[%s919 + $0x20] sm:$0xff]
        %v925 = vld [vmem:[%s919 + $0x28] sm:$0xff]
        %v926 = vld [vmem:[%s919 + $0x30] sm:$0xff]
        %v927 = vld [vmem:[%s919 + $0x38] sm:$0xff]
        %v928 = vld [vmem:[%s919 + $0x40] sm:$0xff]
        %v929 = vld [vmem:[%s919 + $0x48] sm:$0xff]
        %v930 = vld [vmem:[%s919 + $0x50] sm:$0xff]
        %v931 = vld [vmem:[%s919 + $0x58] sm:$0xff]
        %v932 = vpack.c.bf16 %v916, %v915
        %v933 = vpack.c.bf16 %v918, %v917
        %v946 = vunpack.c.l.b16 %v920
        %v947 = vunpack.c.h.b16 %v920
        %v948 = vunpack.c.l.b16 %v921
        %v949 = vunpack.c.h.b16 %v921
        %v950 = vunpack.c.l.b16 %v922
        %v951 = vunpack.c.h.b16 %v922
        %v952 = vunpack.c.l.b16 %v923
        %v953 = vunpack.c.h.b16 %v923
        %v954 = vunpack.c.l.b16 %v924
        %v955 = vunpack.c.h.b16 %v924
        %v956 = vunpack.c.l.b16 %v925
        %v957 = vunpack.c.h.b16 %v925
        %v958 = vunpack.c.l.b16 %v926
        %v959 = vunpack.c.h.b16 %v926
        %v960 = vunpack.c.l.b16 %v927
        %v961 = vunpack.c.h.b16 %v927
        %v962 = vunpack.c.l.b16 %v928
        %v963 = vunpack.c.h.b16 %v928
        %v964 = vunpack.c.l.b16 %v929
        %v965 = vunpack.c.h.b16 %v929
        %v966 = vunpack.c.l.b16 %v930
        %v967 = vunpack.c.h.b16 %v930
        %v968 = vunpack.c.l.b16 %v931
        %v969 = vunpack.c.h.b16 %v931
        %v970 = vpack.c.b16 %v948, %v946
        %v971 = vpack.c.b16 %v949, %v947
        %v972 = vpack.c.b16 %v952, %v950
        %v973 = vpack.c.b16 %v953, %v951
        %v974 = vpack.c.b16 %v956, %v954
        %v975 = vpack.c.b16 %v957, %v955
        %v976 = vpack.c.b16 %v960, %v958
        %v977 = vpack.c.b16 %v961, %v959
        %v978 = vpack.c.b16 %v964, %v962
        %v979 = vpack.c.b16 %v965, %v963
        %v980 = vpack.c.b16 %v968, %v966
        %v981 = vpack.c.b16 %v969, %v967
        %v995 = vsel %vm590, %v932, 0
        %v998 = vsel %vm590, %v933, 0
        %1000 = vmatprep.subr.bf16.mxu0 %v971
        %1001 = vmatpush1.bf16.msra.mxu0 %v970
        %1002 = vmatprep.subr.bf16.mxu0 %v973
        %1003 = vmatpush1.bf16.msra.mxu0 %v972
        %1004 = vmatprep.subr.bf16.mxu0 %v975
        %1005 = vmatpush1.bf16.msra.mxu0 %v974
        %1006 = vmatprep.subr.bf16.mxu0 %v977
        %1007 = vmatpush1.bf16.msra.mxu0 %v976
        %1008 = vmatprep.subr.bf16.mxu0 %v979
        %1009 = vmatpush1.bf16.msra.mxu0 %v978
        %1010 = vmatprep.subr.bf16.mxu0 %v981
        %1011 = vmatpush1.bf16.msra.mxu0 %v980
        %1012 = vmatprep.subr.bf16.mxu0 0
        %1013 = vmatpush1.bf16.msra.mxu0 0
        %1014 = vmatprep.subr.bf16.mxu0 0
        %1015 = vmatpush1.bf16.msra.mxu0 0
        %1016 = vmatprep.subr.bf16.mxu0 0
        %1017 = vmatpush1.bf16.msra.mxu0 0
        %1018 = vmatprep.subr.bf16.mxu0 0
        %1019 = vmatpush1.bf16.msra.mxu0 0
        %1020 = vmatprep.subr.bf16.mxu0 0
        %1021 = vmatpush1.bf16.msra.mxu0 0
        %1022 = vmatprep.subr.bf16.mxu0 0
        %1023 = vmatpush1.bf16.msra.mxu0 0
        %1024 = vmatprep.subr.bf16.mxu0 0
        %1025 = vmatpush1.bf16.msra.mxu0 0
        %1026 = vmatprep.subr.bf16.mxu0 0
        %1027 = vmatpush1.bf16.msra.mxu0 0
        %1028 = vmatprep.subr.bf16.mxu0 0
        %1029 = vmatpush1.bf16.msra.mxu0 0
        %1030 = vmatprep.subr.bf16.mxu0 0
        %1031 = vmatpush1.bf16.msra.mxu0 0
        %1032 = vmatprep.mubr.bf16.mxu0 0
        %1033 = vmatmul.mubr.bf16.gmra.mrb[0].mxu0 %v995
        %v1034 = vpop.f32.mrb[0].mxu0
        %v1035 = vadd.f32 0.0, %v1034
        %v1036 = vpop.f32.mrb[0].mxu0
        %v1037 = vadd.f32 0.0, %v1036
        %v1038 = vpop.f32.mrb[0].mxu0
        %v1039 = vadd.f32 0.0, %v1038
        %v1040 = vpop.f32.mrb[0].mxu0
        %v1041 = vadd.f32 0.0, %v1040
        %1042 = vmatprep.mubr.bf16.mxu0 0
        %1043 = vmatmul.mubr.bf16.gmra.mrb[0].mxu0 %v998
        %v1044 = vpop.f32.mrb[0].mxu0
        %v1045 = vadd.f32 0.0, %v1044
        %v1046 = vpop.f32.mrb[0].mxu0
        %v1047 = vadd.f32 0.0, %v1046
        %v1048 = vpop.f32.mrb[0].mxu0
        %v1049 = vadd.f32 0.0, %v1048
        %v1050 = vpop.f32.mrb[0].mxu0
        %v1051 = vadd.f32 0.0, %v1050
        %1052 = vdwg.mxu0
        %v1053 = vadd.f32 %v907, %v1035
        %v1054 = vadd.f32 %v908, %v1037
        %v1055 = vadd.f32 %v909, %v1039
        %v1056 = vadd.f32 %v910, %v1041
        %v1057 = vadd.f32 %v911, %v1045
        %v1058 = vadd.f32 %v912, %v1047
        %v1059 = vadd.f32 %v913, %v1049
        %v1060 = vadd.f32 %v914, %v1051
        %v1061 = vld [vmem:[%s491 + $0x4] sm:$0xff]
        %v1062 = vld [vmem:[%s491 + $0xc] sm:$0xff]
        %v1063 = vld [vmem:[%s491 + $0x14] sm:$0xff]
        %v1064 = vld [vmem:[%s491 + $0x1c] sm:$0xf]
        %s1065 = scalar_lea.vmem %s1, 384
        %v1066 = vld [vmem:[%s1065] sm:$0xff]
        %v1067 = vld [vmem:[%s1065 + $0x8] sm:$0xff]
        %v1068 = vld [vmem:[%s1065 + $0x10] sm:$0xff]
        %v1069 = vld [vmem:[%s1065 + $0x18] sm:$0xff]
        %v1070 = vld [vmem:[%s1065 + $0x20] sm:$0xff]
        %v1071 = vld [vmem:[%s1065 + $0x28] sm:$0xff]
        %v1072 = vld [vmem:[%s1065 + $0x30] sm:$0xff]
        %v1073 = vld [vmem:[%s1065 + $0x38] sm:$0xff]
        %v1074 = vld [vmem:[%s1065 + $0x40] sm:$0xff]
        %v1075 = vld [vmem:[%s1065 + $0x48] sm:$0xff]
        %v1076 = vld [vmem:[%s1065 + $0x50] sm:$0xff]
        %v1077 = vld [vmem:[%s1065 + $0x58] sm:$0xff]
        %v1078 = vpack.c.bf16 %v1062, %v1061
        %v1079 = vpack.c.bf16 %v1064, %v1063
        %v1092 = vunpack.c.l.b16 %v1066
        %v1093 = vunpack.c.h.b16 %v1066
        %v1094 = vunpack.c.l.b16 %v1067
        %v1095 = vunpack.c.h.b16 %v1067
        %v1096 = vunpack.c.l.b16 %v1068
        %v1097 = vunpack.c.h.b16 %v1068
        %v1098 = vunpack.c.l.b16 %v1069
        %v1099 = vunpack.c.h.b16 %v1069
        %v1100 = vunpack.c.l.b16 %v1070
        %v1101 = vunpack.c.h.b16 %v1070
        %v1102 = vunpack.c.l.b16 %v1071
        %v1103 = vunpack.c.h.b16 %v1071
        %v1104 = vunpack.c.l.b16 %v1072
        %v1105 = vunpack.c.h.b16 %v1072
        %v1106 = vunpack.c.l.b16 %v1073
        %v1107 = vunpack.c.h.b16 %v1073
        %v1108 = vunpack.c.l.b16 %v1074
        %v1109 = vunpack.c.h.b16 %v1074
        %v1110 = vunpack.c.l.b16 %v1075
        %v1111 = vunpack.c.h.b16 %v1075
        %v1112 = vunpack.c.l.b16 %v1076
        %v1113 = vunpack.c.h.b16 %v1076
        %v1114 = vunpack.c.l.b16 %v1077
        %v1115 = vunpack.c.h.b16 %v1077
        %v1116 = vpack.c.b16 %v1094, %v1092
        %v1117 = vpack.c.b16 %v1095, %v1093
        %v1118 = vpack.c.b16 %v1098, %v1096
        %v1119 = vpack.c.b16 %v1099, %v1097
        %v1120 = vpack.c.b16 %v1102, %v1100
        %v1121 = vpack.c.b16 %v1103, %v1101
        %v1122 = vpack.c.b16 %v1106, %v1104
        %v1123 = vpack.c.b16 %v1107, %v1105
        %v1124 = vpack.c.b16 %v1110, %v1108
        %v1125 = vpack.c.b16 %v1111, %v1109
        %v1126 = vpack.c.b16 %v1114, %v1112
        %v1127 = vpack.c.b16 %v1115, %v1113
        %v1141 = vsel %vm590, %v1078, 0
        %v1144 = vsel %vm590, %v1079, 0
        %1146 = vmatprep.subr.bf16.mxu0 %v1117
        %1147 = vmatpush1.bf16.msra.mxu0 %v1116
        %1148 = vmatprep.subr.bf16.mxu0 %v1119
        %1149 = vmatpush1.bf16.msra.mxu0 %v1118
        %1150 = vmatprep.subr.bf16.mxu0 %v1121
        %1151 = vmatpush1.bf16.msra.mxu0 %v1120
        %1152 = vmatprep.subr.bf16.mxu0 %v1123
        %1153 = vmatpush1.bf16.msra.mxu0 %v1122
        %1154 = vmatprep.subr.bf16.mxu0 %v1125
        %1155 = vmatpush1.bf16.msra.mxu0 %v1124
        %1156 = vmatprep.subr.bf16.mxu0 %v1127
        %1157 = vmatpush1.bf16.msra.mxu0 %v1126
        %1158 = vmatprep.subr.bf16.mxu0 0
        %1159 = vmatpush1.bf16.msra.mxu0 0
        %1160 = vmatprep.subr.bf16.mxu0 0
        %1161 = vmatpush1.bf16.msra.mxu0 0
        %1162 = vmatprep.subr.bf16.mxu0 0
        %1163 = vmatpush1.bf16.msra.mxu0 0
        %1164 = vmatprep.subr.bf16.mxu0 0
        %1165 = vmatpush1.bf16.msra.mxu0 0
        %1166 = vmatprep.subr.bf16.mxu0 0
        %1167 = vmatpush1.bf16.msra.mxu0 0
        %1168 = vmatprep.subr.bf16.mxu0 0
        %1169 = vmatpush1.bf16.msra.mxu0 0
        %1170 = vmatprep.subr.bf16.mxu0 0
        %1171 = vmatpush1.bf16.msra.mxu0 0
        %1172 = vmatprep.subr.bf16.mxu0 0
        %1173 = vmatpush1.bf16.msra.mxu0 0
        %1174 = vmatprep.subr.bf16.mxu0 0
        %1175 = vmatpush1.bf16.msra.mxu0 0
        %1176 = vmatprep.subr.bf16.mxu0 0
        %1177 = vmatpush1.bf16.msra.mxu0 0
        %1178 = vmatprep.mubr.bf16.mxu0 0
        %1179 = vmatmul.mubr.bf16.gmra.mrb[0].mxu0 %v1141
        %v1180 = vpop.f32.mrb[0].mxu0
        %v1181 = vadd.f32 0.0, %v1180
        %v1182 = vpop.f32.mrb[0].mxu0
        %v1183 = vadd.f32 0.0, %v1182
        %v1184 = vpop.f32.mrb[0].mxu0
        %v1185 = vadd.f32 0.0, %v1184
        %v1186 = vpop.f32.mrb[0].mxu0
        %v1187 = vadd.f32 0.0, %v1186
        %1188 = vmatprep.mubr.bf16.mxu0 0
        %1189 = vmatmul.mubr.bf16.gmra.mrb[0].mxu0 %v1144
        %v1190 = vpop.f32.mrb[0].mxu0
        %v1191 = vadd.f32 0.0, %v1190
        %v1192 = vpop.f32.mrb[0].mxu0
        %v1193 = vadd.f32 0.0, %v1192
        %v1194 = vpop.f32.mrb[0].mxu0
        %v1195 = vadd.f32 0.0, %v1194
        %v1196 = vpop.f32.mrb[0].mxu0
        %v1197 = vadd.f32 0.0, %v1196
        %1198 = vdwg.mxu0
        %v1199 = vadd.f32 %v1053, %v1181
        %v1200 = vadd.f32 %v1054, %v1183
        %v1201 = vadd.f32 %v1055, %v1185
        %v1202 = vadd.f32 %v1056, %v1187
        %v1203 = vadd.f32 %v1057, %v1191
        %v1204 = vadd.f32 %v1058, %v1193
        %v1205 = vadd.f32 %v1059, %v1195
        %v1206 = vadd.f32 %v1060, %v1197
        %v1207 = vld [vmem:[%s2] sm:$0x3]
        %v1209 = vlaneseq
        %v1210 = vshrl.u32 %v1209, 7
        %v1211 = vsub.s32 0, %v1210
        %v1212 = vrot.slane %v1207, %v1211
        %v1213 = vlaneseq
        %v1214 = vshrl.u32 %v1213, 7
        %v1215 = vsub.s32 1, %v1214
        %v1216 = vrot.slane %v1207, %v1215
        %v1219 = vadd.f32 %v1199, %v1212
        %v1220 = vadd.f32 %v1200, %v1216
        %v1221 = vadd.f32 %v1201, %v1212
        %v1222 = vadd.f32 %v1202, %v1216
        %v1223 = vadd.f32 %v1203, %v1212
        %v1224 = vadd.f32 %v1204, %v1216
        %v1225 = vadd.f32 %v1205, %v1212
        %v1226 = vadd.f32 %v1206, %v1216
        %v1227 = vmax.f32 %v1219, 0.0
        %v1228 = vmax.f32 %v1220, 0.0
        %v1229 = vmax.f32 %v1221, 0.0
        %v1230 = vmax.f32 %v1222, 0.0
        %v1231 = vmax.f32 %v1223, 0.0
        %v1232 = vmax.f32 %v1224, 0.0
        %v1233 = vmax.f32 %v1225, 0.0
        %v1234 = vmax.f32 %v1226, 0.0
        %v1235 = vld [vmem:[%s3] sm:$0xf]
        %v1236 = vld [vmem:[%s3 + $0x4] sm:$0x7]
        %v1237 = vpack.c.bf16 %v1229, %v1227
        %v1238 = vpack.c.bf16 %v1230, %v1228
        %v1239 = vpack.c.bf16 %v1233, %v1231
        %v1240 = vpack.c.bf16 %v1234, %v1232
        %v1243 = vunpack.c.l.b16 %v1235
        %v1244 = vunpack.c.l.b16 %v1236
        %v1245 = vpack.c.b16 %v1244, %v1243
        %vm1246 = vcmask 228352
        %v1248 = vsel %vm1246, %v1245, 0
        %vm1250 = vcmask 1045504
        %v1252 = vsel %vm1250, %v1239, 0
        %v1255 = vsel %vm1250, %v1240, 0
        %1257 = vmatprep.subr.bf16.mxu0 %v1238
        %1258 = vmatpush1.bf16.msra.mxu0 %v1237
        %1259 = vmatprep.subr.bf16.mxu0 %v1255
        %1260 = vmatpush1.bf16.msra.mxu0 %v1252
        %1261 = vmatprep.subr.bf16.mxu0 0
        %1262 = vmatpush1.bf16.msra.mxu0 0
        %1263 = vmatprep.subr.bf16.mxu0 0
        %1264 = vmatpush1.bf16.msra.mxu0 0
        %1265 = vmatprep.subr.bf16.mxu0 0
        %1266 = vmatpush1.bf16.msra.mxu0 0
        %1267 = vmatprep.subr.bf16.mxu0 0
        %1268 = vmatpush1.bf16.msra.mxu0 0
        %1269 = vmatprep.subr.bf16.mxu0 0
        %1270 = vmatpush1.bf16.msra.mxu0 0
        %1271 = vmatprep.subr.bf16.mxu0 0
        %1272 = vmatpush1.bf16.msra.mxu0 0
        %1273 = vmatprep.subr.bf16.mxu0 0
        %1274 = vmatpush1.bf16.msra.mxu0 0
        %1275 = vmatprep.subr.bf16.mxu0 0
        %1276 = vmatpush1.bf16.msra.mxu0 0
        %1277 = vmatprep.subr.bf16.mxu0 0
        %1278 = vmatpush1.bf16.msra.mxu0 0
        %1279 = vmatprep.subr.bf16.mxu0 0
        %1280 = vmatpush1.bf16.msra.mxu0 0
        %1281 = vmatprep.subr.bf16.mxu0 0
        %1282 = vmatpush1.bf16.msra.mxu0 0
        %1283 = vmatprep.subr.bf16.mxu0 0
        %1284 = vmatpush1.bf16.msra.mxu0 0
        %1285 = vmatprep.subr.bf16.mxu0 0
        %1286 = vmatpush1.bf16.msra.mxu0 0
        %1287 = vmatprep.subr.bf16.mxu0 0
        %1288 = vmatpush1.bf16.msra.mxu0 0
        %1289 = vmatprep.mubr.bf16.mxu0 0
        %1290 = vmatmul.mubr.bf16.gmra.mrb[0].mxu0 %v1248
        %v1291 = vpop.f32.mrb[0].mxu0
        %v1292 = vadd.f32 0.0, %v1291
        %v1293 = vpop.f32.mrb[0].mxu0
        %v1294 = vadd.f32 0.0, %v1293
        %v1295 = vpop.f32.mrb[0].mxu0
        %v1296 = vadd.f32 0.0, %v1295
        %v1297 = vpop.f32.mrb[0].mxu0
        %v1298 = vadd.f32 0.0, %v1297
        %1299 = vdwg.mxu0
        %s1300 = scalar_lea.vmem %s3, 8
        %v1301 = vld [vmem:[%s1300] sm:$0xf]
        %v1302 = vld [vmem:[%s1300 + $0x4] sm:$0x7]
        %v1305 = vunpack.c.l.b16 %v1301
        %v1306 = vunpack.c.l.b16 %v1302
        %v1307 = vpack.c.b16 %v1306, %v1305
        %v1309 = vsel %vm1246, %v1307, 0
        %1311 = vmatprep.subr.bf16.mxu0 %v1238
        %1312 = vmatpush1.bf16.msra.mxu0 %v1237
        %1313 = vmatprep.subr.bf16.mxu0 %v1255
        %1314 = vmatpush1.bf16.msra.mxu0 %v1252
        %1315 = vmatprep.subr.bf16.mxu0 0
        %1316 = vmatpush1.bf16.msra.mxu0 0
        %1317 = vmatprep.subr.bf16.mxu0 0
        %1318 = vmatpush1.bf16.msra.mxu0 0
        %1319 = vmatprep.subr.bf16.mxu0 0
        %1320 = vmatpush1.bf16.msra.mxu0 0
        %1321 = vmatprep.subr.bf16.mxu0 0
        %1322 = vmatpush1.bf16.msra.mxu0 0
        %1323 = vmatprep.subr.bf16.mxu0 0
        %1324 = vmatpush1.bf16.msra.mxu0 0
        %1325 = vmatprep.subr.bf16.mxu0 0
        %1326 = vmatpush1.bf16.msra.mxu0 0
        %1327 = vmatprep.subr.bf16.mxu0 0
        %1328 = vmatpush1.bf16.msra.mxu0 0
        %1329 = vmatprep.subr.bf16.mxu0 0
        %1330 = vmatpush1.bf16.msra.mxu0 0
        %1331 = vmatprep.subr.bf16.mxu0 0
        %1332 = vmatpush1.bf16.msra.mxu0 0
        %1333 = vmatprep.subr.bf16.mxu0 0
        %1334 = vmatpush1.bf16.msra.mxu0 0
        %1335 = vmatprep.subr.bf16.mxu0 0
        %1336 = vmatpush1.bf16.msra.mxu0 0
        %1337 = vmatprep.subr.bf16.mxu0 0
        %1338 = vmatpush1.bf16.msra.mxu0 0
        %1339 = vmatprep.subr.bf16.mxu0 0
        %1340 = vmatpush1.bf16.msra.mxu0 0
        %1341 = vmatprep.subr.bf16.mxu0 0
        %1342 = vmatpush1.bf16.msra.mxu0 0
        %1343 = vmatprep.mubr.bf16.mxu0 0
        %1344 = vmatmul.mubr.bf16.gmra.mrb[0].mxu0 %v1309
        %v1345 = vpop.f32.mrb[0].mxu0
        %v1346 = vadd.f32 0.0, %v1345
        %v1347 = vpop.f32.mrb[0].mxu0
        %v1348 = vadd.f32 0.0, %v1347
        %v1349 = vpop.f32.mrb[0].mxu0
        %v1350 = vadd.f32 0.0, %v1349
        %v1351 = vpop.f32.mrb[0].mxu0
        %v1352 = vadd.f32 0.0, %v1351
        %1353 = vdwg.mxu0
        %v1354 = vmax.f32 %v1292, %v1346
        %v1355 = vmax.f32 %v1294, %v1348
        %v1356 = vmax.f32 %v1296, %v1350
        %v1357 = vmax.f32 %v1298, %v1352
        %v1358 = vld [vmem:[%s4] sm:$0xf]
        %v1359 = vld [vmem:[%s4 + $0x4] sm:$0xf]
        %v1360 = vld [vmem:[%s4 + $0x8] sm:$0xf]
        %v1361 = vld [vmem:[%s4 + $0xc] sm:$0xf]
        %v1362 = vld [vmem:[%s4 + $0x10] sm:$0xf]
        %v1363 = vld [vmem:[%s4 + $0x14] sm:$0xf]
        %v1364 = vld [vmem:[%s4 + $0x18] sm:$0xf]
        %v1365 = vld [vmem:[%s4 + $0x1c] sm:$0xf]
        %v1366 = vld [vmem:[%s4 + $0x20] sm:$0xf]
        %v1367 = vld [vmem:[%s4 + $0x24] sm:$0xf]
        %v1368 = vld [vmem:[%s4 + $0x28] sm:$0xf]
        %v1369 = vld [vmem:[%s4 + $0x2c] sm:$0xf]
        %v1370 = vld [vmem:[%s4 + $0x30] sm:$0xf]
        %v1371 = vld [vmem:[%s4 + $0x34] sm:$0xf]
        %v1372 = vld [vmem:[%s4 + $0x38] sm:$0xf]
        %v1373 = vld [vmem:[%s4 + $0x3c] sm:$0xf]
        %v1374 = vld [vmem:[%s4 + $0x40] sm:$0xf]
        %v1375 = vld [vmem:[%s4 + $0x44] sm:$0xf]
        %v1376 = vld [vmem:[%s4 + $0x48] sm:$0xf]
        %v1377 = vld [vmem:[%s4 + $0x4c] sm:$0xf]
        %v1378 = vld [vmem:[%s4 + $0x50] sm:$0xf]
        %v1379 = vpack.c.bf16 %v1356, %v1354
        %v1380 = vpack.c.bf16 %v1357, %v1355
        %v1402 = vunpack.c.l.b16 %v1358
        %v1403 = vunpack.c.l.b16 %v1359
        %v1404 = vunpack.c.l.b16 %v1360
        %v1405 = vunpack.c.l.b16 %v1361
        %v1406 = vunpack.c.l.b16 %v1362
        %v1407 = vunpack.c.l.b16 %v1363
        %v1408 = vunpack.c.l.b16 %v1364
        %v1409 = vunpack.c.l.b16 %v1365
        %v1410 = vunpack.c.l.b16 %v1366
        %v1411 = vunpack.c.l.b16 %v1367
        %v1412 = vunpack.c.l.b16 %v1368
        %v1413 = vunpack.c.l.b16 %v1369
        %v1414 = vunpack.c.l.b16 %v1370
        %v1415 = vunpack.c.l.b16 %v1371
        %v1416 = vunpack.c.l.b16 %v1372
        %v1417 = vunpack.c.l.b16 %v1373
        %v1418 = vunpack.c.l.b16 %v1374
        %v1419 = vunpack.c.l.b16 %v1375
        %v1420 = vunpack.c.l.b16 %v1376
        %v1421 = vunpack.c.l.b16 %v1377
        %v1422 = vunpack.c.l.b16 %v1378
        %v1423 = vpack.c.b16 %v1403, %v1402
        %v1424 = vpack.c.b16 %v1405, %v1404
        %v1425 = vpack.c.b16 %v1407, %v1406
        %v1426 = vpack.c.b16 %v1409, %v1408
        %v1427 = vpack.c.b16 %v1411, %v1410
        %v1428 = vpack.c.b16 %v1413, %v1412
        %v1429 = vpack.c.b16 %v1415, %v1414
        %v1430 = vpack.c.b16 %v1417, %v1416
        %v1431 = vpack.c.b16 %v1419, %v1418
        %v1432 = vpack.c.b16 %v1421, %v1420
        %v1433 = vpack.c.b16 %v1422, %v1422
        %vm1444 = vcmask 326656
        %v1446 = vsel %vm1444, %v1380, 0
        %vm1448 = vcmask 1043456
        %v1450 = vsel %vm1448, %v1433, 0
        %1452 = vmatprep.subr.bf16.mxu0 0
        %1453 = vmatpush1.bf16.msra.mxu0 %v1423
        %1454 = vmatprep.subr.bf16.mxu0 0
        %1455 = vmatpush1.bf16.msra.mxu0 %v1424
        %1456 = vmatprep.subr.bf16.mxu0 0
        %1457 = vmatpush1.bf16.msra.mxu0 %v1425
        %1458 = vmatprep.subr.bf16.mxu0 0
        %1459 = vmatpush1.bf16.msra.mxu0 %v1426
        %1460 = vmatprep.subr.bf16.mxu0 0
        %1461 = vmatpush1.bf16.msra.mxu0 %v1427
        %1462 = vmatprep.subr.bf16.mxu0 0
        %1463 = vmatpush1.bf16.msra.mxu0 %v1428
        %1464 = vmatprep.subr.bf16.mxu0 0
        %1465 = vmatpush1.bf16.msra.mxu0 %v1429
        %1466 = vmatprep.subr.bf16.mxu0 0
        %1467 = vmatpush1.bf16.msra.mxu0 %v1430
        %1468 = vmatprep.subr.bf16.mxu0 0
        %1469 = vmatpush1.bf16.msra.mxu0 %v1431
        %1470 = vmatprep.subr.bf16.mxu0 0
        %1471 = vmatpush1.bf16.msra.mxu0 %v1432
        %1472 = vmatprep.subr.bf16.mxu0 0
        %1473 = vmatpush1.bf16.msra.mxu0 %v1450
        %1474 = vmatprep.subr.bf16.mxu0 0
        %1475 = vmatpush1.bf16.msra.mxu0 0
        %1476 = vmatprep.subr.bf16.mxu0 0
        %1477 = vmatpush1.bf16.msra.mxu0 0
        %1478 = vmatprep.subr.bf16.mxu0 0
        %1479 = vmatpush1.bf16.msra.mxu0 0
        %1480 = vmatprep.subr.bf16.mxu0 0
        %1481 = vmatpush1.bf16.msra.mxu0 0
        %1482 = vmatprep.subr.bf16.mxu0 0
        %1483 = vmatpush1.bf16.msra.mxu0 0
        %1484 = vmatprep.mubr.bf16.mxu0 %v1446
        %1485 = vmatmul.mubr.bf16.gmra.mrb[0].mxu0 %v1379
        %v1486 = vpop.f32.mrb[0].mxu0
        %v1487 = vadd.f32 0.0, %v1486
        %v1488 = vpop.f32.mrb[0].mxu0
        %v1489 = vpop.f32.mrb[0].mxu0
        %v1490 = vadd.f32 0.0, %v1489
        %v1491 = vpop.f32.mrb[0].mxu0
        %1492 = vdwg.mxu0
        %s1493 = scalar_lea.vmem %s4, 84
        %v1494 = vld [vmem:[%s1493] sm:$0xf]
        %v1495 = vld [vmem:[%s1493 + $0x4] sm:$0xf]
        %v1496 = vld [vmem:[%s1493 + $0x8] sm:$0xf]
        %v1497 = vld [vmem:[%s1493 + $0xc] sm:$0xf]
        %v1498 = vld [vmem:[%s1493 + $0x10] sm:$0xf]
        %v1499 = vld [vmem:[%s1493 + $0x14] sm:$0xf]
        %v1500 = vld [vmem:[%s1493 + $0x18] sm:$0xf]
        %v1501 = vld [vmem:[%s1493 + $0x1c] sm:$0xf]
        %v1502 = vld [vmem:[%s1493 + $0x20] sm:$0xf]
        %v1503 = vld [vmem:[%s1493 + $0x24] sm:$0xf]
        %v1504 = vld [vmem:[%s1493 + $0x28] sm:$0xf]
        %v1505 = vld [vmem:[%s1493 + $0x2c] sm:$0xf]
        %v1506 = vld [vmem:[%s1493 + $0x30] sm:$0xf]
        %v1507 = vld [vmem:[%s1493 + $0x34] sm:$0xf]
        %v1508 = vld [vmem:[%s1493 + $0x38] sm:$0xf]
        %v1509 = vld [vmem:[%s1493 + $0x3c] sm:$0xf]
        %v1510 = vld [vmem:[%s1493 + $0x40] sm:$0xf]
        %v1511 = vld [vmem:[%s1493 + $0x44] sm:$0xf]
        %v1512 = vld [vmem:[%s1493 + $0x48] sm:$0xf]
        %v1513 = vld [vmem:[%s1493 + $0x4c] sm:$0xf]
        %v1514 = vld [vmem:[%s1493 + $0x50] sm:$0xf]
        %v1536 = vunpack.c.l.b16 %v1494
        %v1537 = vunpack.c.l.b16 %v1495
        %v1538 = vunpack.c.l.b16 %v1496
        %v1539 = vunpack.c.l.b16 %v1497
        %v1540 = vunpack.c.l.b16 %v1498
        %v1541 = vunpack.c.l.b16 %v1499
        %v1542 = vunpack.c.l.b16 %v1500
        %v1543 = vunpack.c.l.b16 %v1501
        %v1544 = vunpack.c.l.b16 %v1502
        %v1545 = vunpack.c.l.b16 %v1503
        %v1546 = vunpack.c.l.b16 %v1504
        %v1547 = vunpack.c.l.b16 %v1505
        %v1548 = vunpack.c.l.b16 %v1506
        %v1549 = vunpack.c.l.b16 %v1507
        %v1550 = vunpack.c.l.b16 %v1508
        %v1551 = vunpack.c.l.b16 %v1509
        %v1552 = vunpack.c.l.b16 %v1510
        %v1553 = vunpack.c.l.b16 %v1511
        %v1554 = vunpack.c.l.b16 %v1512
        %v1555 = vunpack.c.l.b16 %v1513
        %v1556 = vunpack.c.l.b16 %v1514
        %v1557 = vpack.c.b16 %v1537, %v1536
        %v1558 = vpack.c.b16 %v1539, %v1538
        %v1559 = vpack.c.b16 %v1541, %v1540
        %v1560 = vpack.c.b16 %v1543, %v1542
        %v1561 = vpack.c.b16 %v1545, %v1544
        %v1562 = vpack.c.b16 %v1547, %v1546
        %v1563 = vpack.c.b16 %v1549, %v1548
        %v1564 = vpack.c.b16 %v1551, %v1550
        %v1565 = vpack.c.b16 %v1553, %v1552
        %v1566 = vpack.c.b16 %v1555, %v1554
        %v1567 = vpack.c.b16 %v1556, %v1556
        %v1579 = vsel %vm1448, %v1567, 0
        %1581 = vmatprep.subr.bf16.mxu0 0
        %1582 = vmatpush1.bf16.msra.mxu0 %v1557
        %1583 = vmatprep.subr.bf16.mxu0 0
        %1584 = vmatpush1.bf16.msra.mxu0 %v1558
        %1585 = vmatprep.subr.bf16.mxu0 0
        %1586 = vmatpush1.bf16.msra.mxu0 %v1559
        %1587 = vmatprep.subr.bf16.mxu0 0
        %1588 = vmatpush1.bf16.msra.mxu0 %v1560
        %1589 = vmatprep.subr.bf16.mxu0 0
        %1590 = vmatpush1.bf16.msra.mxu0 %v1561
        %1591 = vmatprep.subr.bf16.mxu0 0
        %1592 = vmatpush1.bf16.msra.mxu0 %v1562
        %1593 = vmatprep.subr.bf16.mxu0 0
        %1594 = vmatpush1.bf16.msra.mxu0 %v1563
        %1595 = vmatprep.subr.bf16.mxu0 0
        %1596 = vmatpush1.bf16.msra.mxu0 %v1564
        %1597 = vmatprep.subr.bf16.mxu0 0
        %1598 = vmatpush1.bf16.msra.mxu0 %v1565
        %1599 = vmatprep.subr.bf16.mxu0 0
        %1600 = vmatpush1.bf16.msra.mxu0 %v1566
        %1601 = vmatprep.subr.bf16.mxu0 0
        %1602 = vmatpush1.bf16.msra.mxu0 %v1579
        %1603 = vmatprep.subr.bf16.mxu0 0
        %1604 = vmatpush1.bf16.msra.mxu0 0
        %1605 = vmatprep.subr.bf16.mxu0 0
        %1606 = vmatpush1.bf16.msra.mxu0 0
        %1607 = vmatprep.subr.bf16.mxu0 0
        %1608 = vmatpush1.bf16.msra.mxu0 0
        %1609 = vmatprep.subr.bf16.mxu0 0
        %1610 = vmatpush1.bf16.msra.mxu0 0
        %1611 = vmatprep.subr.bf16.mxu0 0
        %1612 = vmatpush1.bf16.msra.mxu0 0
        %1613 = vmatprep.mubr.bf16.mxu0 %v1446
        %1614 = vmatmul.mubr.bf16.gmra.mrb[0].mxu0 %v1379
        %v1615 = vpop.f32.mrb[0].mxu0
        %v1616 = vadd.f32 0.0, %v1615
        %v1617 = vpop.f32.mrb[0].mxu0
        %v1618 = vpop.f32.mrb[0].mxu0
        %v1619 = vadd.f32 0.0, %v1618
        %v1620 = vpop.f32.mrb[0].mxu0
        %1621 = vdwg.mxu0
        %v1622 = vmax.f32 %v1487, %v1616
        %v1623 = vmax.f32 %v1490, %v1619
        %vm1624 = vcmask 687104
        %1625 = vst.msk [vmem:[#allocation2] sm:$0xff] %vm1624, %v1622
        %vm1626 = vcmask 685056
        %1627 = vst.msk [vmem:[#allocation2 + $0x8] sm:$0x3f] %vm1626, %v1623
        %v1628 = vld [vmem:[#allocation2] sm:$0xff]
        %v1629 = vld [vmem:[#allocation2 + $0x8] sm:$0x3]
        %v1630 = vld [vmem:[%s5] sm:$0xff]
        %v1631 = vld [vmem:[%s5 + $0x8] sm:$0xff]
        %v1632 = vld [vmem:[%s5 + $0x10] sm:$0xff]
        %v1633 = vld [vmem:[%s5 + $0x18] sm:$0xff]
        %v1634 = vld [vmem:[%s5 + $0x20] sm:$0xff]
        %v1635 = vld [vmem:[%s5 + $0x28] sm:$0xff]
        %v1636 = vld [vmem:[%s5 + $0x30] sm:$0xff]
        %v1637 = vld [vmem:[%s5 + $0x38] sm:$0xff]
        %v1638 = vld [vmem:[%s5 + $0x40] sm:$0xff]
        %v1639 = vld [vmem:[%s5 + $0x48] sm:$0xff]
        %v1640 = vld [vmem:[%s5 + $0x50] sm:$0x33]
        %v1641 = vpack.c.bf16 %v1629, %v1628
        %v1642 = vld [vmem:[#allocation2 + $0x1] sm:$0xff]
        %v1643 = vld [vmem:[#allocation2 + $0x9] sm:$0x3]
        %s1644 = scalar_lea.vmem %s5, 88
        %v1645 = vld [vmem:[%s1644] sm:$0xff]
        %v1646 = vld [vmem:[%s1644 + $0x8] sm:$0xff]
        %v1647 = vld [vmem:[%s1644 + $0x10] sm:$0xff]
        %v1648 = vld [vmem:[%s1644 + $0x18] sm:$0xff]
        %v1649 = vld [vmem:[%s1644 + $0x20] sm:$0xff]
        %v1650 = vld [vmem:[%s1644 + $0x28] sm:$0xff]
        %v1651 = vld [vmem:[%s1644 + $0x30] sm:$0xff]
        %v1652 = vld [vmem:[%s1644 + $0x38] sm:$0xff]
        %v1653 = vld [vmem:[%s1644 + $0x40] sm:$0xff]
        %v1654 = vld [vmem:[%s1644 + $0x48] sm:$0xff]
        %v1655 = vld [vmem:[%s1644 + $0x50] sm:$0x33]
        %v1656 = vpack.c.bf16 %v1643, %v1642
        %v1668 = vunpack.c.l.b16 %v1645
        %v1669 = vunpack.c.h.b16 %v1645
        %v1670 = vunpack.c.l.b16 %v1646
        %v1671 = vunpack.c.h.b16 %v1646
        %v1672 = vunpack.c.l.b16 %v1647
        %v1673 = vunpack.c.h.b16 %v1647
        %v1674 = vunpack.c.l.b16 %v1648
        %v1675 = vunpack.c.h.b16 %v1648
        %v1676 = vunpack.c.l.b16 %v1649
        %v1677 = vunpack.c.h.b16 %v1649
        %v1678 = vunpack.c.l.b16 %v1650
        %v1679 = vunpack.c.h.b16 %v1650
        %v1680 = vunpack.c.l.b16 %v1651
        %v1681 = vunpack.c.h.b16 %v1651
        %v1682 = vunpack.c.l.b16 %v1652
        %v1683 = vunpack.c.h.b16 %v1652
        %v1684 = vunpack.c.l.b16 %v1653
        %v1685 = vunpack.c.h.b16 %v1653
        %v1686 = vunpack.c.l.b16 %v1654
        %v1687 = vunpack.c.h.b16 %v1654
        %v1688 = vunpack.c.l.b16 %v1655
        %v1689 = vunpack.c.h.b16 %v1655
        %v1690 = vpack.c.b16 %v1670, %v1668
        %v1691 = vpack.c.b16 %v1671, %v1669
        %v1692 = vpack.c.b16 %v1674, %v1672
        %v1693 = vpack.c.b16 %v1675, %v1673
        %v1694 = vpack.c.b16 %v1678, %v1676
        %v1695 = vpack.c.b16 %v1679, %v1677
        %v1696 = vpack.c.b16 %v1682, %v1680
        %v1697 = vpack.c.b16 %v1683, %v1681
        %v1698 = vpack.c.b16 %v1686, %v1684
        %v1699 = vpack.c.b16 %v1687, %v1685
        %v1700 = vpack.c.b16 %v1688, %v1688
        %v1701 = vpack.c.b16 %v1689, %v1689
        %v1713 = vsel %vm1624, %v1656, 0
        %vm1715 = vcmask 1041408
        %v1717 = vsel %vm1715, %v1700, 0
        %v1720 = vsel %vm1715, %v1701, 0
        %1722 = vmatprep.subr.bf16.mxu0 %v1691
        %1723 = vmatpush1.bf16.msra.mxu0 %v1690
        %1724 = vmatprep.subr.bf16.mxu0 %v1693
        %1725 = vmatpush1.bf16.msra.mxu0 %v1692
        %1726 = vmatprep.subr.bf16.mxu0 %v1695
        %1727 = vmatpush1.bf16.msra.mxu0 %v1694
        %1728 = vmatprep.subr.bf16.mxu0 %v1697
        %1729 = vmatpush1.bf16.msra.mxu0 %v1696
        %1730 = vmatprep.subr.bf16.mxu0 %v1699
        %1731 = vmatpush1.bf16.msra.mxu0 %v1698
        %1732 = vmatprep.subr.bf16.mxu0 %v1720
        %1733 = vmatpush1.bf16.msra.mxu0 %v1717
        %1734 = vmatprep.subr.bf16.mxu0 0
        %1735 = vmatpush1.bf16.msra.mxu0 0
        %1736 = vmatprep.subr.bf16.mxu0 0
        %1737 = vmatpush1.bf16.msra.mxu0 0
        %1738 = vmatprep.subr.bf16.mxu0 0
        %1739 = vmatpush1.bf16.msra.mxu0 0
        %1740 = vmatprep.subr.bf16.mxu0 0
        %1741 = vmatpush1.bf16.msra.mxu0 0
        %1742 = vmatprep.subr.bf16.mxu0 0
        %1743 = vmatpush1.bf16.msra.mxu0 0
        %1744 = vmatprep.subr.bf16.mxu0 0
        %1745 = vmatpush1.bf16.msra.mxu0 0
        %1746 = vmatprep.subr.bf16.mxu0 0
        %1747 = vmatpush1.bf16.msra.mxu0 0
        %1748 = vmatprep.subr.bf16.mxu0 0
        %1749 = vmatpush1.bf16.msra.mxu0 0
        %1750 = vmatprep.subr.bf16.mxu0 0
        %1751 = vmatpush1.bf16.msra.mxu0 0
        %1752 = vmatprep.subr.bf16.mxu0 0
        %1753 = vmatpush1.bf16.msra.mxu0 0
        %1754 = vmatprep.mubr.bf16.mxu0 0
        %1755 = vmatmul.mubr.bf16.gmra.mrb[0].mxu0 %v1713
        %v1756 = vpop.f32.mrb[0].mxu0
        %v1757 = vadd.f32 0.0, %v1756
        %v1758 = vpop.f32.mrb[0].mxu0
        %v1759 = vadd.f32 0.0, %v1758
        %v1760 = vpop.f32.mrb[0].mxu0
        %v1761 = vadd.f32 0.0, %v1760
        %v1762 = vpop.f32.mrb[0].mxu0
        %v1763 = vadd.f32 0.0, %v1762
        %1764 = vdwg.mxu0
        %v1776 = vunpack.c.l.b16 %v1630
        %v1777 = vunpack.c.h.b16 %v1630
        %v1778 = vunpack.c.l.b16 %v1631
        %v1779 = vunpack.c.h.b16 %v1631
        %v1780 = vunpack.c.l.b16 %v1632
        %v1781 = vunpack.c.h.b16 %v1632
        %v1782 = vunpack.c.l.b16 %v1633
        %v1783 = vunpack.c.h.b16 %v1633
        %v1784 = vunpack.c.l.b16 %v1634
        %v1785 = vunpack.c.h.b16 %v1634
        %v1786 = vunpack.c.l.b16 %v1635
        %v1787 = vunpack.c.h.b16 %v1635
        %v1788 = vunpack.c.l.b16 %v1636
        %v1789 = vunpack.c.h.b16 %v1636
        %v1790 = vunpack.c.l.b16 %v1637
        %v1791 = vunpack.c.h.b16 %v1637
        %v1792 = vunpack.c.l.b16 %v1638
        %v1793 = vunpack.c.h.b16 %v1638
        %v1794 = vunpack.c.l.b16 %v1639
        %v1795 = vunpack.c.h.b16 %v1639
        %v1796 = vunpack.c.l.b16 %v1640
        %v1797 = vunpack.c.h.b16 %v1640
        %v1798 = vpack.c.b16 %v1778, %v1776
        %v1799 = vpack.c.b16 %v1779, %v1777
        %v1800 = vpack.c.b16 %v1782, %v1780
        %v1801 = vpack.c.b16 %v1783, %v1781
        %v1802 = vpack.c.b16 %v1786, %v1784
        %v1803 = vpack.c.b16 %v1787, %v1785
        %v1804 = vpack.c.b16 %v1790, %v1788
        %v1805 = vpack.c.b16 %v1791, %v1789
        %v1806 = vpack.c.b16 %v1794, %v1792
        %v1807 = vpack.c.b16 %v1795, %v1793
        %v1808 = vpack.c.b16 %v1796, %v1796
        %v1809 = vpack.c.b16 %v1797, %v1797
        %v1821 = vsel %vm1624, %v1641, 0
        %v1824 = vsel %vm1715, %v1808, 0
        %v1827 = vsel %vm1715, %v1809, 0
        %1829 = vmatprep.subr.bf16.mxu0 %v1799
        %1830 = vmatpush1.bf16.msra.mxu0 %v1798
        %1831 = vmatprep.subr.bf16.mxu0 %v1801
        %1832 = vmatpush1.bf16.msra.mxu0 %v1800
        %1833 = vmatprep.subr.bf16.mxu0 %v1803
        %1834 = vmatpush1.bf16.msra.mxu0 %v1802
        %1835 = vmatprep.subr.bf16.mxu0 %v1805
        %1836 = vmatpush1.bf16.msra.mxu0 %v1804
        %1837 = vmatprep.subr.bf16.mxu0 %v1807
        %1838 = vmatpush1.bf16.msra.mxu0 %v1806
        %1839 = vmatprep.subr.bf16.mxu0 %v1827
        %1840 = vmatpush1.bf16.msra.mxu0 %v1824
        %1841 = vmatprep.subr.bf16.mxu0 0
        %1842 = vmatpush1.bf16.msra.mxu0 0
        %1843 = vmatprep.subr.bf16.mxu0 0
        %1844 = vmatpush1.bf16.msra.mxu0 0
        %1845 = vmatprep.subr.bf16.mxu0 0
        %1846 = vmatpush1.bf16.msra.mxu0 0
        %1847 = vmatprep.subr.bf16.mxu0 0
        %1848 = vmatpush1.bf16.msra.mxu0 0
        %1849 = vmatprep.subr.bf16.mxu0 0
        %1850 = vmatpush1.bf16.msra.mxu0 0
        %1851 = vmatprep.subr.bf16.mxu0 0
        %1852 = vmatpush1.bf16.msra.mxu0 0
        %1853 = vmatprep.subr.bf16.mxu0 0
        %1854 = vmatpush1.bf16.msra.mxu0 0
        %1855 = vmatprep.subr.bf16.mxu0 0
        %1856 = vmatpush1.bf16.msra.mxu0 0
        %1857 = vmatprep.subr.bf16.mxu0 0
        %1858 = vmatpush1.bf16.msra.mxu0 0
        %1859 = vmatprep.subr.bf16.mxu0 0
        %1860 = vmatpush1.bf16.msra.mxu0 0
        %1861 = vmatprep.mubr.bf16.mxu0 0
        %1862 = vmatmul.mubr.bf16.gmra.mrb[0].mxu0 %v1821
        %v1863 = vpop.f32.mrb[0].mxu0
        %v1864 = vadd.f32 %v1757, %v1863
        %v1865 = vpop.f32.mrb[0].mxu0
        %v1866 = vadd.f32 %v1759, %v1865
        %v1867 = vpop.f32.mrb[0].mxu0
        %v1868 = vadd.f32 %v1761, %v1867
        %v1869 = vpop.f32.mrb[0].mxu0
        %v1870 = vadd.f32 %v1763, %v1869
        %1871 = vdwg.mxu0
        %v1872 = vld [vmem:[#allocation2 + $0x2] sm:$0xff]
        %v1873 = vld [vmem:[#allocation2 + $0xa] sm:$0x3]
        %s1874 = scalar_lea.vmem %s5, 176
        %v1875 = vld [vmem:[%s1874] sm:$0xff]
        %v1876 = vld [vmem:[%s1874 + $0x8] sm:$0xff]
        %v1877 = vld [vmem:[%s1874 + $0x10] sm:$0xff]
        %v1878 = vld [vmem:[%s1874 + $0x18] sm:$0xff]
        %v1879 = vld [vmem:[%s1874 + $0x20] sm:$0xff]
        %v1880 = vld [vmem:[%s1874 + $0x28] sm:$0xff]
        %v1881 = vld [vmem:[%s1874 + $0x30] sm:$0xff]
        %v1882 = vld [vmem:[%s1874 + $0x38] sm:$0xff]
        %v1883 = vld [vmem:[%s1874 + $0x40] sm:$0xff]
        %v1884 = vld [vmem:[%s1874 + $0x48] sm:$0xff]
        %v1885 = vld [vmem:[%s1874 + $0x50] sm:$0x33]
        %v1886 = vpack.c.bf16 %v1873, %v1872
        %v1898 = vunpack.c.l.b16 %v1875
        %v1899 = vunpack.c.h.b16 %v1875
        %v1900 = vunpack.c.l.b16 %v1876
        %v1901 = vunpack.c.h.b16 %v1876
        %v1902 = vunpack.c.l.b16 %v1877
        %v1903 = vunpack.c.h.b16 %v1877
        %v1904 = vunpack.c.l.b16 %v1878
        %v1905 = vunpack.c.h.b16 %v1878
        %v1906 = vunpack.c.l.b16 %v1879
        %v1907 = vunpack.c.h.b16 %v1879
        %v1908 = vunpack.c.l.b16 %v1880
        %v1909 = vunpack.c.h.b16 %v1880
        %v1910 = vunpack.c.l.b16 %v1881
        %v1911 = vunpack.c.h.b16 %v1881
        %v1912 = vunpack.c.l.b16 %v1882
        %v1913 = vunpack.c.h.b16 %v1882
        %v1914 = vunpack.c.l.b16 %v1883
        %v1915 = vunpack.c.h.b16 %v1883
        %v1916 = vunpack.c.l.b16 %v1884
        %v1917 = vunpack.c.h.b16 %v1884
        %v1918 = vunpack.c.l.b16 %v1885
        %v1919 = vunpack.c.h.b16 %v1885
        %v1920 = vpack.c.b16 %v1900, %v1898
        %v1921 = vpack.c.b16 %v1901, %v1899
        %v1922 = vpack.c.b16 %v1904, %v1902
        %v1923 = vpack.c.b16 %v1905, %v1903
        %v1924 = vpack.c.b16 %v1908, %v1906
        %v1925 = vpack.c.b16 %v1909, %v1907
        %v1926 = vpack.c.b16 %v1912, %v1910
        %v1927 = vpack.c.b16 %v1913, %v1911
        %v1928 = vpack.c.b16 %v1916, %v1914
        %v1929 = vpack.c.b16 %v1917, %v1915
        %v1930 = vpack.c.b16 %v1918, %v1918
        %v1931 = vpack.c.b16 %v1919, %v1919
        %v1943 = vsel %vm1624, %v1886, 0
        %v1946 = vsel %vm1715, %v1930, 0
        %v1949 = vsel %vm1715, %v1931, 0
        %1951 = vmatprep.subr.bf16.mxu0 %v1921
        %1952 = vmatpush1.bf16.msra.mxu0 %v1920
        %1953 = vmatprep.subr.bf16.mxu0 %v1923
        %1954 = vmatpush1.bf16.msra.mxu0 %v1922
        %1955 = vmatprep.subr.bf16.mxu0 %v1925
        %1956 = vmatpush1.bf16.msra.mxu0 %v1924
        %1957 = vmatprep.subr.bf16.mxu0 %v1927
        %1958 = vmatpush1.bf16.msra.mxu0 %v1926
        %1959 = vmatprep.subr.bf16.mxu0 %v1929
        %1960 = vmatpush1.bf16.msra.mxu0 %v1928
        %1961 = vmatprep.subr.bf16.mxu0 %v1949
        %1962 = vmatpush1.bf16.msra.mxu0 %v1946
        %1963 = vmatprep.subr.bf16.mxu0 0
        %1964 = vmatpush1.bf16.msra.mxu0 0
        %1965 = vmatprep.subr.bf16.mxu0 0
        %1966 = vmatpush1.bf16.msra.mxu0 0
        %1967 = vmatprep.subr.bf16.mxu0 0
        %1968 = vmatpush1.bf16.msra.mxu0 0
        %1969 = vmatprep.subr.bf16.mxu0 0
        %1970 = vmatpush1.bf16.msra.mxu0 0
        %1971 = vmatprep.subr.bf16.mxu0 0
        %1972 = vmatpush1.bf16.msra.mxu0 0
        %1973 = vmatprep.subr.bf16.mxu0 0
        %1974 = vmatpush1.bf16.msra.mxu0 0
        %1975 = vmatprep.subr.bf16.mxu0 0
        %1976 = vmatpush1.bf16.msra.mxu0 0
        %1977 = vmatprep.subr.bf16.mxu0 0
        %1978 = vmatpush1.bf16.msra.mxu0 0
        %1979 = vmatprep.subr.bf16.mxu0 0
        %1980 = vmatpush1.bf16.msra.mxu0 0
        %1981 = vmatprep.subr.bf16.mxu0 0
        %1982 = vmatpush1.bf16.msra.mxu0 0
        %1983 = vmatprep.mubr.bf16.mxu0 0
        %1984 = vmatmul.mubr.bf16.gmra.mrb[0].mxu0 %v1943
        %v1985 = vpop.f32.mrb[0].mxu0
        %v1986 = vadd.f32 0.0, %v1985
        %v1987 = vpop.f32.mrb[0].mxu0
        %v1988 = vadd.f32 0.0, %v1987
        %v1989 = vpop.f32.mrb[0].mxu0
        %v1990 = vadd.f32 0.0, %v1989
        %v1991 = vpop.f32.mrb[0].mxu0
        %v1992 = vadd.f32 0.0, %v1991
        %1993 = vdwg.mxu0
        %v1994 = vadd.f32 %v1864, %v1986
        %v1995 = vadd.f32 %v1866, %v1988
        %v1996 = vadd.f32 %v1868, %v1990
        %v1997 = vadd.f32 %v1870, %v1992
        %v1998 = vld [vmem:[#allocation2 + $0x3] sm:$0xff]
        %v1999 = vld [vmem:[#allocation2 + $0xb] sm:$0x3]
        %s2000 = scalar_lea.vmem %s5, 264
        %v2001 = vld [vmem:[%s2000] sm:$0xff]
        %v2002 = vld [vmem:[%s2000 + $0x8] sm:$0xff]
        %v2003 = vld [vmem:[%s2000 + $0x10] sm:$0xff]
        %v2004 = vld [vmem:[%s2000 + $0x18] sm:$0xff]
        %v2005 = vld [vmem:[%s2000 + $0x20] sm:$0xff]
        %v2006 = vld [vmem:[%s2000 + $0x28] sm:$0xff]
        %v2007 = vld [vmem:[%s2000 + $0x30] sm:$0xff]
        %v2008 = vld [vmem:[%s2000 + $0x38] sm:$0xff]
        %v2009 = vld [vmem:[%s2000 + $0x40] sm:$0xff]
        %v2010 = vld [vmem:[%s2000 + $0x48] sm:$0xff]
        %v2011 = vld [vmem:[%s2000 + $0x50] sm:$0x33]
        %v2012 = vpack.c.bf16 %v1999, %v1998
        %v2024 = vunpack.c.l.b16 %v2001
        %v2025 = vunpack.c.h.b16 %v2001
        %v2026 = vunpack.c.l.b16 %v2002
        %v2027 = vunpack.c.h.b16 %v2002
        %v2028 = vunpack.c.l.b16 %v2003
        %v2029 = vunpack.c.h.b16 %v2003
        %v2030 = vunpack.c.l.b16 %v2004
        %v2031 = vunpack.c.h.b16 %v2004
        %v2032 = vunpack.c.l.b16 %v2005
        %v2033 = vunpack.c.h.b16 %v2005
        %v2034 = vunpack.c.l.b16 %v2006
        %v2035 = vunpack.c.h.b16 %v2006
        %v2036 = vunpack.c.l.b16 %v2007
        %v2037 = vunpack.c.h.b16 %v2007
        %v2038 = vunpack.c.l.b16 %v2008
        %v2039 = vunpack.c.h.b16 %v2008
        %v2040 = vunpack.c.l.b16 %v2009
        %v2041 = vunpack.c.h.b16 %v2009
        %v2042 = vunpack.c.l.b16 %v2010
        %v2043 = vunpack.c.h.b16 %v2010
        %v2044 = vunpack.c.l.b16 %v2011
        %v2045 = vunpack.c.h.b16 %v2011
        %v2046 = vpack.c.b16 %v2026, %v2024
        %v2047 = vpack.c.b16 %v2027, %v2025
        %v2048 = vpack.c.b16 %v2030, %v2028
        %v2049 = vpack.c.b16 %v2031, %v2029
        %v2050 = vpack.c.b16 %v2034, %v2032
        %v2051 = vpack.c.b16 %v2035, %v2033
        %v2052 = vpack.c.b16 %v2038, %v2036
        %v2053 = vpack.c.b16 %v2039, %v2037
        %v2054 = vpack.c.b16 %v2042, %v2040
        %v2055 = vpack.c.b16 %v2043, %v2041
        %v2056 = vpack.c.b16 %v2044, %v2044
        %v2057 = vpack.c.b16 %v2045, %v2045
        %v2069 = vsel %vm1624, %v2012, 0
        %v2072 = vsel %vm1715, %v2056, 0
        %v2075 = vsel %vm1715, %v2057, 0
        %2077 = vmatprep.subr.bf16.mxu0 %v2047
        %2078 = vmatpush1.bf16.msra.mxu0 %v2046
        %2079 = vmatprep.subr.bf16.mxu0 %v2049
        %2080 = vmatpush1.bf16.msra.mxu0 %v2048
        %2081 = vmatprep.subr.bf16.mxu0 %v2051
        %2082 = vmatpush1.bf16.msra.mxu0 %v2050
        %2083 = vmatprep.subr.bf16.mxu0 %v2053
        %2084 = vmatpush1.bf16.msra.mxu0 %v2052
        %2085 = vmatprep.subr.bf16.mxu0 %v2055
        %2086 = vmatpush1.bf16.msra.mxu0 %v2054
        %2087 = vmatprep.subr.bf16.mxu0 %v2075
        %2088 = vmatpush1.bf16.msra.mxu0 %v2072
        %2089 = vmatprep.subr.bf16.mxu0 0
        %2090 = vmatpush1.bf16.msra.mxu0 0
        %2091 = vmatprep.subr.bf16.mxu0 0
        %2092 = vmatpush1.bf16.msra.mxu0 0
        %2093 = vmatprep.subr.bf16.mxu0 0
        %2094 = vmatpush1.bf16.msra.mxu0 0
        %2095 = vmatprep.subr.bf16.mxu0 0
        %2096 = vmatpush1.bf16.msra.mxu0 0
        %2097 = vmatprep.subr.bf16.mxu0 0
        %2098 = vmatpush1.bf16.msra.mxu0 0
        %2099 = vmatprep.subr.bf16.mxu0 0
        %2100 = vmatpush1.bf16.msra.mxu0 0
        %2101 = vmatprep.subr.bf16.mxu0 0
        %2102 = vmatpush1.bf16.msra.mxu0 0
        %2103 = vmatprep.subr.bf16.mxu0 0
        %2104 = vmatpush1.bf16.msra.mxu0 0
        %2105 = vmatprep.subr.bf16.mxu0 0
        %2106 = vmatpush1.bf16.msra.mxu0 0
        %2107 = vmatprep.subr.bf16.mxu0 0
        %2108 = vmatpush1.bf16.msra.mxu0 0
        %2109 = vmatprep.mubr.bf16.mxu0 0
        %2110 = vmatmul.mubr.bf16.gmra.mrb[0].mxu0 %v2069
        %v2111 = vpop.f32.mrb[0].mxu0
        %v2112 = vadd.f32 0.0, %v2111
        %v2113 = vpop.f32.mrb[0].mxu0
        %v2114 = vadd.f32 0.0, %v2113
        %v2115 = vpop.f32.mrb[0].mxu0
        %v2116 = vadd.f32 0.0, %v2115
        %v2117 = vpop.f32.mrb[0].mxu0
        %v2118 = vadd.f32 0.0, %v2117
        %2119 = vdwg.mxu0
        %v2120 = vadd.f32 %v1994, %v2112
        %v2121 = vadd.f32 %v1995, %v2114
        %v2122 = vadd.f32 %v1996, %v2116
        %v2123 = vadd.f32 %v1997, %v2118
        %v2124 = vld [vmem:[#allocation2 + $0x4] sm:$0xff]
        %v2125 = vld [vmem:[#allocation2 + $0xc] sm:$0x3]
        %s2126 = scalar_lea.vmem %s5, 352
        %v2127 = vld [vmem:[%s2126] sm:$0xff]
        %v2128 = vld [vmem:[%s2126 + $0x8] sm:$0xff]
        %v2129 = vld [vmem:[%s2126 + $0x10] sm:$0xff]
        %v2130 = vld [vmem:[%s2126 + $0x18] sm:$0xff]
        %v2131 = vld [vmem:[%s2126 + $0x20] sm:$0xff]
        %v2132 = vld [vmem:[%s2126 + $0x28] sm:$0xff]
        %v2133 = vld [vmem:[%s2126 + $0x30] sm:$0xff]
        %v2134 = vld [vmem:[%s2126 + $0x38] sm:$0xff]
        %v2135 = vld [vmem:[%s2126 + $0x40] sm:$0xff]
        %v2136 = vld [vmem:[%s2126 + $0x48] sm:$0xff]
        %v2137 = vld [vmem:[%s2126 + $0x50] sm:$0x33]
        %v2138 = vpack.c.bf16 %v2125, %v2124
        %v2150 = vunpack.c.l.b16 %v2127
        %v2151 = vunpack.c.h.b16 %v2127
        %v2152 = vunpack.c.l.b16 %v2128
        %v2153 = vunpack.c.h.b16 %v2128
        %v2154 = vunpack.c.l.b16 %v2129
        %v2155 = vunpack.c.h.b16 %v2129
        %v2156 = vunpack.c.l.b16 %v2130
        %v2157 = vunpack.c.h.b16 %v2130
        %v2158 = vunpack.c.l.b16 %v2131
        %v2159 = vunpack.c.h.b16 %v2131
        %v2160 = vunpack.c.l.b16 %v2132
        %v2161 = vunpack.c.h.b16 %v2132
        %v2162 = vunpack.c.l.b16 %v2133
        %v2163 = vunpack.c.h.b16 %v2133
        %v2164 = vunpack.c.l.b16 %v2134
        %v2165 = vunpack.c.h.b16 %v2134
        %v2166 = vunpack.c.l.b16 %v2135
        %v2167 = vunpack.c.h.b16 %v2135
        %v2168 = vunpack.c.l.b16 %v2136
        %v2169 = vunpack.c.h.b16 %v2136
        %v2170 = vunpack.c.l.b16 %v2137
        %v2171 = vunpack.c.h.b16 %v2137
        %v2172 = vpack.c.b16 %v2152, %v2150
        %v2173 = vpack.c.b16 %v2153, %v2151
        %v2174 = vpack.c.b16 %v2156, %v2154
        %v2175 = vpack.c.b16 %v2157, %v2155
        %v2176 = vpack.c.b16 %v2160, %v2158
        %v2177 = vpack.c.b16 %v2161, %v2159
        %v2178 = vpack.c.b16 %v2164, %v2162
        %v2179 = vpack.c.b16 %v2165, %v2163
        %v2180 = vpack.c.b16 %v2168, %v2166
        %v2181 = vpack.c.b16 %v2169, %v2167
        %v2182 = vpack.c.b16 %v2170, %v2170
        %v2183 = vpack.c.b16 %v2171, %v2171
        %v2195 = vsel %vm1624, %v2138, 0
        %v2198 = vsel %vm1715, %v2182, 0
        %v2201 = vsel %vm1715, %v2183, 0
        %2203 = vmatprep.subr.bf16.mxu0 %v2173
        %2204 = vmatpush1.bf16.msra.mxu0 %v2172
        %2205 = vmatprep.subr.bf16.mxu0 %v2175
        %2206 = vmatpush1.bf16.msra.mxu0 %v2174
        %2207 = vmatprep.subr.bf16.mxu0 %v2177
        %2208 = vmatpush1.bf16.msra.mxu0 %v2176
        %2209 = vmatprep.subr.bf16.mxu0 %v2179
        %2210 = vmatpush1.bf16.msra.mxu0 %v2178
        %2211 = vmatprep.subr.bf16.mxu0 %v2181
        %2212 = vmatpush1.bf16.msra.mxu0 %v2180
        %2213 = vmatprep.subr.bf16.mxu0 %v2201
        %2214 = vmatpush1.bf16.msra.mxu0 %v2198
        %2215 = vmatprep.subr.bf16.mxu0 0
        %2216 = vmatpush1.bf16.msra.mxu0 0
        %2217 = vmatprep.subr.bf16.mxu0 0
        %2218 = vmatpush1.bf16.msra.mxu0 0
        %2219 = vmatprep.subr.bf16.mxu0 0
        %2220 = vmatpush1.bf16.msra.mxu0 0
        %2221 = vmatprep.subr.bf16.mxu0 0
        %2222 = vmatpush1.bf16.msra.mxu0 0
        %2223 = vmatprep.subr.bf16.mxu0 0
        %2224 = vmatpush1.bf16.msra.mxu0 0
        %2225 = vmatprep.subr.bf16.mxu0 0
        %2226 = vmatpush1.bf16.msra.mxu0 0
        %2227 = vmatprep.subr.bf16.mxu0 0
        %2228 = vmatpush1.bf16.msra.mxu0 0
        %2229 = vmatprep.subr.bf16.mxu0 0
        %2230 = vmatpush1.bf16.msra.mxu0 0
        %2231 = vmatprep.subr.bf16.mxu0 0
        %2232 = vmatpush1.bf16.msra.mxu0 0
        %2233 = vmatprep.subr.bf16.mxu0 0
        %2234 = vmatpush1.bf16.msra.mxu0 0
        %2235 = vmatprep.mubr.bf16.mxu0 0
        %2236 = vmatmul.mubr.bf16.gmra.mrb[0].mxu0 %v2195
        %v2237 = vpop.f32.mrb[0].mxu0
        %v2238 = vadd.f32 0.0, %v2237
        %v2239 = vpop.f32.mrb[0].mxu0
        %v2240 = vadd.f32 0.0, %v2239
        %v2241 = vpop.f32.mrb[0].mxu0
        %v2242 = vadd.f32 0.0, %v2241
        %v2243 = vpop.f32.mrb[0].mxu0
        %v2244 = vadd.f32 0.0, %v2243
        %2245 = vdwg.mxu0
        %v2246 = vadd.f32 %v2120, %v2238
        %v2247 = vadd.f32 %v2121, %v2240
        %v2248 = vadd.f32 %v2122, %v2242
        %v2249 = vadd.f32 %v2123, %v2244
        %v2250 = vld [vmem:[%s6] sm:$0x3]
        %v2252 = vlaneseq
        %v2253 = vshrl.u32 %v2252, 7
        %v2254 = vsub.s32 0, %v2253
        %v2255 = vrot.slane %v2250, %v2254
        %v2256 = vlaneseq
        %v2257 = vshrl.u32 %v2256, 7
        %v2258 = vsub.s32 1, %v2257
        %v2259 = vrot.slane %v2250, %v2258
        %v2262 = vadd.f32 %v2246, %v2255
        %v2263 = vadd.f32 %v2247, %v2259
        %v2264 = vadd.f32 %v2248, %v2255
        %v2265 = vadd.f32 %v2249, %v2259
        %v2266 = vmax.f32 %v2262, 0.0
        %v2267 = vmax.f32 %v2263, 0.0
        %v2268 = vmax.f32 %v2264, 0.0
        %v2269 = vmax.f32 %v2265, 0.0
        %v2270 = vld [vmem:[%s7] sm:$0x7]
        %v2271 = vpack.c.bf16 %v2268, %v2266
        %v2272 = vpack.c.bf16 %v2269, %v2267
        %vm2273 = vcmask 80896
        %v2275 = vsel %vm2273, %v2270, 0
        %vm2277 = vcmask 1044480
        %v2279 = vsel %vm2277, %v2271, 0
        %v2282 = vsel %vm2277, %v2272, 0
        %2284 = vmatprep.subr.bf16.mxu0 %v2282
        %2285 = vmatpush1.bf16.msra.mxu0 %v2279
        %2286 = vmatprep.subr.bf16.mxu0 0
        %2287 = vmatpush1.bf16.msra.mxu0 0
        %2288 = vmatprep.subr.bf16.mxu0 0
        %2289 = vmatpush1.bf16.msra.mxu0 0
        %2290 = vmatprep.subr.bf16.mxu0 0
        %2291 = vmatpush1.bf16.msra.mxu0 0
        %2292 = vmatprep.subr.bf16.mxu0 0
        %2293 = vmatpush1.bf16.msra.mxu0 0
        %2294 = vmatprep.subr.bf16.mxu0 0
        %2295 = vmatpush1.bf16.msra.mxu0 0
        %2296 = vmatprep.subr.bf16.mxu0 0
        %2297 = vmatpush1.bf16.msra.mxu0 0
        %2298 = vmatprep.subr.bf16.mxu0 0
        %2299 = vmatpush1.bf16.msra.mxu0 0
        %2300 = vmatprep.subr.bf16.mxu0 0
        %2301 = vmatpush1.bf16.msra.mxu0 0
        %2302 = vmatprep.subr.bf16.mxu0 0
        %2303 = vmatpush1.bf16.msra.mxu0 0
        %2304 = vmatprep.subr.bf16.mxu0 0
        %2305 = vmatpush1.bf16.msra.mxu0 0
        %2306 = vmatprep.subr.bf16.mxu0 0
        %2307 = vmatpush1.bf16.msra.mxu0 0
        %2308 = vmatprep.subr.bf16.mxu0 0
        %2309 = vmatpush1.bf16.msra.mxu0 0
        %2310 = vmatprep.subr.bf16.mxu0 0
        %2311 = vmatpush1.bf16.msra.mxu0 0
        %2312 = vmatprep.subr.bf16.mxu0 0
        %2313 = vmatpush1.bf16.msra.mxu0 0
        %2314 = vmatprep.subr.bf16.mxu0 0
        %2315 = vmatpush1.bf16.msra.mxu0 0
        %2316 = vmatprep.mubr.bf16.mxu0 0
        %2317 = vmatmul.mubr.bf16.gmra.mrb[0].mxu0 %v2275
        %v2318 = vpop.f32.mrb[0].mxu0
        %v2319 = vadd.f32 0.0, %v2318
        %v2320 = vpop.f32.mrb[0].mxu0
        %v2321 = vadd.f32 0.0, %v2320
        %v2322 = vpop.f32.mrb[0].mxu0
        %v2323 = vpop.f32.mrb[0].mxu0
        %2324 = vdwg.mxu0
        %s2325 = scalar_lea.vmem %s7, 4
        %v2326 = vld [vmem:[%s2325] sm:$0x7]
        %v2328 = vsel %vm2273, %v2326, 0
        %2330 = vmatprep.subr.bf16.mxu0 %v2282
        %2331 = vmatpush1.bf16.msra.mxu0 %v2279
        %2332 = vmatprep.subr.bf16.mxu0 0
        %2333 = vmatpush1.bf16.msra.mxu0 0
        %2334 = vmatprep.subr.bf16.mxu0 0
        %2335 = vmatpush1.bf16.msra.mxu0 0
        %2336 = vmatprep.subr.bf16.mxu0 0
        %2337 = vmatpush1.bf16.msra.mxu0 0
        %2338 = vmatprep.subr.bf16.mxu0 0
        %2339 = vmatpush1.bf16.msra.mxu0 0
        %2340 = vmatprep.subr.bf16.mxu0 0
        %2341 = vmatpush1.bf16.msra.mxu0 0
        %2342 = vmatprep.subr.bf16.mxu0 0
        %2343 = vmatpush1.bf16.msra.mxu0 0
        %2344 = vmatprep.subr.bf16.mxu0 0
        %2345 = vmatpush1.bf16.msra.mxu0 0
        %2346 = vmatprep.subr.bf16.mxu0 0
        %2347 = vmatpush1.bf16.msra.mxu0 0
        %2348 = vmatprep.subr.bf16.mxu0 0
        %2349 = vmatpush1.bf16.msra.mxu0 0
        %2350 = vmatprep.subr.bf16.mxu0 0
        %2351 = vmatpush1.bf16.msra.mxu0 0
        %2352 = vmatprep.subr.bf16.mxu0 0
        %2353 = vmatpush1.bf16.msra.mxu0 0
        %2354 = vmatprep.subr.bf16.mxu0 0
        %2355 = vmatpush1.bf16.msra.mxu0 0
        %2356 = vmatprep.subr.bf16.mxu0 0
        %2357 = vmatpush1.bf16.msra.mxu0 0
        %2358 = vmatprep.subr.bf16.mxu0 0
        %2359 = vmatpush1.bf16.msra.mxu0 0
        %2360 = vmatprep.subr.bf16.mxu0 0
        %2361 = vmatpush1.bf16.msra.mxu0 0
        %2362 = vmatprep.mubr.bf16.mxu0 0
        %2363 = vmatmul.mubr.bf16.gmra.mrb[0].mxu0 %v2328
        %v2364 = vpop.f32.mrb[0].mxu0
        %v2365 = vadd.f32 0.0, %v2364
        %v2366 = vpop.f32.mrb[0].mxu0
        %v2367 = vadd.f32 0.0, %v2366
        %v2368 = vpop.f32.mrb[0].mxu0
        %v2369 = vpop.f32.mrb[0].mxu0
        %2370 = vdwg.mxu0
        %v2371 = vmax.f32 %v2319, %v2365
        %v2372 = vmax.f32 %v2321, %v2367
        %v2373 = vld [vmem:[%s8] sm:$0xf]
        %v2374 = vld [vmem:[%s8 + $0x4] sm:$0xf]
        %v2375 = vld [vmem:[%s8 + $0x8] sm:$0xf]
        %v2376 = vld [vmem:[%s8 + $0xc] sm:$0xf]
        %v2377 = vld [vmem:[%s8 + $0x10] sm:$0xf]
        %v2378 = vld [vmem:[%s8 + $0x14] sm:$0xf]
        %v2379 = vld [vmem:[%s8 + $0x18] sm:$0xf]
        %v2380 = vld [vmem:[%s8 + $0x1c] sm:$0xf]
        %v2381 = vld [vmem:[%s8 + $0x20] sm:$0xf]
        %v2382 = vld [vmem:[%s8 + $0x24] sm:$0xf]
        %v2383 = vld [vmem:[%s8 + $0x28] sm:$0xf]
        %v2384 = vld [vmem:[%s8 + $0x2c] sm:$0xf]
        %v2385 = vld [vmem:[%s8 + $0x30] sm:$0xf]
        %v2386 = vld [vmem:[%s8 + $0x34] sm:$0xf]
        %v2387 = vld [vmem:[%s8 + $0x38] sm:$0xf]
        %v2388 = vld [vmem:[%s8 + $0x3c] sm:$0xf]
        %v2389 = vld [vmem:[%s8 + $0x40] sm:$0xf]
        %v2390 = vld [vmem:[%s8 + $0x44] sm:$0xf]
        %v2391 = vld [vmem:[%s8 + $0x48] sm:$0xf]
        %v2392 = vld [vmem:[%s8 + $0x4c] sm:$0xf]
        %v2393 = vpack.c.bf16 %v2371, %v2371
        %v2394 = vpack.c.bf16 %v2372, %v2372
        %v2415 = vunpack.c.l.b16 %v2373
        %v2416 = vunpack.c.l.b16 %v2374
        %v2417 = vunpack.c.l.b16 %v2375
        %v2418 = vunpack.c.l.b16 %v2376
        %v2419 = vunpack.c.l.b16 %v2377
        %v2420 = vunpack.c.l.b16 %v2378
        %v2421 = vunpack.c.l.b16 %v2379
        %v2422 = vunpack.c.l.b16 %v2380
        %v2423 = vunpack.c.l.b16 %v2381
        %v2424 = vunpack.c.l.b16 %v2382
        %v2425 = vunpack.c.l.b16 %v2383
        %v2426 = vunpack.c.l.b16 %v2384
        %v2427 = vunpack.c.l.b16 %v2385
        %v2428 = vunpack.c.l.b16 %v2386
        %v2429 = vunpack.c.l.b16 %v2387
        %v2430 = vunpack.c.l.b16 %v2388
        %v2431 = vunpack.c.l.b16 %v2389
        %v2432 = vunpack.c.l.b16 %v2390
        %v2433 = vunpack.c.l.b16 %v2391
        %v2434 = vunpack.c.l.b16 %v2392
        %v2435 = vpack.c.b16 %v2416, %v2415
        %v2436 = vpack.c.b16 %v2418, %v2417
        %v2437 = vpack.c.b16 %v2420, %v2419
        %v2438 = vpack.c.b16 %v2422, %v2421
        %v2439 = vpack.c.b16 %v2424, %v2423
        %v2440 = vpack.c.b16 %v2426, %v2425
        %v2441 = vpack.c.b16 %v2428, %v2427
        %v2442 = vpack.c.b16 %v2430, %v2429
        %v2443 = vpack.c.b16 %v2432, %v2431
        %v2444 = vpack.c.b16 %v2434, %v2433
        %vm2455 = vcmask 261120
        %v2457 = vsel %vm2455, %v2394, 0
        %2459 = vmatprep.subr.bf16.mxu0 0
        %2460 = vmatpush1.bf16.msra.mxu0 %v2435
        %2461 = vmatprep.subr.bf16.mxu0 0
        %2462 = vmatpush1.bf16.msra.mxu0 %v2436
        %2463 = vmatprep.subr.bf16.mxu0 0
        %2464 = vmatpush1.bf16.msra.mxu0 %v2437
        %2465 = vmatprep.subr.bf16.mxu0 0
        %2466 = vmatpush1.bf16.msra.mxu0 %v2438
        %2467 = vmatprep.subr.bf16.mxu0 0
        %2468 = vmatpush1.bf16.msra.mxu0 %v2439
        %2469 = vmatprep.subr.bf16.mxu0 0
        %2470 = vmatpush1.bf16.msra.mxu0 %v2440
        %2471 = vmatprep.subr.bf16.mxu0 0
        %2472 = vmatpush1.bf16.msra.mxu0 %v2441
        %2473 = vmatprep.subr.bf16.mxu0 0
        %2474 = vmatpush1.bf16.msra.mxu0 %v2442
        %2475 = vmatprep.subr.bf16.mxu0 0
        %2476 = vmatpush1.bf16.msra.mxu0 %v2443
        %2477 = vmatprep.subr.bf16.mxu0 0
        %2478 = vmatpush1.bf16.msra.mxu0 %v2444
        %2479 = vmatprep.subr.bf16.mxu0 0
        %2480 = vmatpush1.bf16.msra.mxu0 0
        %2481 = vmatprep.subr.bf16.mxu0 0
        %2482 = vmatpush1.bf16.msra.mxu0 0
        %2483 = vmatprep.subr.bf16.mxu0 0
        %2484 = vmatpush1.bf16.msra.mxu0 0
        %2485 = vmatprep.subr.bf16.mxu0 0
        %2486 = vmatpush1.bf16.msra.mxu0 0
        %2487 = vmatprep.subr.bf16.mxu0 0
        %2488 = vmatpush1.bf16.msra.mxu0 0
        %2489 = vmatprep.subr.bf16.mxu0 0
        %2490 = vmatpush1.bf16.msra.mxu0 0
        %2491 = vmatprep.mubr.bf16.mxu0 %v2457
        %2492 = vmatmul.mubr.bf16.gmra.mrb[0].mxu0 %v2393
        %v2493 = vpop.f32.mrb[0].mxu0
        %v2494 = vadd.f32 0.0, %v2493
        %v2495 = vpop.f32.mrb[0].mxu0
        %v2496 = vpop.f32.mrb[0].mxu0
        %v2497 = vpop.f32.mrb[0].mxu0
        %2498 = vdwg.mxu0
        %s2499 = scalar_lea.vmem %s8, 80
        %v2500 = vld [vmem:[%s2499] sm:$0xf]
        %v2501 = vld [vmem:[%s2499 + $0x4] sm:$0xf]
        %v2502 = vld [vmem:[%s2499 + $0x8] sm:$0xf]
        %v2503 = vld [vmem:[%s2499 + $0xc] sm:$0xf]
        %v2504 = vld [vmem:[%s2499 + $0x10] sm:$0xf]
        %v2505 = vld [vmem:[%s2499 + $0x14] sm:$0xf]
        %v2506 = vld [vmem:[%s2499 + $0x18] sm:$0xf]
        %v2507 = vld [vmem:[%s2499 + $0x1c] sm:$0xf]
        %v2508 = vld [vmem:[%s2499 + $0x20] sm:$0xf]
        %v2509 = vld [vmem:[%s2499 + $0x24] sm:$0xf]
        %v2510 = vld [vmem:[%s2499 + $0x28] sm:$0xf]
        %v2511 = vld [vmem:[%s2499 + $0x2c] sm:$0xf]
        %v2512 = vld [vmem:[%s2499 + $0x30] sm:$0xf]
        %v2513 = vld [vmem:[%s2499 + $0x34] sm:$0xf]
        %v2514 = vld [vmem:[%s2499 + $0x38] sm:$0xf]
        %v2515 = vld [vmem:[%s2499 + $0x3c] sm:$0xf]
        %v2516 = vld [vmem:[%s2499 + $0x40] sm:$0xf]
        %v2517 = vld [vmem:[%s2499 + $0x44] sm:$0xf]
        %v2518 = vld [vmem:[%s2499 + $0x48] sm:$0xf]
        %v2519 = vld [vmem:[%s2499 + $0x4c] sm:$0xf]
        %v2540 = vunpack.c.l.b16 %v2500
        %v2541 = vunpack.c.l.b16 %v2501
        %v2542 = vunpack.c.l.b16 %v2502
        %v2543 = vunpack.c.l.b16 %v2503
        %v2544 = vunpack.c.l.b16 %v2504
        %v2545 = vunpack.c.l.b16 %v2505
        %v2546 = vunpack.c.l.b16 %v2506
        %v2547 = vunpack.c.l.b16 %v2507
        %v2548 = vunpack.c.l.b16 %v2508
        %v2549 = vunpack.c.l.b16 %v2509
        %v2550 = vunpack.c.l.b16 %v2510
        %v2551 = vunpack.c.l.b16 %v2511
        %v2552 = vunpack.c.l.b16 %v2512
        %v2553 = vunpack.c.l.b16 %v2513
        %v2554 = vunpack.c.l.b16 %v2514
        %v2555 = vunpack.c.l.b16 %v2515
        %v2556 = vunpack.c.l.b16 %v2516
        %v2557 = vunpack.c.l.b16 %v2517
        %v2558 = vunpack.c.l.b16 %v2518
        %v2559 = vunpack.c.l.b16 %v2519
        %v2560 = vpack.c.b16 %v2541, %v2540
        %v2561 = vpack.c.b16 %v2543, %v2542
        %v2562 = vpack.c.b16 %v2545, %v2544
        %v2563 = vpack.c.b16 %v2547, %v2546
        %v2564 = vpack.c.b16 %v2549, %v2548
        %v2565 = vpack.c.b16 %v2551, %v2550
        %v2566 = vpack.c.b16 %v2553, %v2552
        %v2567 = vpack.c.b16 %v2555, %v2554
        %v2568 = vpack.c.b16 %v2557, %v2556
        %v2569 = vpack.c.b16 %v2559, %v2558
        %2580 = vmatprep.subr.bf16.mxu0 0
        %2581 = vmatpush1.bf16.msra.mxu0 %v2560
        %2582 = vmatprep.subr.bf16.mxu0 0
        %2583 = vmatpush1.bf16.msra.mxu0 %v2561
        %2584 = vmatprep.subr.bf16.mxu0 0
        %2585 = vmatpush1.bf16.msra.mxu0 %v2562
        %2586 = vmatprep.subr.bf16.mxu0 0
        %2587 = vmatpush1.bf16.msra.mxu0 %v2563
        %2588 = vmatprep.subr.bf16.mxu0 0
        %2589 = vmatpush1.bf16.msra.mxu0 %v2564
        %2590 = vmatprep.subr.bf16.mxu0 0
        %2591 = vmatpush1.bf16.msra.mxu0 %v2565
        %2592 = vmatprep.subr.bf16.mxu0 0
        %2593 = vmatpush1.bf16.msra.mxu0 %v2566
        %2594 = vmatprep.subr.bf16.mxu0 0
        %2595 = vmatpush1.bf16.msra.mxu0 %v2567
        %2596 = vmatprep.subr.bf16.mxu0 0
        %2597 = vmatpush1.bf16.msra.mxu0 %v2568
        %2598 = vmatprep.subr.bf16.mxu0 0
        %2599 = vmatpush1.bf16.msra.mxu0 %v2569
        %2600 = vmatprep.subr.bf16.mxu0 0
        %2601 = vmatpush1.bf16.msra.mxu0 0
        %2602 = vmatprep.subr.bf16.mxu0 0
        %2603 = vmatpush1.bf16.msra.mxu0 0
        %2604 = vmatprep.subr.bf16.mxu0 0
        %2605 = vmatpush1.bf16.msra.mxu0 0
        %2606 = vmatprep.subr.bf16.mxu0 0
        %2607 = vmatpush1.bf16.msra.mxu0 0
        %2608 = vmatprep.subr.bf16.mxu0 0
        %2609 = vmatpush1.bf16.msra.mxu0 0
        %2610 = vmatprep.subr.bf16.mxu0 0
        %2611 = vmatpush1.bf16.msra.mxu0 0
        %2612 = vmatprep.mubr.bf16.mxu0 %v2457
        %2613 = vmatmul.mubr.bf16.gmra.mrb[0].mxu0 %v2393
        %v2614 = vpop.f32.mrb[0].mxu0
        %v2615 = vadd.f32 0.0, %v2614
        %v2616 = vpop.f32.mrb[0].mxu0
        %v2617 = vpop.f32.mrb[0].mxu0
        %v2618 = vpop.f32.mrb[0].mxu0
        %2619 = vdwg.mxu0
        %v2620 = vmax.f32 %v2494, %v2615
        %vm2621 = vcmask 651264
        %2622 = vst.msk [vmem:[#allocation3] sm:$0x1f] %vm2621, %v2620
        %v2623 = vld [vmem:[#allocation3] sm:$0x1]
        %v2624 = vld [vmem:[%s9] sm:$0xf]
        %v2625 = vld [vmem:[%s9 + $0x4] sm:$0xf]
        %v2626 = vld [vmem:[%s9 + $0x8] sm:$0xf]
        %v2627 = vld [vmem:[%s9 + $0xc] sm:$0xf]
        %v2628 = vld [vmem:[%s9 + $0x10] sm:$0xf]
        %v2629 = vld [vmem:[%s9 + $0x14] sm:$0xf]
        %v2630 = vld [vmem:[%s9 + $0x18] sm:$0xf]
        %v2631 = vld [vmem:[%s9 + $0x1c] sm:$0xf]
        %v2632 = vld [vmem:[%s9 + $0x20] sm:$0xf]
        %v2633 = vld [vmem:[%s9 + $0x24] sm:$0xf]
        %v2634 = vpack.c.bf16 %v2623, %v2623
        %v2635 = vld [vmem:[#allocation3 + $0x1] sm:$0x1]
        %s2636 = scalar_lea.vmem %s9, 40
        %v2637 = vld [vmem:[%s2636] sm:$0xf]
        %v2638 = vld [vmem:[%s2636 + $0x4] sm:$0xf]
        %v2639 = vld [vmem:[%s2636 + $0x8] sm:$0xf]
        %v2640 = vld [vmem:[%s2636 + $0xc] sm:$0xf]
        %v2641 = vld [vmem:[%s2636 + $0x10] sm:$0xf]
        %v2642 = vld [vmem:[%s2636 + $0x14] sm:$0xf]
        %v2643 = vld [vmem:[%s2636 + $0x18] sm:$0xf]
        %v2644 = vld [vmem:[%s2636 + $0x1c] sm:$0xf]
        %v2645 = vld [vmem:[%s2636 + $0x20] sm:$0xf]
        %v2646 = vld [vmem:[%s2636 + $0x24] sm:$0xf]
        %v2647 = vpack.c.bf16 %v2635, %v2635
        %v2658 = vunpack.c.l.b16 %v2637
        %v2659 = vunpack.c.l.b16 %v2638
        %v2660 = vunpack.c.l.b16 %v2639
        %v2661 = vunpack.c.l.b16 %v2640
        %v2662 = vunpack.c.l.b16 %v2641
        %v2663 = vunpack.c.l.b16 %v2642
        %v2664 = vunpack.c.l.b16 %v2643
        %v2665 = vunpack.c.l.b16 %v2644
        %v2666 = vunpack.c.l.b16 %v2645
        %v2667 = vunpack.c.l.b16 %v2646
        %v2668 = vpack.c.b16 %v2659, %v2658
        %v2669 = vpack.c.b16 %v2661, %v2660
        %v2670 = vpack.c.b16 %v2663, %v2662
        %v2671 = vpack.c.b16 %v2665, %v2664
        %v2672 = vpack.c.b16 %v2667, %v2666
        %vm2678 = vcmask 654336
        %v2680 = vsel %vm2678, %v2647, 0
        %2682 = vmatprep.subr.bf16.mxu0 0
        %2683 = vmatpush1.bf16.msra.mxu0 %v2668
        %2684 = vmatprep.subr.bf16.mxu0 0
        %2685 = vmatpush1.bf16.msra.mxu0 %v2669
        %2686 = vmatprep.subr.bf16.mxu0 0
        %2687 = vmatpush1.bf16.msra.mxu0 %v2670
        %2688 = vmatprep.subr.bf16.mxu0 0
        %2689 = vmatpush1.bf16.msra.mxu0 %v2671
        %2690 = vmatprep.subr.bf16.mxu0 0
        %2691 = vmatpush1.bf16.msra.mxu0 %v2672
        %2692 = vmatprep.subr.bf16.mxu0 0
        %2693 = vmatpush1.bf16.msra.mxu0 0
        %2694 = vmatprep.subr.bf16.mxu0 0
        %2695 = vmatpush1.bf16.msra.mxu0 0
        %2696 = vmatprep.subr.bf16.mxu0 0
        %2697 = vmatpush1.bf16.msra.mxu0 0
        %2698 = vmatprep.subr.bf16.mxu0 0
        %2699 = vmatpush1.bf16.msra.mxu0 0
        %2700 = vmatprep.subr.bf16.mxu0 0
        %2701 = vmatpush1.bf16.msra.mxu0 0
        %2702 = vmatprep.subr.bf16.mxu0 0
        %2703 = vmatpush1.bf16.msra.mxu0 0
        %2704 = vmatprep.subr.bf16.mxu0 0
        %2705 = vmatpush1.bf16.msra.mxu0 0
        %2706 = vmatprep.subr.bf16.mxu0 0
        %2707 = vmatpush1.bf16.msra.mxu0 0
        %2708 = vmatprep.subr.bf16.mxu0 0
        %2709 = vmatpush1.bf16.msra.mxu0 0
        %2710 = vmatprep.subr.bf16.mxu0 0
        %2711 = vmatpush1.bf16.msra.mxu0 0
        %2712 = vmatprep.subr.bf16.mxu0 0
        %2713 = vmatpush1.bf16.msra.mxu0 0
        %2714 = vmatprep.mubr.bf16.mxu0 0
        %2715 = vmatmul.mubr.bf16.gmra.mrb[0].mxu0 %v2680
        %v2716 = vpop.f32.mrb[0].mxu0
        %v2717 = vadd.f32 0.0, %v2716
        %v2718 = vpop.f32.mrb[0].mxu0
        %v2719 = vpop.f32.mrb[0].mxu0
        %v2720 = vpop.f32.mrb[0].mxu0
        %2721 = vdwg.mxu0
        %v2732 = vunpack.c.l.b16 %v2624
        %v2733 = vunpack.c.l.b16 %v2625
        %v2734 = vunpack.c.l.b16 %v2626
        %v2735 = vunpack.c.l.b16 %v2627
        %v2736 = vunpack.c.l.b16 %v2628
        %v2737 = vunpack.c.l.b16 %v2629
        %v2738 = vunpack.c.l.b16 %v2630
        %v2739 = vunpack.c.l.b16 %v2631
        %v2740 = vunpack.c.l.b16 %v2632
        %v2741 = vunpack.c.l.b16 %v2633
        %v2742 = vpack.c.b16 %v2733, %v2732
        %v2743 = vpack.c.b16 %v2735, %v2734
        %v2744 = vpack.c.b16 %v2737, %v2736
        %v2745 = vpack.c.b16 %v2739, %v2738
        %v2746 = vpack.c.b16 %v2741, %v2740
        %v2753 = vsel %vm2678, %v2634, 0
        %2755 = vmatprep.subr.bf16.mxu0 0
        %2756 = vmatpush1.bf16.msra.mxu0 %v2742
        %2757 = vmatprep.subr.bf16.mxu0 0
        %2758 = vmatpush1.bf16.msra.mxu0 %v2743
        %2759 = vmatprep.subr.bf16.mxu0 0
        %2760 = vmatpush1.bf16.msra.mxu0 %v2744
        %2761 = vmatprep.subr.bf16.mxu0 0
        %2762 = vmatpush1.bf16.msra.mxu0 %v2745
        %2763 = vmatprep.subr.bf16.mxu0 0
        %2764 = vmatpush1.bf16.msra.mxu0 %v2746
        %2765 = vmatprep.subr.bf16.mxu0 0
        %2766 = vmatpush1.bf16.msra.mxu0 0
        %2767 = vmatprep.subr.bf16.mxu0 0
        %2768 = vmatpush1.bf16.msra.mxu0 0
        %2769 = vmatprep.subr.bf16.mxu0 0
        %2770 = vmatpush1.bf16.msra.mxu0 0
        %2771 = vmatprep.subr.bf16.mxu0 0
        %2772 = vmatpush1.bf16.msra.mxu0 0
        %2773 = vmatprep.subr.bf16.mxu0 0
        %2774 = vmatpush1.bf16.msra.mxu0 0
        %2775 = vmatprep.subr.bf16.mxu0 0
        %2776 = vmatpush1.bf16.msra.mxu0 0
        %2777 = vmatprep.subr.bf16.mxu0 0
        %2778 = vmatpush1.bf16.msra.mxu0 0
        %2779 = vmatprep.subr.bf16.mxu0 0
        %2780 = vmatpush1.bf16.msra.mxu0 0
        %2781 = vmatprep.subr.bf16.mxu0 0
        %2782 = vmatpush1.bf16.msra.mxu0 0
        %2783 = vmatprep.subr.bf16.mxu0 0
        %2784 = vmatpush1.bf16.msra.mxu0 0
        %2785 = vmatprep.subr.bf16.mxu0 0
        %2786 = vmatpush1.bf16.msra.mxu0 0
        %2787 = vmatprep.mubr.bf16.mxu0 0
        %2788 = vmatmul.mubr.bf16.gmra.mrb[0].mxu0 %v2753
        %v2789 = vpop.f32.mrb[0].mxu0
        %v2790 = vadd.f32 %v2717, %v2789
        %v2791 = vpop.f32.mrb[0].mxu0
        %v2792 = vpop.f32.mrb[0].mxu0
        %v2793 = vpop.f32.mrb[0].mxu0
        %2794 = vdwg.mxu0
        %v2795 = vld [vmem:[#allocation3 + $0x2] sm:$0x1]
        %s2796 = scalar_lea.vmem %s9, 80
        %v2797 = vld [vmem:[%s2796] sm:$0xf]
        %v2798 = vld [vmem:[%s2796 + $0x4] sm:$0xf]
        %v2799 = vld [vmem:[%s2796 + $0x8] sm:$0xf]
        %v2800 = vld [vmem:[%s2796 + $0xc] sm:$0xf]
        %v2801 = vld [vmem:[%s2796 + $0x10] sm:$0xf]
        %v2802 = vld [vmem:[%s2796 + $0x14] sm:$0xf]
        %v2803 = vld [vmem:[%s2796 + $0x18] sm:$0xf]
        %v2804 = vld [vmem:[%s2796 + $0x1c] sm:$0xf]
        %v2805 = vld [vmem:[%s2796 + $0x20] sm:$0xf]
        %v2806 = vld [vmem:[%s2796 + $0x24] sm:$0xf]
        %v2807 = vpack.c.bf16 %v2795, %v2795
        %v2818 = vunpack.c.l.b16 %v2797
        %v2819 = vunpack.c.l.b16 %v2798
        %v2820 = vunpack.c.l.b16 %v2799
        %v2821 = vunpack.c.l.b16 %v2800
        %v2822 = vunpack.c.l.b16 %v2801
        %v2823 = vunpack.c.l.b16 %v2802
        %v2824 = vunpack.c.l.b16 %v2803
        %v2825 = vunpack.c.l.b16 %v2804
        %v2826 = vunpack.c.l.b16 %v2805
        %v2827 = vunpack.c.l.b16 %v2806
        %v2828 = vpack.c.b16 %v2819, %v2818
        %v2829 = vpack.c.b16 %v2821, %v2820
        %v2830 = vpack.c.b16 %v2823, %v2822
        %v2831 = vpack.c.b16 %v2825, %v2824
        %v2832 = vpack.c.b16 %v2827, %v2826
        %v2839 = vsel %vm2678, %v2807, 0
        %2841 = vmatprep.subr.bf16.mxu0 0
        %2842 = vmatpush1.bf16.msra.mxu0 %v2828
        %2843 = vmatprep.subr.bf16.mxu0 0
        %2844 = vmatpush1.bf16.msra.mxu0 %v2829
        %2845 = vmatprep.subr.bf16.mxu0 0
        %2846 = vmatpush1.bf16.msra.mxu0 %v2830
        %2847 = vmatprep.subr.bf16.mxu0 0
        %2848 = vmatpush1.bf16.msra.mxu0 %v2831
        %2849 = vmatprep.subr.bf16.mxu0 0
        %2850 = vmatpush1.bf16.msra.mxu0 %v2832
        %2851 = vmatprep.subr.bf16.mxu0 0
        %2852 = vmatpush1.bf16.msra.mxu0 0
        %2853 = vmatprep.subr.bf16.mxu0 0
        %2854 = vmatpush1.bf16.msra.mxu0 0
        %2855 = vmatprep.subr.bf16.mxu0 0
        %2856 = vmatpush1.bf16.msra.mxu0 0
        %2857 = vmatprep.subr.bf16.mxu0 0
        %2858 = vmatpush1.bf16.msra.mxu0 0
        %2859 = vmatprep.subr.bf16.mxu0 0
        %2860 = vmatpush1.bf16.msra.mxu0 0
        %2861 = vmatprep.subr.bf16.mxu0 0
        %2862 = vmatpush1.bf16.msra.mxu0 0
        %2863 = vmatprep.subr.bf16.mxu0 0
        %2864 = vmatpush1.bf16.msra.mxu0 0
        %2865 = vmatprep.subr.bf16.mxu0 0
        %2866 = vmatpush1.bf16.msra.mxu0 0
        %2867 = vmatprep.subr.bf16.mxu0 0
        %2868 = vmatpush1.bf16.msra.mxu0 0
        %2869 = vmatprep.subr.bf16.mxu0 0
        %2870 = vmatpush1.bf16.msra.mxu0 0
        %2871 = vmatprep.subr.bf16.mxu0 0
        %2872 = vmatpush1.bf16.msra.mxu0 0
        %2873 = vmatprep.mubr.bf16.mxu0 0
        %2874 = vmatmul.mubr.bf16.gmra.mrb[0].mxu0 %v2839
        %v2875 = vpop.f32.mrb[0].mxu0
        %v2876 = vadd.f32 0.0, %v2875
        %v2877 = vpop.f32.mrb[0].mxu0
        %v2878 = vpop.f32.mrb[0].mxu0
        %v2879 = vpop.f32.mrb[0].mxu0
        %2880 = vdwg.mxu0
        %v2881 = vadd.f32 %v2790, %v2876
        %v2882 = vld [vmem:[#allocation3 + $0x3] sm:$0x1]
        %s2883 = scalar_lea.vmem %s9, 120
        %v2884 = vld [vmem:[%s2883] sm:$0xf]
        %v2885 = vld [vmem:[%s2883 + $0x4] sm:$0xf]
        %v2886 = vld [vmem:[%s2883 + $0x8] sm:$0xf]
        %v2887 = vld [vmem:[%s2883 + $0xc] sm:$0xf]
        %v2888 = vld [vmem:[%s2883 + $0x10] sm:$0xf]
        %v2889 = vld [vmem:[%s2883 + $0x14] sm:$0xf]
        %v2890 = vld [vmem:[%s2883 + $0x18] sm:$0xf]
        %v2891 = vld [vmem:[%s2883 + $0x1c] sm:$0xf]
        %v2892 = vld [vmem:[%s2883 + $0x20] sm:$0xf]
        %v2893 = vld [vmem:[%s2883 + $0x24] sm:$0xf]
        %v2894 = vpack.c.bf16 %v2882, %v2882
        %v2905 = vunpack.c.l.b16 %v2884
        %v2906 = vunpack.c.l.b16 %v2885
        %v2907 = vunpack.c.l.b16 %v2886
        %v2908 = vunpack.c.l.b16 %v2887
        %v2909 = vunpack.c.l.b16 %v2888
        %v2910 = vunpack.c.l.b16 %v2889
        %v2911 = vunpack.c.l.b16 %v2890
        %v2912 = vunpack.c.l.b16 %v2891
        %v2913 = vunpack.c.l.b16 %v2892
        %v2914 = vunpack.c.l.b16 %v2893
        %v2915 = vpack.c.b16 %v2906, %v2905
        %v2916 = vpack.c.b16 %v2908, %v2907
        %v2917 = vpack.c.b16 %v2910, %v2909
        %v2918 = vpack.c.b16 %v2912, %v2911
        %v2919 = vpack.c.b16 %v2914, %v2913
        %v2926 = vsel %vm2678, %v2894, 0
        %2928 = vmatprep.subr.bf16.mxu0 0
        %2929 = vmatpush1.bf16.msra.mxu0 %v2915
        %2930 = vmatprep.subr.bf16.mxu0 0
        %2931 = vmatpush1.bf16.msra.mxu0 %v2916
        %2932 = vmatprep.subr.bf16.mxu0 0
        %2933 = vmatpush1.bf16.msra.mxu0 %v2917
        %2934 = vmatprep.subr.bf16.mxu0 0
        %2935 = vmatpush1.bf16.msra.mxu0 %v2918
        %2936 = vmatprep.subr.bf16.mxu0 0
        %2937 = vmatpush1.bf16.msra.mxu0 %v2919
        %2938 = vmatprep.subr.bf16.mxu0 0
        %2939 = vmatpush1.bf16.msra.mxu0 0
        %2940 = vmatprep.subr.bf16.mxu0 0
        %2941 = vmatpush1.bf16.msra.mxu0 0
        %2942 = vmatprep.subr.bf16.mxu0 0
        %2943 = vmatpush1.bf16.msra.mxu0 0
        %2944 = vmatprep.subr.bf16.mxu0 0
        %2945 = vmatpush1.bf16.msra.mxu0 0
        %2946 = vmatprep.subr.bf16.mxu0 0
        %2947 = vmatpush1.bf16.msra.mxu0 0
        %2948 = vmatprep.subr.bf16.mxu0 0
        %2949 = vmatpush1.bf16.msra.mxu0 0
        %2950 = vmatprep.subr.bf16.mxu0 0
        %2951 = vmatpush1.bf16.msra.mxu0 0
        %2952 = vmatprep.subr.bf16.mxu0 0
        %2953 = vmatpush1.bf16.msra.mxu0 0
        %2954 = vmatprep.subr.bf16.mxu0 0
        %2955 = vmatpush1.bf16.msra.mxu0 0
        %2956 = vmatprep.subr.bf16.mxu0 0
        %2957 = vmatpush1.bf16.msra.mxu0 0
        %2958 = vmatprep.subr.bf16.mxu0 0
        %2959 = vmatpush1.bf16.msra.mxu0 0
        %2960 = vmatprep.mubr.bf16.mxu0 0
        %2961 = vmatmul.mubr.bf16.gmra.mrb[0].mxu0 %v2926
        %v2962 = vpop.f32.mrb[0].mxu0
        %v2963 = vadd.f32 0.0, %v2962
        %v2964 = vpop.f32.mrb[0].mxu0
        %v2965 = vpop.f32.mrb[0].mxu0
        %v2966 = vpop.f32.mrb[0].mxu0
        %2967 = vdwg.mxu0
        %v2968 = vadd.f32 %v2881, %v2963
        %v2969 = vld [vmem:[#allocation3 + $0x4] sm:$0x1]
        %s2970 = scalar_lea.vmem %s9, 160
        %v2971 = vld [vmem:[%s2970] sm:$0xf]
        %v2972 = vld [vmem:[%s2970 + $0x4] sm:$0xf]
        %v2973 = vld [vmem:[%s2970 + $0x8] sm:$0xf]
        %v2974 = vld [vmem:[%s2970 + $0xc] sm:$0xf]
        %v2975 = vld [vmem:[%s2970 + $0x10] sm:$0xf]
        %v2976 = vld [vmem:[%s2970 + $0x14] sm:$0xf]
        %v2977 = vld [vmem:[%s2970 + $0x18] sm:$0xf]
        %v2978 = vld [vmem:[%s2970 + $0x1c] sm:$0xf]
        %v2979 = vld [vmem:[%s2970 + $0x20] sm:$0xf]
        %v2980 = vld [vmem:[%s2970 + $0x24] sm:$0xf]
        %v2981 = vpack.c.bf16 %v2969, %v2969
        %v2992 = vunpack.c.l.b16 %v2971
        %v2993 = vunpack.c.l.b16 %v2972
        %v2994 = vunpack.c.l.b16 %v2973
        %v2995 = vunpack.c.l.b16 %v2974
        %v2996 = vunpack.c.l.b16 %v2975
        %v2997 = vunpack.c.l.b16 %v2976
        %v2998 = vunpack.c.l.b16 %v2977
        %v2999 = vunpack.c.l.b16 %v2978
        %v3000 = vunpack.c.l.b16 %v2979
        %v3001 = vunpack.c.l.b16 %v2980
        %v3002 = vpack.c.b16 %v2993, %v2992
        %v3003 = vpack.c.b16 %v2995, %v2994
        %v3004 = vpack.c.b16 %v2997, %v2996
        %v3005 = vpack.c.b16 %v2999, %v2998
        %v3006 = vpack.c.b16 %v3001, %v3000
        %v3013 = vsel %vm2678, %v2981, 0
        %3015 = vmatprep.subr.bf16.mxu0 0
        %3016 = vmatpush1.bf16.msra.mxu0 %v3002
        %3017 = vmatprep.subr.bf16.mxu0 0
        %3018 = vmatpush1.bf16.msra.mxu0 %v3003
        %3019 = vmatprep.subr.bf16.mxu0 0
        %3020 = vmatpush1.bf16.msra.mxu0 %v3004
        %3021 = vmatprep.subr.bf16.mxu0 0
        %3022 = vmatpush1.bf16.msra.mxu0 %v3005
        %3023 = vmatprep.subr.bf16.mxu0 0
        %3024 = vmatpush1.bf16.msra.mxu0 %v3006
        %3025 = vmatprep.subr.bf16.mxu0 0
        %3026 = vmatpush1.bf16.msra.mxu0 0
        %3027 = vmatprep.subr.bf16.mxu0 0
        %3028 = vmatpush1.bf16.msra.mxu0 0
        %3029 = vmatprep.subr.bf16.mxu0 0
        %3030 = vmatpush1.bf16.msra.mxu0 0
        %3031 = vmatprep.subr.bf16.mxu0 0
        %3032 = vmatpush1.bf16.msra.mxu0 0
        %3033 = vmatprep.subr.bf16.mxu0 0
        %3034 = vmatpush1.bf16.msra.mxu0 0
        %3035 = vmatprep.subr.bf16.mxu0 0
        %3036 = vmatpush1.bf16.msra.mxu0 0
        %3037 = vmatprep.subr.bf16.mxu0 0
        %3038 = vmatpush1.bf16.msra.mxu0 0
        %3039 = vmatprep.subr.bf16.mxu0 0
        %3040 = vmatpush1.bf16.msra.mxu0 0
        %3041 = vmatprep.subr.bf16.mxu0 0
        %3042 = vmatpush1.bf16.msra.mxu0 0
        %3043 = vmatprep.subr.bf16.mxu0 0
        %3044 = vmatpush1.bf16.msra.mxu0 0
        %3045 = vmatprep.subr.bf16.mxu0 0
        %3046 = vmatpush1.bf16.msra.mxu0 0
        %3047 = vmatprep.mubr.bf16.mxu0 0
        %3048 = vmatmul.mubr.bf16.gmra.mrb[0].mxu0 %v3013
        %v3049 = vpop.f32.mrb[0].mxu0
        %v3050 = vadd.f32 0.0, %v3049
        %v3051 = vpop.f32.mrb[0].mxu0
        %v3052 = vpop.f32.mrb[0].mxu0
        %v3053 = vpop.f32.mrb[0].mxu0
        %3054 = vdwg.mxu0
        %v3055 = vadd.f32 %v2968, %v3050
        %v3056 = vld [vmem:[%s10] sm:$0x1]
        %v3057 = vadd.f32 %v3055, %v3056
        %v3058 = vmax.f32 %v3057, 0.0
        %v3059 = vld [vmem:[%s11] sm:$0xf]
        %v3060 = vld [vmem:[%s11 + $0x4] sm:$0xf]
        %v3061 = vld [vmem:[%s11 + $0x8] sm:$0xf]
        %v3062 = vld [vmem:[%s11 + $0xc] sm:$0xf]
        %v3063 = vld [vmem:[%s11 + $0x10] sm:$0xf]
        %v3064 = vld [vmem:[%s11 + $0x14] sm:$0xf]
        %v3065 = vld [vmem:[%s11 + $0x18] sm:$0xf]
        %v3066 = vld [vmem:[%s11 + $0x1c] sm:$0xf]
        %v3067 = vld [vmem:[%s11 + $0x20] sm:$0xf]
        %v3068 = vld [vmem:[%s11 + $0x24] sm:$0xf]
        %v3069 = vld [vmem:[%s11 + $0x28] sm:$0xf]
        %v3070 = vld [vmem:[%s11 + $0x2c] sm:$0xf]
        %v3071 = vld [vmem:[%s11 + $0x30] sm:$0xf]
        %v3072 = vld [vmem:[%s11 + $0x34] sm:$0xf]
        %v3073 = vld [vmem:[%s11 + $0x38] sm:$0xf]
        %v3074 = vpack.c.bf16 %v3058, %v3058
        %v3075 = vld [vmem:[%s12] sm:$0x1]
        %v3091 = vunpack.c.l.b16 %v3059
        %v3092 = vunpack.c.l.b16 %v3060
        %v3093 = vunpack.c.l.b16 %v3061
        %v3094 = vunpack.c.l.b16 %v3062
        %v3095 = vunpack.c.l.b16 %v3063
        %v3096 = vunpack.c.l.b16 %v3064
        %v3097 = vunpack.c.l.b16 %v3065
        %v3098 = vunpack.c.l.b16 %v3066
        %v3099 = vunpack.c.l.b16 %v3067
        %v3100 = vunpack.c.l.b16 %v3068
        %v3101 = vunpack.c.l.b16 %v3069
        %v3102 = vunpack.c.l.b16 %v3070
        %v3103 = vunpack.c.l.b16 %v3071
        %v3104 = vunpack.c.l.b16 %v3072
        %v3105 = vunpack.c.l.b16 %v3073
        %v3106 = vpack.c.b16 %v3092, %v3091
        %v3107 = vpack.c.b16 %v3094, %v3093
        %v3108 = vpack.c.b16 %v3096, %v3095
        %v3109 = vpack.c.b16 %v3098, %v3097
        %v3110 = vpack.c.b16 %v3100, %v3099
        %v3111 = vpack.c.b16 %v3102, %v3101
        %v3112 = vpack.c.b16 %v3104, %v3103
        %v3113 = vpack.c.b16 %v3105, %v3105
        %vm3121 = vcmask 982016
        %v3123 = vsel %vm3121, %v3074, 0
        %v3126 = vsel %vm1448, %v3113, 0
        %3128 = vmatprep.subr.bf16.mxu0 0
        %3129 = vmatpush1.bf16.msra.mxu0 %v3106
        %3130 = vmatprep.subr.bf16.mxu0 0
        %3131 = vmatpush1.bf16.msra.mxu0 %v3107
        %3132 = vmatprep.subr.bf16.mxu0 0
        %3133 = vmatpush1.bf16.msra.mxu0 %v3108
        %3134 = vmatprep.subr.bf16.mxu0 0
        %3135 = vmatpush1.bf16.msra.mxu0 %v3109
        %3136 = vmatprep.subr.bf16.mxu0 0
        %3137 = vmatpush1.bf16.msra.mxu0 %v3110
        %3138 = vmatprep.subr.bf16.mxu0 0
        %3139 = vmatpush1.bf16.msra.mxu0 %v3111
        %3140 = vmatprep.subr.bf16.mxu0 0
        %3141 = vmatpush1.bf16.msra.mxu0 %v3112
        %3142 = vmatprep.subr.bf16.mxu0 0
        %3143 = vmatpush1.bf16.msra.mxu0 %v3126
        %3144 = vmatprep.subr.bf16.mxu0 0
        %3145 = vmatpush1.bf16.msra.mxu0 0
        %3146 = vmatprep.subr.bf16.mxu0 0
        %3147 = vmatpush1.bf16.msra.mxu0 0
        %3148 = vmatprep.subr.bf16.mxu0 0
        %3149 = vmatpush1.bf16.msra.mxu0 0
        %3150 = vmatprep.subr.bf16.mxu0 0
        %3151 = vmatpush1.bf16.msra.mxu0 0
        %3152 = vmatprep.subr.bf16.mxu0 0
        %3153 = vmatpush1.bf16.msra.mxu0 0
        %3154 = vmatprep.subr.bf16.mxu0 0
        %3155 = vmatpush1.bf16.msra.mxu0 0
        %3156 = vmatprep.subr.bf16.mxu0 0
        %3157 = vmatpush1.bf16.msra.mxu0 0
        %3158 = vmatprep.subr.bf16.mxu0 0
        %3159 = vmatpush1.bf16.msra.mxu0 0
        %3160 = vmatprep.mubr.bf16.mxu0 0
        %3161 = vmatmul.mubr.bf16.gmra.mrb[0].mxu0 %v3123
        %v3162 = vpop.f32.mrb[0].mxu0
        %v3163 = vadd.f32 %v3075, %v3162
        %v3164 = vpop.f32.mrb[0].mxu0
        %v3165 = vpop.f32.mrb[0].mxu0
        %v3166 = vpop.f32.mrb[0].mxu0
        %3167 = vdwg.mxu0
        %v3168 = vmax.f32 %v3163, 0.0
        %v3169 = vld [vmem:[%s13] sm:$0xf]
        %v3170 = vld [vmem:[%s13 + $0x4] sm:$0xf]
        %v3171 = vld [vmem:[%s13 + $0x8] sm:$0xf]
        %v3172 = vld [vmem:[%s13 + $0xc] sm:$0xf]
        %v3173 = vld [vmem:[%s13 + $0x10] sm:$0xf]
        %v3174 = vld [vmem:[%s13 + $0x14] sm:$0xf]
        %v3175 = vld [vmem:[%s13 + $0x18] sm:$0xf]
        %v3176 = vld [vmem:[%s13 + $0x1c] sm:$0xf]
        %v3177 = vld [vmem:[%s13 + $0x20] sm:$0xf]
        %v3178 = vld [vmem:[%s13 + $0x24] sm:$0xf]
        %v3179 = vld [vmem:[%s13 + $0x28] sm:$0x3]
        %v3180 = vpack.c.bf16 %v3168, %v3168
        %v3181 = vld [vmem:[%s14] sm:$0x1]
        %v3193 = vunpack.c.l.b16 %v3169
        %v3194 = vunpack.c.l.b16 %v3170
        %v3195 = vunpack.c.l.b16 %v3171
        %v3196 = vunpack.c.l.b16 %v3172
        %v3197 = vunpack.c.l.b16 %v3173
        %v3198 = vunpack.c.l.b16 %v3174
        %v3199 = vunpack.c.l.b16 %v3175
        %v3200 = vunpack.c.l.b16 %v3176
        %v3201 = vunpack.c.l.b16 %v3177
        %v3202 = vunpack.c.l.b16 %v3178
        %v3203 = vunpack.c.l.b16 %v3179
        %v3204 = vpack.c.b16 %v3194, %v3193
        %v3205 = vpack.c.b16 %v3196, %v3195
        %v3206 = vpack.c.b16 %v3198, %v3197
        %v3207 = vpack.c.b16 %v3200, %v3199
        %v3208 = vpack.c.b16 %v3202, %v3201
        %v3209 = vpack.c.b16 %v3203, %v3203
        %v3216 = vsel %vm1624, %v3180, 0
        %v3219 = vsel %vm1715, %v3209, 0
        %3221 = vmatprep.subr.bf16.mxu0 0
        %3222 = vmatpush1.bf16.msra.mxu0 %v3204
        %3223 = vmatprep.subr.bf16.mxu0 0
        %3224 = vmatpush1.bf16.msra.mxu0 %v3205
        %3225 = vmatprep.subr.bf16.mxu0 0
        %3226 = vmatpush1.bf16.msra.mxu0 %v3206
        %3227 = vmatprep.subr.bf16.mxu0 0
        %3228 = vmatpush1.bf16.msra.mxu0 %v3207
        %3229 = vmatprep.subr.bf16.mxu0 0
        %3230 = vmatpush1.bf16.msra.mxu0 %v3208
        %3231 = vmatprep.subr.bf16.mxu0 0
        %3232 = vmatpush1.bf16.msra.mxu0 %v3219
        %3233 = vmatprep.subr.bf16.mxu0 0
        %3234 = vmatpush1.bf16.msra.mxu0 0
        %3235 = vmatprep.subr.bf16.mxu0 0
        %3236 = vmatpush1.bf16.msra.mxu0 0
        %3237 = vmatprep.subr.bf16.mxu0 0
        %3238 = vmatpush1.bf16.msra.mxu0 0
        %3239 = vmatprep.subr.bf16.mxu0 0
        %3240 = vmatpush1.bf16.msra.mxu0 0
        %3241 = vmatprep.subr.bf16.mxu0 0
        %3242 = vmatpush1.bf16.msra.mxu0 0
        %3243 = vmatprep.subr.bf16.mxu0 0
        %3244 = vmatpush1.bf16.msra.mxu0 0
        %3245 = vmatprep.subr.bf16.mxu0 0
        %3246 = vmatpush1.bf16.msra.mxu0 0
        %3247 = vmatprep.subr.bf16.mxu0 0
        %3248 = vmatpush1.bf16.msra.mxu0 0
        %3249 = vmatprep.subr.bf16.mxu0 0
        %3250 = vmatpush1.bf16.msra.mxu0 0
        %3251 = vmatprep.subr.bf16.mxu0 0
        %3252 = vmatpush1.bf16.msra.mxu0 0
        %3253 = vmatprep.mubr.bf16.mxu0 0
        %3254 = vmatmul.mubr.bf16.gmra.mrb[0].mxu0 %v3216
        %v3255 = vpop.f32.mrb[0].mxu0
        %v3256 = vadd.f32 %v3181, %v3255
        %v3257 = vpop.f32.mrb[0].mxu0
        %v3258 = vpop.f32.mrb[0].mxu0
        %v3259 = vpop.f32.mrb[0].mxu0
        %3260 = vdwg.mxu0
        %vm3261 = vcmask 73728
        %3262 = vst.msk [vmem:[%s486] sm:$0x1] %vm3261, %v3256
        %s3263 = sand.u32 %s357, 1
        %s3264 = scalar_lea.sflag [#allocation5], %s3263
        %s3265 = sand.u32 %s357, 1
        %s3266 = scalar_lea.vmem [#allocation4], %s3265
        // Predicated region
        $region81: #{cifar10net_forward.1} parent=79 // pred_check
          %p3267 = pneg %p367
        $region82: #{cifar10net_forward.1} parent=79 // pred_check_branch
          %3269 = sbr.rel (%p3267) target = $region84
        $region83: #{cifar10net_forward.1} parent=79 // pred_region
          %s3271 = ssub.s32 16, 16
          %3272 = vsyncadd %s3264, %s3271
          %s3273 = smul.addr %s29, 16
          %s3274 = scalar_lea.hbm %s15, %s3273
          %s3276 = sshll.u32 %s3266, 4
          %s3277 = int_to_ptr.vmem [resolvable:$true] %s3276
          %3279 = dma.vmem_to_hbm [thread:$0]  %s3277, 16, %s3274, %s3264
        $region84: #{cifar10net_forward.1} parent=79 // pred_fallthru
          _
      $region80: #{cifar10net_forward.1} parent=5 // pred_fallthru
        _
      %p3280 = scmp.le.s32.totalorder 2, %s24
      // Predicated region
      $region85: #{cifar10net_forward.1} parent=5 // pred_check
        %p3281 = pneg %p3280
      $region86: #{cifar10net_forward.1} parent=5 // pred_check_branch
        %3283 = sbr.rel (%p3281) target = $region88
      $region87: #{cifar10net_forward.1} parent=5 // pred_region
        %s3284 = ssub.s32 %s24, 2
        // Predicated region
        $region89: #{cifar10net_forward.1} parent=87 // pred_check
          %p3285 = pneg %p373
        $region90: #{cifar10net_forward.1} parent=87 // pred_check_branch
          %3287 = sbr.rel (%p3285) target = $region92
        $region91: #{cifar10net_forward.1} parent=87 // pred_region
          %s3288 = sand.u32 %s358, 1
          %s3289 = scalar_lea.sflag [#allocation5], %s3288
          %s3290 = sand.u32 %s358, 1
          %s3291 = scalar_lea.vmem [#allocation4], %s3290
          %3292 = dma.done %s3289, 16
        $region92: #{cifar10net_forward.1} parent=87 // pred_fallthru
          _
      $region88: #{cifar10net_forward.1} parent=5 // pred_fallthru
        _
    $region6: #{cifar10net_forward.1} parent=1 // loop_footer
      %s28 = sadd.s32 1, %s24
    $region7: #{cifar10net_forward.1} parent=1 // loop_footer_branch
      %23 = sbr.rel target = $region3
    $region8: #{cifar10net_forward.1} parent=1 // loop_exit
      _
    %3293 = vsyncpa [#allocation5], 1
    %s3294 = scalar_lea.sflag [#allocation5], 1
    %3295 = vsyncpa %s3294, 1

</llo_original>
